<compile_context>
chip_gen: v7x
topology: tpu7x:2x2x1
jax: 0.10.0
libtpu: 0.0.40
codegen_flags: <defaults>
</compile_context>

<pallas_src>
import functools

import jax
import jax.numpy as jnp
from jax.experimental import pallas as pl
from jax.experimental.pallas import tpu as pltpu


# ---------------------------------------------------------------------------
# Helpers
# ---------------------------------------------------------------------------

def _round_up(x, m):
    return (x + m - 1) // m * m


def _pad_gate_cols(w, h, hp):
    """(..., 4h) -> (..., 4hp): zero-pad each of the 4 gate blocks to width hp."""
    if hp == h:
        return w
    pad = [(0, 0)] * (w.ndim - 1) + [(0, hp - h)]
    parts = [jnp.pad(w[..., k * h:(k + 1) * h], pad) for k in range(4)]
    return jnp.concatenate(parts, axis=-1)


# ---------------------------------------------------------------------------
# Fused kernel: per-chunk input projection + interleaved fwd/bwd recurrence
# ---------------------------------------------------------------------------

def _bilstm_kernel(xf_ref, xb_ref, len_ref,
                   wih_f_ref, wih_b_ref, whh_f_ref, whh_b_ref,
                   bf_ref, bb_ref,
                   out_f_ref, out_b_ref, hid_f_ref, hid_b_ref,
                   gxf_s, gxb_s, hf_s, cf_s, hb_s, cb_s,
                   *, tc, bp, hp):
    c = pl.program_id(0)
    n_chunks = pl.num_programs(0)

    @pl.when(c == 0)
    def _():
        zeros = jnp.zeros_like(hf_s)
        hf_s[...] = zeros
        cf_s[...] = zeros
        hb_s[...] = zeros
        cb_s[...] = zeros

    # Chunk-level input projection (off the per-step serial path): one
    # MXU matmul with M = tc*bp rows per direction, bias already fused.
    gxf_s[...] = (jnp.dot(xf_ref[...], wih_f_ref[...],
                          preferred_element_type=jnp.float32) + bf_ref[...])
    gxb_s[...] = (jnp.dot(xb_ref[...], wih_b_ref[...],
                          preferred_element_type=jnp.float32) + bb_ref[...])

    wf = whh_f_ref[...]                    # (Hp, 4Hp), resident across the grid
    wb = whh_b_ref[...]
    lens = len_ref[...]                    # (Bp, Hp) int32, resident

    t0_f = c * tc                          # first global step of forward chunk
    t0_b = (n_chunks - 1 - c) * tc         # first global step of backward chunk

    def cell(gx, h, c_state, whh):
        # gx already holds x_t @ W_ih + b_ih + b_hh (PyTorch gate order i,f,g,o)
        gates = gx + jnp.dot(h, whh, preferred_element_type=jnp.float32)
        i_g = jax.nn.sigmoid(gates[:, 0 * hp:1 * hp])
        f_g = jax.nn.sigmoid(gates[:, 1 * hp:2 * hp])
        g_g = jnp.tanh(gates[:, 2 * hp:3 * hp])
        o_g = jax.nn.sigmoid(gates[:, 3 * hp:4 * hp])
        c_new = f_g * c_state + i_g * g_g
        h_new = o_g * jnp.tanh(c_new)
        return h_new, c_new

    def body(i, carry):
        hf, cf, hb, cb = carry

        # Forward direction: local step i, global time t0_f + i.
        rf = pl.multiple_of(i * bp, bp)
        hf_new, cf_new = cell(gxf_s[pl.ds(rf, bp), :], hf, cf, wf)
        m_f = (t0_f + i) < lens
        out_f_ref[pl.ds(rf, bp), :] = jnp.where(m_f, hf_new, 0.0)
        hf = jnp.where(m_f, hf_new, hf)
        cf = jnp.where(m_f, cf_new, cf)

        # Backward direction: local step tc-1-i (descending time within chunk).
        j = tc - 1 - i
        rb = pl.multiple_of(j * bp, bp)
        hb_new, cb_new = cell(gxb_s[pl.ds(rb, bp), :], hb, cb, wb)
        m_b = (t0_b + j) < lens
        out_b_ref[pl.ds(rb, bp), :] = jnp.where(m_b, hb_new, 0.0)
        hb = jnp.where(m_b, hb_new, hb)
        cb = jnp.where(m_b, cb_new, cb)
        return hf, cf, hb, cb

    hf, cf, hb, cb = jax.lax.fori_loop(
        0, tc, body,
        (hf_s[...], cf_s[...], hb_s[...], cb_s[...]),
        unroll=True)

    hf_s[...] = hf
    cf_s[...] = cf
    hb_s[...] = hb
    cb_s[...] = cb
    hid_f_ref[...] = hf                    # constant block index -> last value lands
    hid_b_ref[...] = hb


# ---------------------------------------------------------------------------
# Wrapper: equivalent of RNNEncoder(D, H, bidirectional=True, rnn_type='lstm')
# ---------------------------------------------------------------------------

@functools.partial(jax.jit, static_argnames=("time_chunk",))
def rnn_encoder_forward(inputs, lengths, params, time_chunk=8):
    """inputs: (B, T, D) f32, lengths: (B,) int, max(lengths) == T.

    Returns outputs (B, T, 2H) and hidden (B, 2H), matching the PyTorch module.
    """
    B, T, D = inputs.shape
    H = params["whh_f"].shape[0]

    Bp = _round_up(B, 8)               # sublane alignment (f32)
    Hp = _round_up(H, 128)             # lane alignment per gate
    TC = int(time_chunk)
    Tp = _round_up(T, TC)
    Tc = Tp // TC

    # ---- weight prep: gate-wise pad to Hp ----
    wih_f = _pad_gate_cols(params["wih_f"], H, Hp)                       # (D, 4Hp)
    wih_b = _pad_gate_cols(params["wih_b"], H, Hp)
    whh_f = _pad_gate_cols(jnp.pad(params["whh_f"], ((0, Hp - H), (0, 0))), H, Hp)
    whh_b = _pad_gate_cols(jnp.pad(params["whh_b"], ((0, Hp - H), (0, 0))), H, Hp)
    b_f = _pad_gate_cols(params["b_f"], H, Hp)                           # (1, 4Hp)
    b_b = _pad_gate_cols(params["b_b"], H, Hp)

    # ---- activation prep: time-major, padded batch/time, flattened to 2-D ----
    x_tbd = jnp.transpose(inputs, (1, 0, 2)).astype(jnp.float32)         # (T, B, D)
    x_pad = jnp.zeros((Tp, Bp, D), jnp.float32).at[:T, :B, :].set(x_tbd)
    x2d = x_pad.reshape(Tp * Bp, D)                                      # (Tp*Bp, D)

    lengths_p = jnp.zeros((Bp,), jnp.int32).at[:B].set(lengths.astype(jnp.int32))
    len_tile = jnp.broadcast_to(lengths_p[:, None], (Bp, Hp)).astype(jnp.int32)

    kernel = functools.partial(_bilstm_kernel, tc=TC, bp=Bp, hp=Hp)
    resident2 = lambda c: (0, 0)
    fwd_blk = lambda c: (c, 0)
    bwd_blk = lambda c: (Tc - 1 - c, 0)

    out_f2, out_b2, hid_f, hid_b = pl.pallas_call(
        kernel,
        grid=(Tc,),
        in_specs=[
            pl.BlockSpec((TC * Bp, D), fwd_blk),        # x chunk (forward order)
            pl.BlockSpec((TC * Bp, D), bwd_blk),        # x chunk (reversed order)
            pl.BlockSpec((Bp, Hp), resident2),          # lengths tile (resident)
            pl.BlockSpec((D, 4 * Hp), resident2),       # W_ih forward
            pl.BlockSpec((D, 4 * Hp), resident2),       # W_ih backward
            pl.BlockSpec((Hp, 4 * Hp), resident2),      # W_hh forward (resident)
            pl.BlockSpec((Hp, 4 * Hp), resident2),      # W_hh backward (resident)
            pl.BlockSpec((1, 4 * Hp), resident2),       # bias forward
            pl.BlockSpec((1, 4 * Hp), resident2),       # bias backward
        ],
        out_specs=(
            pl.BlockSpec((TC * Bp, Hp), fwd_blk),       # forward outputs
            pl.BlockSpec((TC * Bp, Hp), bwd_blk),       # backward outputs
            pl.BlockSpec((Bp, Hp), resident2),          # forward final hidden
            pl.BlockSpec((Bp, Hp), resident2),          # backward final hidden
        ),
        out_shape=(
            jax.ShapeDtypeStruct((Tp * Bp, Hp), jnp.float32),
            jax.ShapeDtypeStruct((Tp * Bp, Hp), jnp.float32),
            jax.ShapeDtypeStruct((Bp, Hp), jnp.float32),
            jax.ShapeDtypeStruct((Bp, Hp), jnp.float32),
        ),
        scratch_shapes=[
            pltpu.VMEM((TC * Bp, 4 * Hp), jnp.float32),  # gates_x forward chunk
            pltpu.VMEM((TC * Bp, 4 * Hp), jnp.float32),  # gates_x backward chunk
            pltpu.VMEM((Bp, Hp), jnp.float32),           # h forward
            pltpu.VMEM((Bp, Hp), jnp.float32),           # c forward
            pltpu.VMEM((Bp, Hp), jnp.float32),           # h backward
            pltpu.VMEM((Bp, Hp), jnp.float32),           # c backward
        ],
        compiler_params=pltpu.CompilerParams(
            dimension_semantics=("arbitrary",),
            vmem_limit_bytes=32 * 1024 * 1024),
    )(x2d, x2d, len_tile, wih_f, wih_b, whh_f, whh_b, b_f, b_b)

    # ---- epilogue: strip padding, back to batch-first, concat directions ----
    out_f = out_f2.reshape(Tp, Bp, Hp)
    out_b = out_b2.reshape(Tp, Bp, Hp)
    of = jnp.transpose(out_f[:T, :B, :H], (1, 0, 2))                     # (B, T, H)
    ob = jnp.transpose(out_b[:T, :B, :H], (1, 0, 2))
    outputs = jnp.concatenate([of, ob], axis=-1)                         # (B, T, 2H)
    hidden = jnp.concatenate([hid_f[:B, :H], hid_b[:B, :H]], axis=-1)    # (B, 2H)
    return outputs, hidden


# ---------------------------------------------------------------------------
# Parameter init (PyTorch-style) and pure-JAX reference
# ---------------------------------------------------------------------------

def init_params(key, D, H):
    """Deterministic PyTorch-style LSTM params: uniform(-1/sqrt(H), 1/sqrt(H))."""
    k = 1.0 / float(H) ** 0.5
    keys = jax.random.split(key, 8)

    def u(kk, shape):
        return jax.random.uniform(kk, shape, jnp.float32, -k, k)

    # PyTorch shapes: weight_ih (4H, D), weight_hh (4H, H), biases (4H,)
    w_ih_f, w_hh_f = u(keys[0], (4 * H, D)), u(keys[1], (4 * H, H))
    b_ih_f, b_hh_f = u(keys[2], (4 * H,)), u(keys[3], (4 * H,))
    w_ih_b, w_hh_b = u(keys[4], (4 * H, D)), u(keys[5], (4 * H, H))
    b_ih_b, b_hh_b = u(keys[6], (4 * H,)), u(keys[7], (4 * H,))
    return {
        "wih_f": w_ih_f.T, "whh_f": w_hh_f.T, "b_f": (b_ih_f + b_hh_f)[None, :],
        "wih_b": w_ih_b.T, "whh_b": w_hh_b.T, "b_b": (b_ih_b + b_hh_b)[None, :],
    }


def rnn_encoder_reference(inputs, lengths, params):
    """Pure-JAX reference with identical math (for correctness check)."""
    B, T, D = inputs.shape
    H = params["whh_f"].shape[0]
    mask = (jnp.arange(T)[None, :] < lengths[:, None]).astype(jnp.float32)  # (B, T)

    def direction(wih, whh, b, ts):
        h = jnp.zeros((B, H), jnp.float32)
        c = jnp.zeros((B, H), jnp.float32)
        outs = [None] * T
        for t in ts:
            xt = inputs[:, t, :]
            m = mask[:, t][:, None]
            gates = xt @ wih + h @ whh + b
            i = jax.nn.sigmoid(gates[:, :H])
            f = jax.nn.sigmoid(gates[:, H:2 * H])
            g = jnp.tanh(gates[:, 2 * H:3 * H])
            o = jax.nn.sigmoid(gates[:, 3 * H:4 * H])
            c_new = f * c + i * g
            h_new = o * jnp.tanh(c_new)
            outs[t] = m * h_new
            h = m * h_new + (1.0 - m) * h
            c = m * c_new + (1.0 - m) * c
        return jnp.stack(outs, axis=1), h   # (B, T, H), (B, H)

    of, hf = direction(params["wih_f"], params["whh_f"], params["b_f"], range(T))
    ob, hb = direction(params["wih_b"], params["whh_b"], params["b_b"],
                       range(T - 1, -1, -1))
    return jnp.concatenate([of, ob], -1), jnp.concatenate([hf, hb], -1)


if __name__ == "__main__":
    B, T, D, H = 2, 8, 16, 32
    key = jax.random.PRNGKey(0)
    k_x, k_p = jax.random.split(key)

    inputs = jax.random.normal(k_x, (B, T, D), jnp.float32)
    # max(lengths) == T so padded/packed shapes match pad_packed_sequence.
    lengths = jnp.array([8, 5], jnp.int32)
    params = init_params(k_p, D, H)

    outputs, hidden = rnn_encoder_forward(inputs, lengths, params)
    jax.block_until_ready((outputs, hidden))

    ref_out, ref_hid = rnn_encoder_reference(inputs, lengths, params)
    assert outputs.shape == (B, T, 2 * H) and hidden.shape == (B, 2 * H)
    assert jnp.allclose(outputs, ref_out, atol=1e-4, rtol=1e-4)
    assert jnp.allclose(hidden, ref_hid, atol=1e-4, rtol=1e-4)

    print("KERNEL_OK")
</pallas_src>

<mosaic_0001>
module attributes {stable_mosaic.version = 11 : i64} {
  func.func @_bilstm_kernel(%arg0: i32, %arg1: memref<64x16xf32, #tpu.memory_space<vmem>>, %arg2: memref<64x16xf32, #tpu.memory_space<vmem>>, %arg3: memref<8x128xi32, #tpu.memory_space<vmem>>, %arg4: memref<16x512xf32, #tpu.memory_space<vmem>>, %arg5: memref<16x512xf32, #tpu.memory_space<vmem>>, %arg6: memref<128x512xf32, #tpu.memory_space<vmem>>, %arg7: memref<128x512xf32, #tpu.memory_space<vmem>>, %arg8: memref<1x512xf32, #tpu.memory_space<vmem>>, %arg9: memref<1x512xf32, #tpu.memory_space<vmem>>, %arg10: memref<64x128xf32, #tpu.memory_space<vmem>>, %arg11: memref<64x128xf32, #tpu.memory_space<vmem>>, %arg12: memref<8x128xf32, #tpu.memory_space<vmem>>, %arg13: memref<8x128xf32, #tpu.memory_space<vmem>>, %arg14: memref<64x512xf32, #tpu.memory_space<vmem>>, %arg15: memref<64x512xf32, #tpu.memory_space<vmem>>, %arg16: memref<8x128xf32, #tpu.memory_space<vmem>>, %arg17: memref<8x128xf32, #tpu.memory_space<vmem>>, %arg18: memref<8x128xf32, #tpu.memory_space<vmem>>, %arg19: memref<8x128xf32, #tpu.memory_space<vmem>>) attributes {dimension_semantics = [#tpu.dimension_semantics<arbitrary>], iteration_bounds = array<i64: 1>, scalar_prefetch = 0 : i64, scratch_operands = 6 : i64, tpu.core_type = #tpu.core_type<tc>, window_params = [{transform_indices = @transform_0, window_bounds = array<i64: 64, 16>}, {transform_indices = @transform_1, window_bounds = array<i64: 64, 16>}, {pipeline_mode = #tpu.pipeline_mode<synchronous>, transform_indices = @transform_2, window_bounds = array<i64: 8, 128>}, {pipeline_mode = #tpu.pipeline_mode<synchronous>, transform_indices = @transform_3, window_bounds = array<i64: 16, 512>}, {pipeline_mode = #tpu.pipeline_mode<synchronous>, transform_indices = @transform_4, window_bounds = array<i64: 16, 512>}, {pipeline_mode = #tpu.pipeline_mode<synchronous>, transform_indices = @transform_5, window_bounds = array<i64: 128, 512>}, {pipeline_mode = #tpu.pipeline_mode<synchronous>, transform_indices = @transform_6, window_bounds = array<i64: 128, 512>}, {pipeline_mode = #tpu.pipeline_mode<synchronous>, transform_indices = @transform_7, window_bounds = array<i64: 1, 512>}, {pipeline_mode = #tpu.pipeline_mode<synchronous>, transform_indices = @transform_8, window_bounds = array<i64: 1, 512>}, {transform_indices = @transform_9, window_bounds = array<i64: 64, 128>}, {transform_indices = @transform_10, window_bounds = array<i64: 64, 128>}, {pipeline_mode = #tpu.pipeline_mode<synchronous>, transform_indices = @transform_11, window_bounds = array<i64: 8, 128>}, {pipeline_mode = #tpu.pipeline_mode<synchronous>, transform_indices = @transform_12, window_bounds = array<i64: 8, 128>}]} {
    %c0_i32 = arith.constant 0 : i32
    %0 = arith.cmpi eq, %arg0, %c0_i32 : i32
    %1 = arith.extui %0 : i1 to i32
    %c0_i32_0 = arith.constant 0 : i32
    %2 = arith.cmpi ne, %1, %c0_i32_0 : i32
    scf.if %2 {
      %cst_183 = arith.constant 0.000000e+00 : f32
      %681 = vector.broadcast %cst_183 : f32 to vector<8x128xf32>
      %c0_184 = arith.constant 0 : index
      %c0_185 = arith.constant 0 : index
      %682 = vector.load %arg16[%c0_184, %c0_185] : memref<8x128xf32, #tpu.memory_space<vmem>>, vector<8x128xf32>
      tpu.vector_store %arg16[%c0_184, %c0_185], %681 {strides = array<i32>} : memref<8x128xf32, #tpu.memory_space<vmem>>, vector<8x128xf32>,
      %c0_186 = arith.constant 0 : index
      %c0_187 = arith.constant 0 : index
      %683 = vector.load %arg17[%c0_186, %c0_187] : memref<8x128xf32, #tpu.memory_space<vmem>>, vector<8x128xf32>
      tpu.vector_store %arg17[%c0_186, %c0_187], %681 {strides = array<i32>} : memref<8x128xf32, #tpu.memory_space<vmem>>, vector<8x128xf32>,
      %c0_188 = arith.constant 0 : index
      %c0_189 = arith.constant 0 : index
      %684 = vector.load %arg18[%c0_188, %c0_189] : memref<8x128xf32, #tpu.memory_space<vmem>>, vector<8x128xf32>
      tpu.vector_store %arg18[%c0_188, %c0_189], %681 {strides = array<i32>} : memref<8x128xf32, #tpu.memory_space<vmem>>, vector<8x128xf32>,
      %c0_190 = arith.constant 0 : index
      %c0_191 = arith.constant 0 : index
      %685 = vector.load %arg19[%c0_190, %c0_191] : memref<8x128xf32, #tpu.memory_space<vmem>>, vector<8x128xf32>
      tpu.vector_store %arg19[%c0_190, %c0_191], %681 {strides = array<i32>} : memref<8x128xf32, #tpu.memory_space<vmem>>, vector<8x128xf32>,
    } else {
    }
    %c0 = arith.constant 0 : index
    %c0_1 = arith.constant 0 : index
    %3 = vector.load %arg1[%c0, %c0_1] : memref<64x16xf32, #tpu.memory_space<vmem>>, vector<64x16xf32>
    %c0_2 = arith.constant 0 : index
    %c0_3 = arith.constant 0 : index
    %4 = vector.load %arg4[%c0_2, %c0_3] : memref<16x512xf32, #tpu.memory_space<vmem>>, vector<16x512xf32>
    %cst = arith.constant dense<0.000000e+00> : vector<64x512xf32>
    %5 = tpu.matmul %3, %4, %cst {dimension_numbers = #tpu.dot_dimension_numbers<[1], [0], [0], [1], [0, 0, 1, 1], [], []>} : vector<64x16xf32>, vector<16x512xf32>, vector<64x512xf32> -> vector<64x512xf32>
    %c0_4 = arith.constant 0 : index
    %c0_5 = arith.constant 0 : index
    %6 = vector.load %arg8[%c0_4, %c0_5] : memref<1x512xf32, #tpu.memory_space<vmem>>, vector<1x512xf32>
    %7 = vector.broadcast %6 : vector<1x512xf32> to vector<64x512xf32>
    %8 = arith.addf %5, %7 : vector<64x512xf32>
    %c0_6 = arith.constant 0 : index
    %c0_7 = arith.constant 0 : index
    %9 = vector.load %arg14[%c0_6, %c0_7] : memref<64x512xf32, #tpu.memory_space<vmem>>, vector<64x512xf32>
    tpu.vector_store %arg14[%c0_6, %c0_7], %8 {strides = array<i32>} : memref<64x512xf32, #tpu.memory_space<vmem>>, vector<64x512xf32>,
    %c0_8 = arith.constant 0 : index
    %c0_9 = arith.constant 0 : index
    %10 = vector.load %arg2[%c0_8, %c0_9] : memref<64x16xf32, #tpu.memory_space<vmem>>, vector<64x16xf32>
    %c0_10 = arith.constant 0 : index
    %c0_11 = arith.constant 0 : index
    %11 = vector.load %arg5[%c0_10, %c0_11] : memref<16x512xf32, #tpu.memory_space<vmem>>, vector<16x512xf32>
    %cst_12 = arith.constant dense<0.000000e+00> : vector<64x512xf32>
    %12 = tpu.matmul %10, %11, %cst_12 {dimension_numbers = #tpu.dot_dimension_numbers<[1], [0], [0], [1], [0, 0, 1, 1], [], []>} : vector<64x16xf32>, vector<16x512xf32>, vector<64x512xf32> -> vector<64x512xf32>
    %c0_13 = arith.constant 0 : index
    %c0_14 = arith.constant 0 : index
    %13 = vector.load %arg9[%c0_13, %c0_14] : memref<1x512xf32, #tpu.memory_space<vmem>>, vector<1x512xf32>
    %14 = vector.broadcast %13 : vector<1x512xf32> to vector<64x512xf32>
    %15 = arith.addf %12, %14 : vector<64x512xf32>
    %c0_15 = arith.constant 0 : index
    %c0_16 = arith.constant 0 : index
    %16 = vector.load %arg15[%c0_15, %c0_16] : memref<64x512xf32, #tpu.memory_space<vmem>>, vector<64x512xf32>
    tpu.vector_store %arg15[%c0_15, %c0_16], %15 {strides = array<i32>} : memref<64x512xf32, #tpu.memory_space<vmem>>, vector<64x512xf32>,
    %c0_17 = arith.constant 0 : index
    %c0_18 = arith.constant 0 : index
    %17 = vector.load %arg6[%c0_17, %c0_18] : memref<128x512xf32, #tpu.memory_space<vmem>>, vector<128x512xf32>
    %c0_19 = arith.constant 0 : index
    %c0_20 = arith.constant 0 : index
    %18 = vector.load %arg7[%c0_19, %c0_20] : memref<128x512xf32, #tpu.memory_space<vmem>>, vector<128x512xf32>
    %c0_21 = arith.constant 0 : index
    %c0_22 = arith.constant 0 : index
    %19 = vector.load %arg3[%c0_21, %c0_22] : memref<8x128xi32, #tpu.memory_space<vmem>>, vector<8x128xi32>
    %c8_i32 = arith.constant 8 : i32
    %20 = arith.muli %arg0, %c8_i32 : i32
    %c0_i32_23 = arith.constant 0 : i32
    %21 = arith.subi %c0_i32_23, %arg0 : i32
    %c8_i32_24 = arith.constant 8 : i32
    %22 = arith.muli %21, %c8_i32_24 : i32
    %c0_25 = arith.constant 0 : index
    %c0_26 = arith.constant 0 : index
    %23 = vector.load %arg16[%c0_25, %c0_26] : memref<8x128xf32, #tpu.memory_space<vmem>>, vector<8x128xf32>
    %c0_27 = arith.constant 0 : index
    %c0_28 = arith.constant 0 : index
    %24 = vector.load %arg17[%c0_27, %c0_28] : memref<8x128xf32, #tpu.memory_space<vmem>>, vector<8x128xf32>
    %c0_29 = arith.constant 0 : index
    %c0_30 = arith.constant 0 : index
    %25 = vector.load %arg18[%c0_29, %c0_30] : memref<8x128xf32, #tpu.memory_space<vmem>>, vector<8x128xf32>
    %c0_31 = arith.constant 0 : index
    %c0_32 = arith.constant 0 : index
    %26 = vector.load %arg19[%c0_31, %c0_32] : memref<8x128xf32, #tpu.memory_space<vmem>>, vector<8x128xf32>
    %c0_i32_33 = arith.constant 0 : i32
    %c8_i32_34 = arith.constant 8 : i32
    %27 = arith.muli %c0_i32_33, %c8_i32_34 : i32
    %28 = tpu.assume_multiple %27, 8 : i32
    %29 = arith.index_cast %28 : i32 to index
    %c0_35 = arith.constant 0 : index
    %30 = vector.load %arg14[%29, %c0_35] : memref<64x512xf32, #tpu.memory_space<vmem>>, vector<8x512xf32>
    %cst_36 = arith.constant dense<0.000000e+00> : vector<8x512xf32>
    %31 = tpu.matmul %23, %17, %cst_36 {dimension_numbers = #tpu.dot_dimension_numbers<[1], [0], [0], [1], [0, 0, 1, 1], [], []>} : vector<8x128xf32>, vector<128x512xf32>, vector<8x512xf32> -> vector<8x512xf32>
    %32 = arith.addf %30, %31 : vector<8x512xf32>
    %33 = vector.extract_strided_slice %32 {offsets = [0, 0], sizes = [8, 128], strides = [1, 1]} : vector<8x512xf32> to vector<8x128xf32>
    %34 = arith.negf %33 : vector<8x128xf32>
    %35 = math.exp %34 : vector<8x128xf32>
    %cst_37 = arith.constant 1.000000e+00 : f32
    %36 = vector.broadcast %cst_37 : f32 to vector<8x128xf32>
    %37 = arith.addf %36, %35 : vector<8x128xf32>
    %38 = arith.divf %36, %37 : vector<8x128xf32>
    %39 = vector.extract_strided_slice %32 {offsets = [0, 128], sizes = [8, 128], strides = [1, 1]} : vector<8x512xf32> to vector<8x128xf32>
    %40 = arith.negf %39 : vector<8x128xf32>
    %41 = math.exp %40 : vector<8x128xf32>
    %cst_38 = arith.constant 1.000000e+00 : f32
    %42 = vector.broadcast %cst_38 : f32 to vector<8x128xf32>
    %43 = arith.addf %42, %41 : vector<8x128xf32>
    %44 = arith.divf %42, %43 : vector<8x128xf32>
    %45 = vector.extract_strided_slice %32 {offsets = [0, 256], sizes = [8, 128], strides = [1, 1]} : vector<8x512xf32> to vector<8x128xf32>
    %46 = math.tanh %45 : vector<8x128xf32>
    %47 = vector.extract_strided_slice %32 {offsets = [0, 384], sizes = [8, 128], strides = [1, 1]} : vector<8x512xf32> to vector<8x128xf32>
    %48 = arith.negf %47 : vector<8x128xf32>
    %49 = math.exp %48 : vector<8x128xf32>
    %cst_39 = arith.constant 1.000000e+00 : f32
    %50 = vector.broadcast %cst_39 : f32 to vector<8x128xf32>
    %51 = arith.addf %50, %49 : vector<8x128xf32>
    %52 = arith.divf %50, %51 : vector<8x128xf32>
    %53 = arith.mulf %44, %24 : vector<8x128xf32>
    %54 = arith.mulf %38, %46 : vector<8x128xf32>
    %55 = arith.addf %53, %54 : vector<8x128xf32>
    %56 = math.tanh %55 : vector<8x128xf32>
    %57 = arith.mulf %52, %56 : vector<8x128xf32>
    %58 = arith.addi %20, %c0_i32_33 : i32
    %59 = vector.broadcast %58 : i32 to vector<8x128xi32>
    %60 = arith.cmpi slt, %59, %19 : vector<8x128xi32>
    %cst_40 = arith.constant 0.000000e+00 : f32
    %61 = vector.broadcast %cst_40 : f32 to vector<8x128xf32>
    %62 = arith.select %60, %57, %61 : vector<8x128xi1>, vector<8x128xf32>
    %63 = arith.index_cast %28 : i32 to index
    %c0_41 = arith.constant 0 : index
    %64 = vector.load %arg10[%63, %c0_41] : memref<64x128xf32, #tpu.memory_space<vmem>>, vector<8x128xf32>
    tpu.vector_store %arg10[%63, %c0_41], %62 {strides = array<i32>} : memref<64x128xf32, #tpu.memory_space<vmem>>, vector<8x128xf32>,
    %65 = arith.select %60, %57, %23 : vector<8x128xi1>, vector<8x128xf32>
    %66 = arith.select %60, %55, %24 : vector<8x128xi1>, vector<8x128xf32>
    %c7_i32 = arith.constant 7 : i32
    %67 = arith.subi %c7_i32, %c0_i32_33 : i32
    %c8_i32_42 = arith.constant 8 : i32
    %68 = arith.muli %67, %c8_i32_42 : i32
    %69 = tpu.assume_multiple %68, 8 : i32
    %70 = arith.index_cast %69 : i32 to index
    %c0_43 = arith.constant 0 : index
    %71 = vector.load %arg15[%70, %c0_43] : memref<64x512xf32, #tpu.memory_space<vmem>>, vector<8x512xf32>
    %cst_44 = arith.constant dense<0.000000e+00> : vector<8x512xf32>
    %72 = tpu.matmul %25, %18, %cst_44 {dimension_numbers = #tpu.dot_dimension_numbers<[1], [0], [0], [1], [0, 0, 1, 1], [], []>} : vector<8x128xf32>, vector<128x512xf32>, vector<8x512xf32> -> vector<8x512xf32>
    %73 = arith.addf %71, %72 : vector<8x512xf32>
    %74 = vector.extract_strided_slice %73 {offsets = [0, 0], sizes = [8, 128], strides = [1, 1]} : vector<8x512xf32> to vector<8x128xf32>
    %75 = arith.negf %74 : vector<8x128xf32>
    %76 = math.exp %75 : vector<8x128xf32>
    %cst_45 = arith.constant 1.000000e+00 : f32
    %77 = vector.broadcast %cst_45 : f32 to vector<8x128xf32>
    %78 = arith.addf %77, %76 : vector<8x128xf32>
    %79 = arith.divf %77, %78 : vector<8x128xf32>
    %80 = vector.extract_strided_slice %73 {offsets = [0, 128], sizes = [8, 128], strides = [1, 1]} : vector<8x512xf32> to vector<8x128xf32>
    %81 = arith.negf %80 : vector<8x128xf32>
    %82 = math.exp %81 : vector<8x128xf32>
    %cst_46 = arith.constant 1.000000e+00 : f32
    %83 = vector.broadcast %cst_46 : f32 to vector<8x128xf32>
    %84 = arith.addf %83, %82 : vector<8x128xf32>
    %85 = arith.divf %83, %84 : vector<8x128xf32>
    %86 = vector.extract_strided_slice %73 {offsets = [0, 256], sizes = [8, 128], strides = [1, 1]} : vector<8x512xf32> to vector<8x128xf32>
    %87 = math.tanh %86 : vector<8x128xf32>
    %88 = vector.extract_strided_slice %73 {offsets = [0, 384], sizes = [8, 128], strides = [1, 1]} : vector<8x512xf32> to vector<8x128xf32>
    %89 = arith.negf %88 : vector<8x128xf32>
    %90 = math.exp %89 : vector<8x128xf32>
    %cst_47 = arith.constant 1.000000e+00 : f32
    %91 = vector.broadcast %cst_47 : f32 to vector<8x128xf32>
    %92 = arith.addf %91, %90 : vector<8x128xf32>
    %93 = arith.divf %91, %92 : vector<8x128xf32>
    %94 = arith.mulf %85, %26 : vector<8x128xf32>
    %95 = arith.mulf %79, %87 : vector<8x128xf32>
    %96 = arith.addf %94, %95 : vector<8x128xf32>
    %97 = math.tanh %96 : vector<8x128xf32>
    %98 = arith.mulf %93, %97 : vector<8x128xf32>
    %99 = arith.addi %22, %67 : i32
    %100 = vector.broadcast %99 : i32 to vector<8x128xi32>
    %101 = arith.cmpi slt, %100, %19 : vector<8x128xi32>
    %cst_48 = arith.constant 0.000000e+00 : f32
    %102 = vector.broadcast %cst_48 : f32 to vector<8x128xf32>
    %103 = arith.select %101, %98, %102 : vector<8x128xi1>, vector<8x128xf32>
    %104 = arith.index_cast %69 : i32 to index
    %c0_49 = arith.constant 0 : index
    %105 = vector.load %arg11[%104, %c0_49] : memref<64x128xf32, #tpu.memory_space<vmem>>, vector<8x128xf32>
    tpu.vector_store %arg11[%104, %c0_49], %103 {strides = array<i32>} : memref<64x128xf32, #tpu.memory_space<vmem>>, vector<8x128xf32>,
    %106 = arith.select %101, %98, %25 : vector<8x128xi1>, vector<8x128xf32>
    %107 = arith.select %101, %96, %26 : vector<8x128xi1>, vector<8x128xf32>
    %c1_i32 = arith.constant 1 : i32
    %c8_i32_50 = arith.constant 8 : i32
    %108 = arith.muli %c1_i32, %c8_i32_50 : i32
    %109 = tpu.assume_multiple %108, 8 : i32
    %110 = arith.index_cast %109 : i32 to index
    %c0_51 = arith.constant 0 : index
    %111 = vector.load %arg14[%110, %c0_51] : memref<64x512xf32, #tpu.memory_space<vmem>>, vector<8x512xf32>
    %cst_52 = arith.constant dense<0.000000e+00> : vector<8x512xf32>
    %112 = tpu.matmul %65, %17, %cst_52 {dimension_numbers = #tpu.dot_dimension_numbers<[1], [0], [0], [1], [0, 0, 1, 1], [], []>} : vector<8x128xf32>, vector<128x512xf32>, vector<8x512xf32> -> vector<8x512xf32>
    %113 = arith.addf %111, %112 : vector<8x512xf32>
    %114 = vector.extract_strided_slice %113 {offsets = [0, 0], sizes = [8, 128], strides = [1, 1]} : vector<8x512xf32> to vector<8x128xf32>
    %115 = arith.negf %114 : vector<8x128xf32>
    %116 = math.exp %115 : vector<8x128xf32>
    %cst_53 = arith.constant 1.000000e+00 : f32
    %117 = vector.broadcast %cst_53 : f32 to vector<8x128xf32>
    %118 = arith.addf %117, %116 : vector<8x128xf32>
    %119 = arith.divf %117, %118 : vector<8x128xf32>
    %120 = vector.extract_strided_slice %113 {offsets = [0, 128], sizes = [8, 128], strides = [1, 1]} : vector<8x512xf32> to vector<8x128xf32>
    %121 = arith.negf %120 : vector<8x128xf32>
    %122 = math.exp %121 : vector<8x128xf32>
    %cst_54 = arith.constant 1.000000e+00 : f32
    %123 = vector.broadcast %cst_54 : f32 to vector<8x128xf32>
    %124 = arith.addf %123, %122 : vector<8x128xf32>
    %125 = arith.divf %123, %124 : vector<8x128xf32>
    %126 = vector.extract_strided_slice %113 {offsets = [0, 256], sizes = [8, 128], strides = [1, 1]} : vector<8x512xf32> to vector<8x128xf32>
    %127 = math.tanh %126 : vector<8x128xf32>
    %128 = vector.extract_strided_slice %113 {offsets = [0, 384], sizes = [8, 128], strides = [1, 1]} : vector<8x512xf32> to vector<8x128xf32>
    %129 = arith.negf %128 : vector<8x128xf32>
    %130 = math.exp %129 : vector<8x128xf32>
    %cst_55 = arith.constant 1.000000e+00 : f32
    %131 = vector.broadcast %cst_55 : f32 to vector<8x128xf32>
    %132 = arith.addf %131, %130 : vector<8x128xf32>
    %133 = arith.divf %131, %132 : vector<8x128xf32>
    %134 = arith.mulf %125, %66 : vector<8x128xf32>
    %135 = arith.mulf %119, %127 : vector<8x128xf32>
    %136 = arith.addf %134, %135 : vector<8x128xf32>
    %137 = math.tanh %136 : vector<8x128xf32>
    %138 = arith.mulf %133, %137 : vector<8x128xf32>
    %139 = arith.addi %20, %c1_i32 : i32
    %140 = vector.broadcast %139 : i32 to vector<8x128xi32>
    %141 = arith.cmpi slt, %140, %19 : vector<8x128xi32>
    %cst_56 = arith.constant 0.000000e+00 : f32
    %142 = vector.broadcast %cst_56 : f32 to vector<8x128xf32>
    %143 = arith.select %141, %138, %142 : vector<8x128xi1>, vector<8x128xf32>
    %144 = arith.index_cast %109 : i32 to index
    %c0_57 = arith.constant 0 : index
    %145 = vector.load %arg10[%144, %c0_57] : memref<64x128xf32, #tpu.memory_space<vmem>>, vector<8x128xf32>
    tpu.vector_store %arg10[%144, %c0_57], %143 {strides = array<i32>} : memref<64x128xf32, #tpu.memory_space<vmem>>, vector<8x128xf32>,
    %146 = arith.select %141, %138, %65 : vector<8x128xi1>, vector<8x128xf32>
    %147 = arith.select %141, %136, %66 : vector<8x128xi1>, vector<8x128xf32>
    %c7_i32_58 = arith.constant 7 : i32
    %148 = arith.subi %c7_i32_58, %c1_i32 : i32
    %c8_i32_59 = arith.constant 8 : i32
    %149 = arith.muli %148, %c8_i32_59 : i32
    %150 = tpu.assume_multiple %149, 8 : i32
    %151 = arith.index_cast %150 : i32 to index
    %c0_60 = arith.constant 0 : index
    %152 = vector.load %arg15[%151, %c0_60] : memref<64x512xf32, #tpu.memory_space<vmem>>, vector<8x512xf32>
    %cst_61 = arith.constant dense<0.000000e+00> : vector<8x512xf32>
    %153 = tpu.matmul %106, %18, %cst_61 {dimension_numbers = #tpu.dot_dimension_numbers<[1], [0], [0], [1], [0, 0, 1, 1], [], []>} : vector<8x128xf32>, vector<128x512xf32>, vector<8x512xf32> -> vector<8x512xf32>
    %154 = arith.addf %152, %153 : vector<8x512xf32>
    %155 = vector.extract_strided_slice %154 {offsets = [0, 0], sizes = [8, 128], strides = [1, 1]} : vector<8x512xf32> to vector<8x128xf32>
    %156 = arith.negf %155 : vector<8x128xf32>
    %157 = math.exp %156 : vector<8x128xf32>
    %cst_62 = arith.constant 1.000000e+00 : f32
    %158 = vector.broadcast %cst_62 : f32 to vector<8x128xf32>
    %159 = arith.addf %158, %157 : vector<8x128xf32>
    %160 = arith.divf %158, %159 : vector<8x128xf32>
    %161 = vector.extract_strided_slice %154 {offsets = [0, 128], sizes = [8, 128], strides = [1, 1]} : vector<8x512xf32> to vector<8x128xf32>
    %162 = arith.negf %161 : vector<8x128xf32>
    %163 = math.exp %162 : vector<8x128xf32>
    %cst_63 = arith.constant 1.000000e+00 : f32
    %164 = vector.broadcast %cst_63 : f32 to vector<8x128xf32>
    %165 = arith.addf %164, %163 : vector<8x128xf32>
    %166 = arith.divf %164, %165 : vector<8x128xf32>
    %167 = vector.extract_strided_slice %154 {offsets = [0, 256], sizes = [8, 128], strides = [1, 1]} : vector<8x512xf32> to vector<8x128xf32>
    %168 = math.tanh %167 : vector<8x128xf32>
    %169 = vector.extract_strided_slice %154 {offsets = [0, 384], sizes = [8, 128], strides = [1, 1]} : vector<8x512xf32> to vector<8x128xf32>
    %170 = arith.negf %169 : vector<8x128xf32>
    %171 = math.exp %170 : vector<8x128xf32>
    %cst_64 = arith.constant 1.000000e+00 : f32
    %172 = vector.broadcast %cst_64 : f32 to vector<8x128xf32>
    %173 = arith.addf %172, %171 : vector<8x128xf32>
    %174 = arith.divf %172, %173 : vector<8x128xf32>
    %175 = arith.mulf %166, %107 : vector<8x128xf32>
    %176 = arith.mulf %160, %168 : vector<8x128xf32>
    %177 = arith.addf %175, %176 : vector<8x128xf32>
    %178 = math.tanh %177 : vector<8x128xf32>
    %179 = arith.mulf %174, %178 : vector<8x128xf32>
    %180 = arith.addi %22, %148 : i32
    %181 = vector.broadcast %180 : i32 to vector<8x128xi32>
    %182 = arith.cmpi slt, %181, %19 : vector<8x128xi32>
    %cst_65 = arith.constant 0.000000e+00 : f32
    %183 = vector.broadcast %cst_65 : f32 to vector<8x128xf32>
    %184 = arith.select %182, %179, %183 : vector<8x128xi1>, vector<8x128xf32>
    %185 = arith.index_cast %150 : i32 to index
    %c0_66 = arith.constant 0 : index
    %186 = vector.load %arg11[%185, %c0_66] : memref<64x128xf32, #tpu.memory_space<vmem>>, vector<8x128xf32>
    tpu.vector_store %arg11[%185, %c0_66], %184 {strides = array<i32>} : memref<64x128xf32, #tpu.memory_space<vmem>>, vector<8x128xf32>,
    %187 = arith.select %182, %179, %106 : vector<8x128xi1>, vector<8x128xf32>
    %188 = arith.select %182, %177, %107 : vector<8x128xi1>, vector<8x128xf32>
    %c2_i32 = arith.constant 2 : i32
    %c8_i32_67 = arith.constant 8 : i32
    %189 = arith.muli %c2_i32, %c8_i32_67 : i32
    %190 = tpu.assume_multiple %189, 8 : i32
    %191 = arith.index_cast %190 : i32 to index
    %c0_68 = arith.constant 0 : index
    %192 = vector.load %arg14[%191, %c0_68] : memref<64x512xf32, #tpu.memory_space<vmem>>, vector<8x512xf32>
    %cst_69 = arith.constant dense<0.000000e+00> : vector<8x512xf32>
    %193 = tpu.matmul %146, %17, %cst_69 {dimension_numbers = #tpu.dot_dimension_numbers<[1], [0], [0], [1], [0, 0, 1, 1], [], []>} : vector<8x128xf32>, vector<128x512xf32>, vector<8x512xf32> -> vector<8x512xf32>
    %194 = arith.addf %192, %193 : vector<8x512xf32>
    %195 = vector.extract_strided_slice %194 {offsets = [0, 0], sizes = [8, 128], strides = [1, 1]} : vector<8x512xf32> to vector<8x128xf32>
    %196 = arith.negf %195 : vector<8x128xf32>
    %197 = math.exp %196 : vector<8x128xf32>
    %cst_70 = arith.constant 1.000000e+00 : f32
    %198 = vector.broadcast %cst_70 : f32 to vector<8x128xf32>
    %199 = arith.addf %198, %197 : vector<8x128xf32>
    %200 = arith.divf %198, %199 : vector<8x128xf32>
    %201 = vector.extract_strided_slice %194 {offsets = [0, 128], sizes = [8, 128], strides = [1, 1]} : vector<8x512xf32> to vector<8x128xf32>
    %202 = arith.negf %201 : vector<8x128xf32>
    %203 = math.exp %202 : vector<8x128xf32>
    %cst_71 = arith.constant 1.000000e+00 : f32
    %204 = vector.broadcast %cst_71 : f32 to vector<8x128xf32>
    %205 = arith.addf %204, %203 : vector<8x128xf32>
    %206 = arith.divf %204, %205 : vector<8x128xf32>
    %207 = vector.extract_strided_slice %194 {offsets = [0, 256], sizes = [8, 128], strides = [1, 1]} : vector<8x512xf32> to vector<8x128xf32>
    %208 = math.tanh %207 : vector<8x128xf32>
    %209 = vector.extract_strided_slice %194 {offsets = [0, 384], sizes = [8, 128], strides = [1, 1]} : vector<8x512xf32> to vector<8x128xf32>
    %210 = arith.negf %209 : vector<8x128xf32>
    %211 = math.exp %210 : vector<8x128xf32>
    %cst_72 = arith.constant 1.000000e+00 : f32
    %212 = vector.broadcast %cst_72 : f32 to vector<8x128xf32>
    %213 = arith.addf %212, %211 : vector<8x128xf32>
    %214 = arith.divf %212, %213 : vector<8x128xf32>
    %215 = arith.mulf %206, %147 : vector<8x128xf32>
    %216 = arith.mulf %200, %208 : vector<8x128xf32>
    %217 = arith.addf %215, %216 : vector<8x128xf32>
    %218 = math.tanh %217 : vector<8x128xf32>
    %219 = arith.mulf %214, %218 : vector<8x128xf32>
    %220 = arith.addi %20, %c2_i32 : i32
    %221 = vector.broadcast %220 : i32 to vector<8x128xi32>
    %222 = arith.cmpi slt, %221, %19 : vector<8x128xi32>
    %cst_73 = arith.constant 0.000000e+00 : f32
    %223 = vector.broadcast %cst_73 : f32 to vector<8x128xf32>
    %224 = arith.select %222, %219, %223 : vector<8x128xi1>, vector<8x128xf32>
    %225 = arith.index_cast %190 : i32 to index
    %c0_74 = arith.constant 0 : index
    %226 = vector.load %arg10[%225, %c0_74] : memref<64x128xf32, #tpu.memory_space<vmem>>, vector<8x128xf32>
    tpu.vector_store %arg10[%225, %c0_74], %224 {strides = array<i32>} : memref<64x128xf32, #tpu.memory_space<vmem>>, vector<8x128xf32>,
    %227 = arith.select %222, %219, %146 : vector<8x128xi1>, vector<8x128xf32>
    %228 = arith.select %222, %217, %147 : vector<8x128xi1>, vector<8x128xf32>
    %c7_i32_75 = arith.constant 7 : i32
    %229 = arith.subi %c7_i32_75, %c2_i32 : i32
    %c8_i32_76 = arith.constant 8 : i32
    %230 = arith.muli %229, %c8_i32_76 : i32
    %231 = tpu.assume_multiple %230, 8 : i32
    %232 = arith.index_cast %231 : i32 to index
    %c0_77 = arith.constant 0 : index
    %233 = vector.load %arg15[%232, %c0_77] : memref<64x512xf32, #tpu.memory_space<vmem>>, vector<8x512xf32>
    %cst_78 = arith.constant dense<0.000000e+00> : vector<8x512xf32>
    %234 = tpu.matmul %187, %18, %cst_78 {dimension_numbers = #tpu.dot_dimension_numbers<[1], [0], [0], [1], [0, 0, 1, 1], [], []>} : vector<8x128xf32>, vector<128x512xf32>, vector<8x512xf32> -> vector<8x512xf32>
    %235 = arith.addf %233, %234 : vector<8x512xf32>
    %236 = vector.extract_strided_slice %235 {offsets = [0, 0], sizes = [8, 128], strides = [1, 1]} : vector<8x512xf32> to vector<8x128xf32>
    %237 = arith.negf %236 : vector<8x128xf32>
    %238 = math.exp %237 : vector<8x128xf32>
    %cst_79 = arith.constant 1.000000e+00 : f32
    %239 = vector.broadcast %cst_79 : f32 to vector<8x128xf32>
    %240 = arith.addf %239, %238 : vector<8x128xf32>
    %241 = arith.divf %239, %240 : vector<8x128xf32>
    %242 = vector.extract_strided_slice %235 {offsets = [0, 128], sizes = [8, 128], strides = [1, 1]} : vector<8x512xf32> to vector<8x128xf32>
    %243 = arith.negf %242 : vector<8x128xf32>
    %244 = math.exp %243 : vector<8x128xf32>
    %cst_80 = arith.constant 1.000000e+00 : f32
    %245 = vector.broadcast %cst_80 : f32 to vector<8x128xf32>
    %246 = arith.addf %245, %244 : vector<8x128xf32>
    %247 = arith.divf %245, %246 : vector<8x128xf32>
    %248 = vector.extract_strided_slice %235 {offsets = [0, 256], sizes = [8, 128], strides = [1, 1]} : vector<8x512xf32> to vector<8x128xf32>
    %249 = math.tanh %248 : vector<8x128xf32>
    %250 = vector.extract_strided_slice %235 {offsets = [0, 384], sizes = [8, 128], strides = [1, 1]} : vector<8x512xf32> to vector<8x128xf32>
    %251 = arith.negf %250 : vector<8x128xf32>
    %252 = math.exp %251 : vector<8x128xf32>
    %cst_81 = arith.constant 1.000000e+00 : f32
    %253 = vector.broadcast %cst_81 : f32 to vector<8x128xf32>
    %254 = arith.addf %253, %252 : vector<8x128xf32>
    %255 = arith.divf %253, %254 : vector<8x128xf32>
    %256 = arith.mulf %247, %188 : vector<8x128xf32>
    %257 = arith.mulf %241, %249 : vector<8x128xf32>
    %258 = arith.addf %256, %257 : vector<8x128xf32>
    %259 = math.tanh %258 : vector<8x128xf32>
    %260 = arith.mulf %255, %259 : vector<8x128xf32>
    %261 = arith.addi %22, %229 : i32
    %262 = vector.broadcast %261 : i32 to vector<8x128xi32>
    %263 = arith.cmpi slt, %262, %19 : vector<8x128xi32>
    %cst_82 = arith.constant 0.000000e+00 : f32
    %264 = vector.broadcast %cst_82 : f32 to vector<8x128xf32>
    %265 = arith.select %263, %260, %264 : vector<8x128xi1>, vector<8x128xf32>
    %266 = arith.index_cast %231 : i32 to index
    %c0_83 = arith.constant 0 : index
    %267 = vector.load %arg11[%266, %c0_83] : memref<64x128xf32, #tpu.memory_space<vmem>>, vector<8x128xf32>
    tpu.vector_store %arg11[%266, %c0_83], %265 {strides = array<i32>} : memref<64x128xf32, #tpu.memory_space<vmem>>, vector<8x128xf32>,
    %268 = arith.select %263, %260, %187 : vector<8x128xi1>, vector<8x128xf32>
    %269 = arith.select %263, %258, %188 : vector<8x128xi1>, vector<8x128xf32>
    %c3_i32 = arith.constant 3 : i32
    %c8_i32_84 = arith.constant 8 : i32
    %270 = arith.muli %c3_i32, %c8_i32_84 : i32
    %271 = tpu.assume_multiple %270, 8 : i32
    %272 = arith.index_cast %271 : i32 to index
    %c0_85 = arith.constant 0 : index
    %273 = vector.load %arg14[%272, %c0_85] : memref<64x512xf32, #tpu.memory_space<vmem>>, vector<8x512xf32>
    %cst_86 = arith.constant dense<0.000000e+00> : vector<8x512xf32>
    %274 = tpu.matmul %227, %17, %cst_86 {dimension_numbers = #tpu.dot_dimension_numbers<[1], [0], [0], [1], [0, 0, 1, 1], [], []>} : vector<8x128xf32>, vector<128x512xf32>, vector<8x512xf32> -> vector<8x512xf32>
    %275 = arith.addf %273, %274 : vector<8x512xf32>
    %276 = vector.extract_strided_slice %275 {offsets = [0, 0], sizes = [8, 128], strides = [1, 1]} : vector<8x512xf32> to vector<8x128xf32>
    %277 = arith.negf %276 : vector<8x128xf32>
    %278 = math.exp %277 : vector<8x128xf32>
    %cst_87 = arith.constant 1.000000e+00 : f32
    %279 = vector.broadcast %cst_87 : f32 to vector<8x128xf32>
    %280 = arith.addf %279, %278 : vector<8x128xf32>
    %281 = arith.divf %279, %280 : vector<8x128xf32>
    %282 = vector.extract_strided_slice %275 {offsets = [0, 128], sizes = [8, 128], strides = [1, 1]} : vector<8x512xf32> to vector<8x128xf32>
    %283 = arith.negf %282 : vector<8x128xf32>
    %284 = math.exp %283 : vector<8x128xf32>
    %cst_88 = arith.constant 1.000000e+00 : f32
    %285 = vector.broadcast %cst_88 : f32 to vector<8x128xf32>
    %286 = arith.addf %285, %284 : vector<8x128xf32>
    %287 = arith.divf %285, %286 : vector<8x128xf32>
    %288 = vector.extract_strided_slice %275 {offsets = [0, 256], sizes = [8, 128], strides = [1, 1]} : vector<8x512xf32> to vector<8x128xf32>
    %289 = math.tanh %288 : vector<8x128xf32>
    %290 = vector.extract_strided_slice %275 {offsets = [0, 384], sizes = [8, 128], strides = [1, 1]} : vector<8x512xf32> to vector<8x128xf32>
    %291 = arith.negf %290 : vector<8x128xf32>
    %292 = math.exp %291 : vector<8x128xf32>
    %cst_89 = arith.constant 1.000000e+00 : f32
    %293 = vector.broadcast %cst_89 : f32 to vector<8x128xf32>
    %294 = arith.addf %293, %292 : vector<8x128xf32>
    %295 = arith.divf %293, %294 : vector<8x128xf32>
    %296 = arith.mulf %287, %228 : vector<8x128xf32>
    %297 = arith.mulf %281, %289 : vector<8x128xf32>
    %298 = arith.addf %296, %297 : vector<8x128xf32>
    %299 = math.tanh %298 : vector<8x128xf32>
    %300 = arith.mulf %295, %299 : vector<8x128xf32>
    %301 = arith.addi %20, %c3_i32 : i32
    %302 = vector.broadcast %301 : i32 to vector<8x128xi32>
    %303 = arith.cmpi slt, %302, %19 : vector<8x128xi32>
    %cst_90 = arith.constant 0.000000e+00 : f32
    %304 = vector.broadcast %cst_90 : f32 to vector<8x128xf32>
    %305 = arith.select %303, %300, %304 : vector<8x128xi1>, vector<8x128xf32>
    %306 = arith.index_cast %271 : i32 to index
    %c0_91 = arith.constant 0 : index
    %307 = vector.load %arg10[%306, %c0_91] : memref<64x128xf32, #tpu.memory_space<vmem>>, vector<8x128xf32>
    tpu.vector_store %arg10[%306, %c0_91], %305 {strides = array<i32>} : memref<64x128xf32, #tpu.memory_space<vmem>>, vector<8x128xf32>,
    %308 = arith.select %303, %300, %227 : vector<8x128xi1>, vector<8x128xf32>
    %309 = arith.select %303, %298, %228 : vector<8x128xi1>, vector<8x128xf32>
    %c7_i32_92 = arith.constant 7 : i32
    %310 = arith.subi %c7_i32_92, %c3_i32 : i32
    %c8_i32_93 = arith.constant 8 : i32
    %311 = arith.muli %310, %c8_i32_93 : i32
    %312 = tpu.assume_multiple %311, 8 : i32
    %313 = arith.index_cast %312 : i32 to index
    %c0_94 = arith.constant 0 : index
    %314 = vector.load %arg15[%313, %c0_94] : memref<64x512xf32, #tpu.memory_space<vmem>>, vector<8x512xf32>
    %cst_95 = arith.constant dense<0.000000e+00> : vector<8x512xf32>
    %315 = tpu.matmul %268, %18, %cst_95 {dimension_numbers = #tpu.dot_dimension_numbers<[1], [0], [0], [1], [0, 0, 1, 1], [], []>} : vector<8x128xf32>, vector<128x512xf32>, vector<8x512xf32> -> vector<8x512xf32>
    %316 = arith.addf %314, %315 : vector<8x512xf32>
    %317 = vector.extract_strided_slice %316 {offsets = [0, 0], sizes = [8, 128], strides = [1, 1]} : vector<8x512xf32> to vector<8x128xf32>
    %318 = arith.negf %317 : vector<8x128xf32>
    %319 = math.exp %318 : vector<8x128xf32>
    %cst_96 = arith.constant 1.000000e+00 : f32
    %320 = vector.broadcast %cst_96 : f32 to vector<8x128xf32>
    %321 = arith.addf %320, %319 : vector<8x128xf32>
    %322 = arith.divf %320, %321 : vector<8x128xf32>
    %323 = vector.extract_strided_slice %316 {offsets = [0, 128], sizes = [8, 128], strides = [1, 1]} : vector<8x512xf32> to vector<8x128xf32>
    %324 = arith.negf %323 : vector<8x128xf32>
    %325 = math.exp %324 : vector<8x128xf32>
    %cst_97 = arith.constant 1.000000e+00 : f32
    %326 = vector.broadcast %cst_97 : f32 to vector<8x128xf32>
    %327 = arith.addf %326, %325 : vector<8x128xf32>
    %328 = arith.divf %326, %327 : vector<8x128xf32>
    %329 = vector.extract_strided_slice %316 {offsets = [0, 256], sizes = [8, 128], strides = [1, 1]} : vector<8x512xf32> to vector<8x128xf32>
    %330 = math.tanh %329 : vector<8x128xf32>
    %331 = vector.extract_strided_slice %316 {offsets = [0, 384], sizes = [8, 128], strides = [1, 1]} : vector<8x512xf32> to vector<8x128xf32>
    %332 = arith.negf %331 : vector<8x128xf32>
    %333 = math.exp %332 : vector<8x128xf32>
    %cst_98 = arith.constant 1.000000e+00 : f32
    %334 = vector.broadcast %cst_98 : f32 to vector<8x128xf32>
    %335 = arith.addf %334, %333 : vector<8x128xf32>
    %336 = arith.divf %334, %335 : vector<8x128xf32>
    %337 = arith.mulf %328, %269 : vector<8x128xf32>
    %338 = arith.mulf %322, %330 : vector<8x128xf32>
    %339 = arith.addf %337, %338 : vector<8x128xf32>
    %340 = math.tanh %339 : vector<8x128xf32>
    %341 = arith.mulf %336, %340 : vector<8x128xf32>
    %342 = arith.addi %22, %310 : i32
    %343 = vector.broadcast %342 : i32 to vector<8x128xi32>
    %344 = arith.cmpi slt, %343, %19 : vector<8x128xi32>
    %cst_99 = arith.constant 0.000000e+00 : f32
    %345 = vector.broadcast %cst_99 : f32 to vector<8x128xf32>
    %346 = arith.select %344, %341, %345 : vector<8x128xi1>, vector<8x128xf32>
    %347 = arith.index_cast %312 : i32 to index
    %c0_100 = arith.constant 0 : index
    %348 = vector.load %arg11[%347, %c0_100] : memref<64x128xf32, #tpu.memory_space<vmem>>, vector<8x128xf32>
    tpu.vector_store %arg11[%347, %c0_100], %346 {strides = array<i32>} : memref<64x128xf32, #tpu.memory_space<vmem>>, vector<8x128xf32>,
    %349 = arith.select %344, %341, %268 : vector<8x128xi1>, vector<8x128xf32>
    %350 = arith.select %344, %339, %269 : vector<8x128xi1>, vector<8x128xf32>
    %c4_i32 = arith.constant 4 : i32
    %c8_i32_101 = arith.constant 8 : i32
    %351 = arith.muli %c4_i32, %c8_i32_101 : i32
    %352 = tpu.assume_multiple %351, 8 : i32
    %353 = arith.index_cast %352 : i32 to index
    %c0_102 = arith.constant 0 : index
    %354 = vector.load %arg14[%353, %c0_102] : memref<64x512xf32, #tpu.memory_space<vmem>>, vector<8x512xf32>
    %cst_103 = arith.constant dense<0.000000e+00> : vector<8x512xf32>
    %355 = tpu.matmul %308, %17, %cst_103 {dimension_numbers = #tpu.dot_dimension_numbers<[1], [0], [0], [1], [0, 0, 1, 1], [], []>} : vector<8x128xf32>, vector<128x512xf32>, vector<8x512xf32> -> vector<8x512xf32>
    %356 = arith.addf %354, %355 : vector<8x512xf32>
    %357 = vector.extract_strided_slice %356 {offsets = [0, 0], sizes = [8, 128], strides = [1, 1]} : vector<8x512xf32> to vector<8x128xf32>
    %358 = arith.negf %357 : vector<8x128xf32>
    %359 = math.exp %358 : vector<8x128xf32>
    %cst_104 = arith.constant 1.000000e+00 : f32
    %360 = vector.broadcast %cst_104 : f32 to vector<8x128xf32>
    %361 = arith.addf %360, %359 : vector<8x128xf32>
    %362 = arith.divf %360, %361 : vector<8x128xf32>
    %363 = vector.extract_strided_slice %356 {offsets = [0, 128], sizes = [8, 128], strides = [1, 1]} : vector<8x512xf32> to vector<8x128xf32>
    %364 = arith.negf %363 : vector<8x128xf32>
    %365 = math.exp %364 : vector<8x128xf32>
    %cst_105 = arith.constant 1.000000e+00 : f32
    %366 = vector.broadcast %cst_105 : f32 to vector<8x128xf32>
    %367 = arith.addf %366, %365 : vector<8x128xf32>
    %368 = arith.divf %366, %367 : vector<8x128xf32>
    %369 = vector.extract_strided_slice %356 {offsets = [0, 256], sizes = [8, 128], strides = [1, 1]} : vector<8x512xf32> to vector<8x128xf32>
    %370 = math.tanh %369 : vector<8x128xf32>
    %371 = vector.extract_strided_slice %356 {offsets = [0, 384], sizes = [8, 128], strides = [1, 1]} : vector<8x512xf32> to vector<8x128xf32>
    %372 = arith.negf %371 : vector<8x128xf32>
    %373 = math.exp %372 : vector<8x128xf32>
    %cst_106 = arith.constant 1.000000e+00 : f32
    %374 = vector.broadcast %cst_106 : f32 to vector<8x128xf32>
    %375 = arith.addf %374, %373 : vector<8x128xf32>
    %376 = arith.divf %374, %375 : vector<8x128xf32>
    %377 = arith.mulf %368, %309 : vector<8x128xf32>
    %378 = arith.mulf %362, %370 : vector<8x128xf32>
    %379 = arith.addf %377, %378 : vector<8x128xf32>
    %380 = math.tanh %379 : vector<8x128xf32>
    %381 = arith.mulf %376, %380 : vector<8x128xf32>
    %382 = arith.addi %20, %c4_i32 : i32
    %383 = vector.broadcast %382 : i32 to vector<8x128xi32>
    %384 = arith.cmpi slt, %383, %19 : vector<8x128xi32>
    %cst_107 = arith.constant 0.000000e+00 : f32
    %385 = vector.broadcast %cst_107 : f32 to vector<8x128xf32>
    %386 = arith.select %384, %381, %385 : vector<8x128xi1>, vector<8x128xf32>
    %387 = arith.index_cast %352 : i32 to index
    %c0_108 = arith.constant 0 : index
    %388 = vector.load %arg10[%387, %c0_108] : memref<64x128xf32, #tpu.memory_space<vmem>>, vector<8x128xf32>
    tpu.vector_store %arg10[%387, %c0_108], %386 {strides = array<i32>} : memref<64x128xf32, #tpu.memory_space<vmem>>, vector<8x128xf32>,
    %389 = arith.select %384, %381, %308 : vector<8x128xi1>, vector<8x128xf32>
    %390 = arith.select %384, %379, %309 : vector<8x128xi1>, vector<8x128xf32>
    %c7_i32_109 = arith.constant 7 : i32
    %391 = arith.subi %c7_i32_109, %c4_i32 : i32
    %c8_i32_110 = arith.constant 8 : i32
    %392 = arith.muli %391, %c8_i32_110 : i32
    %393 = tpu.assume_multiple %392, 8 : i32
    %394 = arith.index_cast %393 : i32 to index
    %c0_111 = arith.constant 0 : index
    %395 = vector.load %arg15[%394, %c0_111] : memref<64x512xf32, #tpu.memory_space<vmem>>, vector<8x512xf32>
    %cst_112 = arith.constant dense<0.000000e+00> : vector<8x512xf32>
    %396 = tpu.matmul %349, %18, %cst_112 {dimension_numbers = #tpu.dot_dimension_numbers<[1], [0], [0], [1], [0, 0, 1, 1], [], []>} : vector<8x128xf32>, vector<128x512xf32>, vector<8x512xf32> -> vector<8x512xf32>
    %397 = arith.addf %395, %396 : vector<8x512xf32>
    %398 = vector.extract_strided_slice %397 {offsets = [0, 0], sizes = [8, 128], strides = [1, 1]} : vector<8x512xf32> to vector<8x128xf32>
    %399 = arith.negf %398 : vector<8x128xf32>
    %400 = math.exp %399 : vector<8x128xf32>
    %cst_113 = arith.constant 1.000000e+00 : f32
    %401 = vector.broadcast %cst_113 : f32 to vector<8x128xf32>
    %402 = arith.addf %401, %400 : vector<8x128xf32>
    %403 = arith.divf %401, %402 : vector<8x128xf32>
    %404 = vector.extract_strided_slice %397 {offsets = [0, 128], sizes = [8, 128], strides = [1, 1]} : vector<8x512xf32> to vector<8x128xf32>
    %405 = arith.negf %404 : vector<8x128xf32>
    %406 = math.exp %405 : vector<8x128xf32>
    %cst_114 = arith.constant 1.000000e+00 : f32
    %407 = vector.broadcast %cst_114 : f32 to vector<8x128xf32>
    %408 = arith.addf %407, %406 : vector<8x128xf32>
    %409 = arith.divf %407, %408 : vector<8x128xf32>
    %410 = vector.extract_strided_slice %397 {offsets = [0, 256], sizes = [8, 128], strides = [1, 1]} : vector<8x512xf32> to vector<8x128xf32>
    %411 = math.tanh %410 : vector<8x128xf32>
    %412 = vector.extract_strided_slice %397 {offsets = [0, 384], sizes = [8, 128], strides = [1, 1]} : vector<8x512xf32> to vector<8x128xf32>
    %413 = arith.negf %412 : vector<8x128xf32>
    %414 = math.exp %413 : vector<8x128xf32>
    %cst_115 = arith.constant 1.000000e+00 : f32
    %415 = vector.broadcast %cst_115 : f32 to vector<8x128xf32>
    %416 = arith.addf %415, %414 : vector<8x128xf32>
    %417 = arith.divf %415, %416 : vector<8x128xf32>
    %418 = arith.mulf %409, %350 : vector<8x128xf32>
    %419 = arith.mulf %403, %411 : vector<8x128xf32>
    %420 = arith.addf %418, %419 : vector<8x128xf32>
    %421 = math.tanh %420 : vector<8x128xf32>
    %422 = arith.mulf %417, %421 : vector<8x128xf32>
    %423 = arith.addi %22, %391 : i32
    %424 = vector.broadcast %423 : i32 to vector<8x128xi32>
    %425 = arith.cmpi slt, %424, %19 : vector<8x128xi32>
    %cst_116 = arith.constant 0.000000e+00 : f32
    %426 = vector.broadcast %cst_116 : f32 to vector<8x128xf32>
    %427 = arith.select %425, %422, %426 : vector<8x128xi1>, vector<8x128xf32>
    %428 = arith.index_cast %393 : i32 to index
    %c0_117 = arith.constant 0 : index
    %429 = vector.load %arg11[%428, %c0_117] : memref<64x128xf32, #tpu.memory_space<vmem>>, vector<8x128xf32>
    tpu.vector_store %arg11[%428, %c0_117], %427 {strides = array<i32>} : memref<64x128xf32, #tpu.memory_space<vmem>>, vector<8x128xf32>,
    %430 = arith.select %425, %422, %349 : vector<8x128xi1>, vector<8x128xf32>
    %431 = arith.select %425, %420, %350 : vector<8x128xi1>, vector<8x128xf32>
    %c5_i32 = arith.constant 5 : i32
    %c8_i32_118 = arith.constant 8 : i32
    %432 = arith.muli %c5_i32, %c8_i32_118 : i32
    %433 = tpu.assume_multiple %432, 8 : i32
    %434 = arith.index_cast %433 : i32 to index
    %c0_119 = arith.constant 0 : index
    %435 = vector.load %arg14[%434, %c0_119] : memref<64x512xf32, #tpu.memory_space<vmem>>, vector<8x512xf32>
    %cst_120 = arith.constant dense<0.000000e+00> : vector<8x512xf32>
    %436 = tpu.matmul %389, %17, %cst_120 {dimension_numbers = #tpu.dot_dimension_numbers<[1], [0], [0], [1], [0, 0, 1, 1], [], []>} : vector<8x128xf32>, vector<128x512xf32>, vector<8x512xf32> -> vector<8x512xf32>
    %437 = arith.addf %435, %436 : vector<8x512xf32>
    %438 = vector.extract_strided_slice %437 {offsets = [0, 0], sizes = [8, 128], strides = [1, 1]} : vector<8x512xf32> to vector<8x128xf32>
    %439 = arith.negf %438 : vector<8x128xf32>
    %440 = math.exp %439 : vector<8x128xf32>
    %cst_121 = arith.constant 1.000000e+00 : f32
    %441 = vector.broadcast %cst_121 : f32 to vector<8x128xf32>
    %442 = arith.addf %441, %440 : vector<8x128xf32>
    %443 = arith.divf %441, %442 : vector<8x128xf32>
    %444 = vector.extract_strided_slice %437 {offsets = [0, 128], sizes = [8, 128], strides = [1, 1]} : vector<8x512xf32> to vector<8x128xf32>
    %445 = arith.negf %444 : vector<8x128xf32>
    %446 = math.exp %445 : vector<8x128xf32>
    %cst_122 = arith.constant 1.000000e+00 : f32
    %447 = vector.broadcast %cst_122 : f32 to vector<8x128xf32>
    %448 = arith.addf %447, %446 : vector<8x128xf32>
    %449 = arith.divf %447, %448 : vector<8x128xf32>
    %450 = vector.extract_strided_slice %437 {offsets = [0, 256], sizes = [8, 128], strides = [1, 1]} : vector<8x512xf32> to vector<8x128xf32>
    %451 = math.tanh %450 : vector<8x128xf32>
    %452 = vector.extract_strided_slice %437 {offsets = [0, 384], sizes = [8, 128], strides = [1, 1]} : vector<8x512xf32> to vector<8x128xf32>
    %453 = arith.negf %452 : vector<8x128xf32>
    %454 = math.exp %453 : vector<8x128xf32>
    %cst_123 = arith.constant 1.000000e+00 : f32
    %455 = vector.broadcast %cst_123 : f32 to vector<8x128xf32>
    %456 = arith.addf %455, %454 : vector<8x128xf32>
    %457 = arith.divf %455, %456 : vector<8x128xf32>
    %458 = arith.mulf %449, %390 : vector<8x128xf32>
    %459 = arith.mulf %443, %451 : vector<8x128xf32>
    %460 = arith.addf %458, %459 : vector<8x128xf32>
    %461 = math.tanh %460 : vector<8x128xf32>
    %462 = arith.mulf %457, %461 : vector<8x128xf32>
    %463 = arith.addi %20, %c5_i32 : i32
    %464 = vector.broadcast %463 : i32 to vector<8x128xi32>
    %465 = arith.cmpi slt, %464, %19 : vector<8x128xi32>
    %cst_124 = arith.constant 0.000000e+00 : f32
    %466 = vector.broadcast %cst_124 : f32 to vector<8x128xf32>
    %467 = arith.select %465, %462, %466 : vector<8x128xi1>, vector<8x128xf32>
    %468 = arith.index_cast %433 : i32 to index
    %c0_125 = arith.constant 0 : index
    %469 = vector.load %arg10[%468, %c0_125] : memref<64x128xf32, #tpu.memory_space<vmem>>, vector<8x128xf32>
    tpu.vector_store %arg10[%468, %c0_125], %467 {strides = array<i32>} : memref<64x128xf32, #tpu.memory_space<vmem>>, vector<8x128xf32>,
    %470 = arith.select %465, %462, %389 : vector<8x128xi1>, vector<8x128xf32>
    %471 = arith.select %465, %460, %390 : vector<8x128xi1>, vector<8x128xf32>
    %c7_i32_126 = arith.constant 7 : i32
    %472 = arith.subi %c7_i32_126, %c5_i32 : i32
    %c8_i32_127 = arith.constant 8 : i32
    %473 = arith.muli %472, %c8_i32_127 : i32
    %474 = tpu.assume_multiple %473, 8 : i32
    %475 = arith.index_cast %474 : i32 to index
    %c0_128 = arith.constant 0 : index
    %476 = vector.load %arg15[%475, %c0_128] : memref<64x512xf32, #tpu.memory_space<vmem>>, vector<8x512xf32>
    %cst_129 = arith.constant dense<0.000000e+00> : vector<8x512xf32>
    %477 = tpu.matmul %430, %18, %cst_129 {dimension_numbers = #tpu.dot_dimension_numbers<[1], [0], [0], [1], [0, 0, 1, 1], [], []>} : vector<8x128xf32>, vector<128x512xf32>, vector<8x512xf32> -> vector<8x512xf32>
    %478 = arith.addf %476, %477 : vector<8x512xf32>
    %479 = vector.extract_strided_slice %478 {offsets = [0, 0], sizes = [8, 128], strides = [1, 1]} : vector<8x512xf32> to vector<8x128xf32>
    %480 = arith.negf %479 : vector<8x128xf32>
    %481 = math.exp %480 : vector<8x128xf32>
    %cst_130 = arith.constant 1.000000e+00 : f32
    %482 = vector.broadcast %cst_130 : f32 to vector<8x128xf32>
    %483 = arith.addf %482, %481 : vector<8x128xf32>
    %484 = arith.divf %482, %483 : vector<8x128xf32>
    %485 = vector.extract_strided_slice %478 {offsets = [0, 128], sizes = [8, 128], strides = [1, 1]} : vector<8x512xf32> to vector<8x128xf32>
    %486 = arith.negf %485 : vector<8x128xf32>
    %487 = math.exp %486 : vector<8x128xf32>
    %cst_131 = arith.constant 1.000000e+00 : f32
    %488 = vector.broadcast %cst_131 : f32 to vector<8x128xf32>
    %489 = arith.addf %488, %487 : vector<8x128xf32>
    %490 = arith.divf %488, %489 : vector<8x128xf32>
    %491 = vector.extract_strided_slice %478 {offsets = [0, 256], sizes = [8, 128], strides = [1, 1]} : vector<8x512xf32> to vector<8x128xf32>
    %492 = math.tanh %491 : vector<8x128xf32>
    %493 = vector.extract_strided_slice %478 {offsets = [0, 384], sizes = [8, 128], strides = [1, 1]} : vector<8x512xf32> to vector<8x128xf32>
    %494 = arith.negf %493 : vector<8x128xf32>
    %495 = math.exp %494 : vector<8x128xf32>
    %cst_132 = arith.constant 1.000000e+00 : f32
    %496 = vector.broadcast %cst_132 : f32 to vector<8x128xf32>
    %497 = arith.addf %496, %495 : vector<8x128xf32>
    %498 = arith.divf %496, %497 : vector<8x128xf32>
    %499 = arith.mulf %490, %431 : vector<8x128xf32>
    %500 = arith.mulf %484, %492 : vector<8x128xf32>
    %501 = arith.addf %499, %500 : vector<8x128xf32>
    %502 = math.tanh %501 : vector<8x128xf32>
    %503 = arith.mulf %498, %502 : vector<8x128xf32>
    %504 = arith.addi %22, %472 : i32
    %505 = vector.broadcast %504 : i32 to vector<8x128xi32>
    %506 = arith.cmpi slt, %505, %19 : vector<8x128xi32>
    %cst_133 = arith.constant 0.000000e+00 : f32
    %507 = vector.broadcast %cst_133 : f32 to vector<8x128xf32>
    %508 = arith.select %506, %503, %507 : vector<8x128xi1>, vector<8x128xf32>
    %509 = arith.index_cast %474 : i32 to index
    %c0_134 = arith.constant 0 : index
    %510 = vector.load %arg11[%509, %c0_134] : memref<64x128xf32, #tpu.memory_space<vmem>>, vector<8x128xf32>
    tpu.vector_store %arg11[%509, %c0_134], %508 {strides = array<i32>} : memref<64x128xf32, #tpu.memory_space<vmem>>, vector<8x128xf32>,
    %511 = arith.select %506, %503, %430 : vector<8x128xi1>, vector<8x128xf32>
    %512 = arith.select %506, %501, %431 : vector<8x128xi1>, vector<8x128xf32>
    %c6_i32 = arith.constant 6 : i32
    %c8_i32_135 = arith.constant 8 : i32
    %513 = arith.muli %c6_i32, %c8_i32_135 : i32
    %514 = tpu.assume_multiple %513, 8 : i32
    %515 = arith.index_cast %514 : i32 to index
    %c0_136 = arith.constant 0 : index
    %516 = vector.load %arg14[%515, %c0_136] : memref<64x512xf32, #tpu.memory_space<vmem>>, vector<8x512xf32>
    %cst_137 = arith.constant dense<0.000000e+00> : vector<8x512xf32>
    %517 = tpu.matmul %470, %17, %cst_137 {dimension_numbers = #tpu.dot_dimension_numbers<[1], [0], [0], [1], [0, 0, 1, 1], [], []>} : vector<8x128xf32>, vector<128x512xf32>, vector<8x512xf32> -> vector<8x512xf32>
    %518 = arith.addf %516, %517 : vector<8x512xf32>
    %519 = vector.extract_strided_slice %518 {offsets = [0, 0], sizes = [8, 128], strides = [1, 1]} : vector<8x512xf32> to vector<8x128xf32>
    %520 = arith.negf %519 : vector<8x128xf32>
    %521 = math.exp %520 : vector<8x128xf32>
    %cst_138 = arith.constant 1.000000e+00 : f32
    %522 = vector.broadcast %cst_138 : f32 to vector<8x128xf32>
    %523 = arith.addf %522, %521 : vector<8x128xf32>
    %524 = arith.divf %522, %523 : vector<8x128xf32>
    %525 = vector.extract_strided_slice %518 {offsets = [0, 128], sizes = [8, 128], strides = [1, 1]} : vector<8x512xf32> to vector<8x128xf32>
    %526 = arith.negf %525 : vector<8x128xf32>
    %527 = math.exp %526 : vector<8x128xf32>
    %cst_139 = arith.constant 1.000000e+00 : f32
    %528 = vector.broadcast %cst_139 : f32 to vector<8x128xf32>
    %529 = arith.addf %528, %527 : vector<8x128xf32>
    %530 = arith.divf %528, %529 : vector<8x128xf32>
    %531 = vector.extract_strided_slice %518 {offsets = [0, 256], sizes = [8, 128], strides = [1, 1]} : vector<8x512xf32> to vector<8x128xf32>
    %532 = math.tanh %531 : vector<8x128xf32>
    %533 = vector.extract_strided_slice %518 {offsets = [0, 384], sizes = [8, 128], strides = [1, 1]} : vector<8x512xf32> to vector<8x128xf32>
    %534 = arith.negf %533 : vector<8x128xf32>
    %535 = math.exp %534 : vector<8x128xf32>
    %cst_140 = arith.constant 1.000000e+00 : f32
    %536 = vector.broadcast %cst_140 : f32 to vector<8x128xf32>
    %537 = arith.addf %536, %535 : vector<8x128xf32>
    %538 = arith.divf %536, %537 : vector<8x128xf32>
    %539 = arith.mulf %530, %471 : vector<8x128xf32>
    %540 = arith.mulf %524, %532 : vector<8x128xf32>
    %541 = arith.addf %539, %540 : vector<8x128xf32>
    %542 = math.tanh %541 : vector<8x128xf32>
    %543 = arith.mulf %538, %542 : vector<8x128xf32>
    %544 = arith.addi %20, %c6_i32 : i32
    %545 = vector.broadcast %544 : i32 to vector<8x128xi32>
    %546 = arith.cmpi slt, %545, %19 : vector<8x128xi32>
    %cst_141 = arith.constant 0.000000e+00 : f32
    %547 = vector.broadcast %cst_141 : f32 to vector<8x128xf32>
    %548 = arith.select %546, %543, %547 : vector<8x128xi1>, vector<8x128xf32>
    %549 = arith.index_cast %514 : i32 to index
    %c0_142 = arith.constant 0 : index
    %550 = vector.load %arg10[%549, %c0_142] : memref<64x128xf32, #tpu.memory_space<vmem>>, vector<8x128xf32>
    tpu.vector_store %arg10[%549, %c0_142], %548 {strides = array<i32>} : memref<64x128xf32, #tpu.memory_space<vmem>>, vector<8x128xf32>,
    %551 = arith.select %546, %543, %470 : vector<8x128xi1>, vector<8x128xf32>
    %552 = arith.select %546, %541, %471 : vector<8x128xi1>, vector<8x128xf32>
    %c7_i32_143 = arith.constant 7 : i32
    %553 = arith.subi %c7_i32_143, %c6_i32 : i32
    %c8_i32_144 = arith.constant 8 : i32
    %554 = arith.muli %553, %c8_i32_144 : i32
    %555 = tpu.assume_multiple %554, 8 : i32
    %556 = arith.index_cast %555 : i32 to index
    %c0_145 = arith.constant 0 : index
    %557 = vector.load %arg15[%556, %c0_145] : memref<64x512xf32, #tpu.memory_space<vmem>>, vector<8x512xf32>
    %cst_146 = arith.constant dense<0.000000e+00> : vector<8x512xf32>
    %558 = tpu.matmul %511, %18, %cst_146 {dimension_numbers = #tpu.dot_dimension_numbers<[1], [0], [0], [1], [0, 0, 1, 1], [], []>} : vector<8x128xf32>, vector<128x512xf32>, vector<8x512xf32> -> vector<8x512xf32>
    %559 = arith.addf %557, %558 : vector<8x512xf32>
    %560 = vector.extract_strided_slice %559 {offsets = [0, 0], sizes = [8, 128], strides = [1, 1]} : vector<8x512xf32> to vector<8x128xf32>
    %561 = arith.negf %560 : vector<8x128xf32>
    %562 = math.exp %561 : vector<8x128xf32>
    %cst_147 = arith.constant 1.000000e+00 : f32
    %563 = vector.broadcast %cst_147 : f32 to vector<8x128xf32>
    %564 = arith.addf %563, %562 : vector<8x128xf32>
    %565 = arith.divf %563, %564 : vector<8x128xf32>
    %566 = vector.extract_strided_slice %559 {offsets = [0, 128], sizes = [8, 128], strides = [1, 1]} : vector<8x512xf32> to vector<8x128xf32>
    %567 = arith.negf %566 : vector<8x128xf32>
    %568 = math.exp %567 : vector<8x128xf32>
    %cst_148 = arith.constant 1.000000e+00 : f32
    %569 = vector.broadcast %cst_148 : f32 to vector<8x128xf32>
    %570 = arith.addf %569, %568 : vector<8x128xf32>
    %571 = arith.divf %569, %570 : vector<8x128xf32>
    %572 = vector.extract_strided_slice %559 {offsets = [0, 256], sizes = [8, 128], strides = [1, 1]} : vector<8x512xf32> to vector<8x128xf32>
    %573 = math.tanh %572 : vector<8x128xf32>
    %574 = vector.extract_strided_slice %559 {offsets = [0, 384], sizes = [8, 128], strides = [1, 1]} : vector<8x512xf32> to vector<8x128xf32>
    %575 = arith.negf %574 : vector<8x128xf32>
    %576 = math.exp %575 : vector<8x128xf32>
    %cst_149 = arith.constant 1.000000e+00 : f32
    %577 = vector.broadcast %cst_149 : f32 to vector<8x128xf32>
    %578 = arith.addf %577, %576 : vector<8x128xf32>
    %579 = arith.divf %577, %578 : vector<8x128xf32>
    %580 = arith.mulf %571, %512 : vector<8x128xf32>
    %581 = arith.mulf %565, %573 : vector<8x128xf32>
    %582 = arith.addf %580, %581 : vector<8x128xf32>
    %583 = math.tanh %582 : vector<8x128xf32>
    %584 = arith.mulf %579, %583 : vector<8x128xf32>
    %585 = arith.addi %22, %553 : i32
    %586 = vector.broadcast %585 : i32 to vector<8x128xi32>
    %587 = arith.cmpi slt, %586, %19 : vector<8x128xi32>
    %cst_150 = arith.constant 0.000000e+00 : f32
    %588 = vector.broadcast %cst_150 : f32 to vector<8x128xf32>
    %589 = arith.select %587, %584, %588 : vector<8x128xi1>, vector<8x128xf32>
    %590 = arith.index_cast %555 : i32 to index
    %c0_151 = arith.constant 0 : index
    %591 = vector.load %arg11[%590, %c0_151] : memref<64x128xf32, #tpu.memory_space<vmem>>, vector<8x128xf32>
    tpu.vector_store %arg11[%590, %c0_151], %589 {strides = array<i32>} : memref<64x128xf32, #tpu.memory_space<vmem>>, vector<8x128xf32>,
    %592 = arith.select %587, %584, %511 : vector<8x128xi1>, vector<8x128xf32>
    %593 = arith.select %587, %582, %512 : vector<8x128xi1>, vector<8x128xf32>
    %c7_i32_152 = arith.constant 7 : i32
    %c8_i32_153 = arith.constant 8 : i32
    %594 = arith.muli %c7_i32_152, %c8_i32_153 : i32
    %595 = tpu.assume_multiple %594, 8 : i32
    %596 = arith.index_cast %595 : i32 to index
    %c0_154 = arith.constant 0 : index
    %597 = vector.load %arg14[%596, %c0_154] : memref<64x512xf32, #tpu.memory_space<vmem>>, vector<8x512xf32>
    %cst_155 = arith.constant dense<0.000000e+00> : vector<8x512xf32>
    %598 = tpu.matmul %551, %17, %cst_155 {dimension_numbers = #tpu.dot_dimension_numbers<[1], [0], [0], [1], [0, 0, 1, 1], [], []>} : vector<8x128xf32>, vector<128x512xf32>, vector<8x512xf32> -> vector<8x512xf32>
    %599 = arith.addf %597, %598 : vector<8x512xf32>
    %600 = vector.extract_strided_slice %599 {offsets = [0, 0], sizes = [8, 128], strides = [1, 1]} : vector<8x512xf32> to vector<8x128xf32>
    %601 = arith.negf %600 : vector<8x128xf32>
    %602 = math.exp %601 : vector<8x128xf32>
    %cst_156 = arith.constant 1.000000e+00 : f32
    %603 = vector.broadcast %cst_156 : f32 to vector<8x128xf32>
    %604 = arith.addf %603, %602 : vector<8x128xf32>
    %605 = arith.divf %603, %604 : vector<8x128xf32>
    %606 = vector.extract_strided_slice %599 {offsets = [0, 128], sizes = [8, 128], strides = [1, 1]} : vector<8x512xf32> to vector<8x128xf32>
    %607 = arith.negf %606 : vector<8x128xf32>
    %608 = math.exp %607 : vector<8x128xf32>
    %cst_157 = arith.constant 1.000000e+00 : f32
    %609 = vector.broadcast %cst_157 : f32 to vector<8x128xf32>
    %610 = arith.addf %609, %608 : vector<8x128xf32>
    %611 = arith.divf %609, %610 : vector<8x128xf32>
    %612 = vector.extract_strided_slice %599 {offsets = [0, 256], sizes = [8, 128], strides = [1, 1]} : vector<8x512xf32> to vector<8x128xf32>
    %613 = math.tanh %612 : vector<8x128xf32>
    %614 = vector.extract_strided_slice %599 {offsets = [0, 384], sizes = [8, 128], strides = [1, 1]} : vector<8x512xf32> to vector<8x128xf32>
    %615 = arith.negf %614 : vector<8x128xf32>
    %616 = math.exp %615 : vector<8x128xf32>
    %cst_158 = arith.constant 1.000000e+00 : f32
    %617 = vector.broadcast %cst_158 : f32 to vector<8x128xf32>
    %618 = arith.addf %617, %616 : vector<8x128xf32>
    %619 = arith.divf %617, %618 : vector<8x128xf32>
    %620 = arith.mulf %611, %552 : vector<8x128xf32>
    %621 = arith.mulf %605, %613 : vector<8x128xf32>
    %622 = arith.addf %620, %621 : vector<8x128xf32>
    %623 = math.tanh %622 : vector<8x128xf32>
    %624 = arith.mulf %619, %623 : vector<8x128xf32>
    %625 = arith.addi %20, %c7_i32_152 : i32
    %626 = vector.broadcast %625 : i32 to vector<8x128xi32>
    %627 = arith.cmpi slt, %626, %19 : vector<8x128xi32>
    %cst_159 = arith.constant 0.000000e+00 : f32
    %628 = vector.broadcast %cst_159 : f32 to vector<8x128xf32>
    %629 = arith.select %627, %624, %628 : vector<8x128xi1>, vector<8x128xf32>
    %630 = arith.index_cast %595 : i32 to index
    %c0_160 = arith.constant 0 : index
    %631 = vector.load %arg10[%630, %c0_160] : memref<64x128xf32, #tpu.memory_space<vmem>>, vector<8x128xf32>
    tpu.vector_store %arg10[%630, %c0_160], %629 {strides = array<i32>} : memref<64x128xf32, #tpu.memory_space<vmem>>, vector<8x128xf32>,
    %632 = arith.select %627, %624, %551 : vector<8x128xi1>, vector<8x128xf32>
    %633 = arith.select %627, %622, %552 : vector<8x128xi1>, vector<8x128xf32>
    %c7_i32_161 = arith.constant 7 : i32
    %634 = arith.subi %c7_i32_161, %c7_i32_152 : i32
    %c8_i32_162 = arith.constant 8 : i32
    %635 = arith.muli %634, %c8_i32_162 : i32
    %636 = tpu.assume_multiple %635, 8 : i32
    %637 = arith.index_cast %636 : i32 to index
    %c0_163 = arith.constant 0 : index
    %638 = vector.load %arg15[%637, %c0_163] : memref<64x512xf32, #tpu.memory_space<vmem>>, vector<8x512xf32>
    %cst_164 = arith.constant dense<0.000000e+00> : vector<8x512xf32>
    %639 = tpu.matmul %592, %18, %cst_164 {dimension_numbers = #tpu.dot_dimension_numbers<[1], [0], [0], [1], [0, 0, 1, 1], [], []>} : vector<8x128xf32>, vector<128x512xf32>, vector<8x512xf32> -> vector<8x512xf32>
    %640 = arith.addf %638, %639 : vector<8x512xf32>
    %641 = vector.extract_strided_slice %640 {offsets = [0, 0], sizes = [8, 128], strides = [1, 1]} : vector<8x512xf32> to vector<8x128xf32>
    %642 = arith.negf %641 : vector<8x128xf32>
    %643 = math.exp %642 : vector<8x128xf32>
    %cst_165 = arith.constant 1.000000e+00 : f32
    %644 = vector.broadcast %cst_165 : f32 to vector<8x128xf32>
    %645 = arith.addf %644, %643 : vector<8x128xf32>
    %646 = arith.divf %644, %645 : vector<8x128xf32>
    %647 = vector.extract_strided_slice %640 {offsets = [0, 128], sizes = [8, 128], strides = [1, 1]} : vector<8x512xf32> to vector<8x128xf32>
    %648 = arith.negf %647 : vector<8x128xf32>
    %649 = math.exp %648 : vector<8x128xf32>
    %cst_166 = arith.constant 1.000000e+00 : f32
    %650 = vector.broadcast %cst_166 : f32 to vector<8x128xf32>
    %651 = arith.addf %650, %649 : vector<8x128xf32>
    %652 = arith.divf %650, %651 : vector<8x128xf32>
    %653 = vector.extract_strided_slice %640 {offsets = [0, 256], sizes = [8, 128], strides = [1, 1]} : vector<8x512xf32> to vector<8x128xf32>
    %654 = math.tanh %653 : vector<8x128xf32>
    %655 = vector.extract_strided_slice %640 {offsets = [0, 384], sizes = [8, 128], strides = [1, 1]} : vector<8x512xf32> to vector<8x128xf32>
    %656 = arith.negf %655 : vector<8x128xf32>
    %657 = math.exp %656 : vector<8x128xf32>
    %cst_167 = arith.constant 1.000000e+00 : f32
    %658 = vector.broadcast %cst_167 : f32 to vector<8x128xf32>
    %659 = arith.addf %658, %657 : vector<8x128xf32>
    %660 = arith.divf %658, %659 : vector<8x128xf32>
    %661 = arith.mulf %652, %593 : vector<8x128xf32>
    %662 = arith.mulf %646, %654 : vector<8x128xf32>
    %663 = arith.addf %661, %662 : vector<8x128xf32>
    %664 = math.tanh %663 : vector<8x128xf32>
    %665 = arith.mulf %660, %664 : vector<8x128xf32>
    %666 = arith.addi %22, %634 : i32
    %667 = vector.broadcast %666 : i32 to vector<8x128xi32>
    %668 = arith.cmpi slt, %667, %19 : vector<8x128xi32>
    %cst_168 = arith.constant 0.000000e+00 : f32
    %669 = vector.broadcast %cst_168 : f32 to vector<8x128xf32>
    %670 = arith.select %668, %665, %669 : vector<8x128xi1>, vector<8x128xf32>
    %671 = arith.index_cast %636 : i32 to index
    %c0_169 = arith.constant 0 : index
    %672 = vector.load %arg11[%671, %c0_169] : memref<64x128xf32, #tpu.memory_space<vmem>>, vector<8x128xf32>
    tpu.vector_store %arg11[%671, %c0_169], %670 {strides = array<i32>} : memref<64x128xf32, #tpu.memory_space<vmem>>, vector<8x128xf32>,
    %673 = arith.select %668, %665, %592 : vector<8x128xi1>, vector<8x128xf32>
    %674 = arith.select %668, %663, %593 : vector<8x128xi1>, vector<8x128xf32>
    %c8_i32_170 = arith.constant 8 : i32
    %c0_171 = arith.constant 0 : index
    %c0_172 = arith.constant 0 : index
    %675 = vector.load %arg16[%c0_171, %c0_172] : memref<8x128xf32, #tpu.memory_space<vmem>>, vector<8x128xf32>
    tpu.vector_store %arg16[%c0_171, %c0_172], %632 {strides = array<i32>} : memref<8x128xf32, #tpu.memory_space<vmem>>, vector<8x128xf32>,
    %c0_173 = arith.constant 0 : index
    %c0_174 = arith.constant 0 : index
    %676 = vector.load %arg17[%c0_173, %c0_174] : memref<8x128xf32, #tpu.memory_space<vmem>>, vector<8x128xf32>
    tpu.vector_store %arg17[%c0_173, %c0_174], %633 {strides = array<i32>} : memref<8x128xf32, #tpu.memory_space<vmem>>, vector<8x128xf32>,
    %c0_175 = arith.constant 0 : index
    %c0_176 = arith.constant 0 : index
    %677 = vector.load %arg18[%c0_175, %c0_176] : memref<8x128xf32, #tpu.memory_space<vmem>>, vector<8x128xf32>
    tpu.vector_store %arg18[%c0_175, %c0_176], %673 {strides = array<i32>} : memref<8x128xf32, #tpu.memory_space<vmem>>, vector<8x128xf32>,
    %c0_177 = arith.constant 0 : index
    %c0_178 = arith.constant 0 : index
    %678 = vector.load %arg19[%c0_177, %c0_178] : memref<8x128xf32, #tpu.memory_space<vmem>>, vector<8x128xf32>
    tpu.vector_store %arg19[%c0_177, %c0_178], %674 {strides = array<i32>} : memref<8x128xf32, #tpu.memory_space<vmem>>, vector<8x128xf32>,
    %c0_179 = arith.constant 0 : index
    %c0_180 = arith.constant 0 : index
    %679 = vector.load %arg12[%c0_179, %c0_180] : memref<8x128xf32, #tpu.memory_space<vmem>>, vector<8x128xf32>
    tpu.vector_store %arg12[%c0_179, %c0_180], %632 {strides = array<i32>} : memref<8x128xf32, #tpu.memory_space<vmem>>, vector<8x128xf32>,
    %c0_181 = arith.constant 0 : index
    %c0_182 = arith.constant 0 : index
    %680 = vector.load %arg13[%c0_181, %c0_182] : memref<8x128xf32, #tpu.memory_space<vmem>>, vector<8x128xf32>
    tpu.vector_store %arg13[%c0_181, %c0_182], %673 {strides = array<i32>} : memref<8x128xf32, #tpu.memory_space<vmem>>, vector<8x128xf32>,
    return
  }
  func.func @transform_0(%arg0: i32) -> (i32, i32) {
    %c0_i32 = arith.constant 0 : i32
    %c0_i32_0 = arith.constant 0 : i32
    return %arg0, %c0_i32 : i32, i32
  }
  func.func @transform_1(%arg0: i32) -> (i32, i32) {
    %c0_i32 = arith.constant 0 : i32
    %0 = arith.subi %c0_i32, %arg0 : i32
    %c0_i32_0 = arith.constant 0 : i32
    %c0_i32_1 = arith.constant 0 : i32
    return %0, %c0_i32_0 : i32, i32
  }
  func.func @transform_2(%arg0: i32) -> (i32, i32) {
    %c0_i32 = arith.constant 0 : i32
    %c0_i32_0 = arith.constant 0 : i32
    %c0_i32_1 = arith.constant 0 : i32
    return %c0_i32, %c0_i32_0 : i32, i32
  }
  func.func @transform_3(%arg0: i32) -> (i32, i32) {
    %c0_i32 = arith.constant 0 : i32
    %c0_i32_0 = arith.constant 0 : i32
    %c0_i32_1 = arith.constant 0 : i32
    return %c0_i32, %c0_i32_0 : i32, i32
  }
  func.func @transform_4(%arg0: i32) -> (i32, i32) {
    %c0_i32 = arith.constant 0 : i32
    %c0_i32_0 = arith.constant 0 : i32
    %c0_i32_1 = arith.constant 0 : i32
    return %c0_i32, %c0_i32_0 : i32, i32
  }
  func.func @transform_5(%arg0: i32) -> (i32, i32) {
    %c0_i32 = arith.constant 0 : i32
    %c0_i32_0 = arith.constant 0 : i32
    %c0_i32_1 = arith.constant 0 : i32
    return %c0_i32, %c0_i32_0 : i32, i32
  }
  func.func @transform_6(%arg0: i32) -> (i32, i32) {
    %c0_i32 = arith.constant 0 : i32
    %c0_i32_0 = arith.constant 0 : i32
    %c0_i32_1 = arith.constant 0 : i32
    return %c0_i32, %c0_i32_0 : i32, i32
  }
  func.func @transform_7(%arg0: i32) -> (i32, i32) {
    %c0_i32 = arith.constant 0 : i32
    %c0_i32_0 = arith.constant 0 : i32
    %c0_i32_1 = arith.constant 0 : i32
    return %c0_i32, %c0_i32_0 : i32, i32
  }
  func.func @transform_8(%arg0: i32) -> (i32, i32) {
    %c0_i32 = arith.constant 0 : i32
    %c0_i32_0 = arith.constant 0 : i32
    %c0_i32_1 = arith.constant 0 : i32
    return %c0_i32, %c0_i32_0 : i32, i32
  }
  func.func @transform_9(%arg0: i32) -> (i32, i32) {
    %c0_i32 = arith.constant 0 : i32
    %c0_i32_0 = arith.constant 0 : i32
    return %arg0, %c0_i32 : i32, i32
  }
  func.func @transform_10(%arg0: i32) -> (i32, i32) {
    %c0_i32 = arith.constant 0 : i32
    %0 = arith.subi %c0_i32, %arg0 : i32
    %c0_i32_0 = arith.constant 0 : i32
    %c0_i32_1 = arith.constant 0 : i32
    return %0, %c0_i32_0 : i32, i32
  }
  func.func @transform_11(%arg0: i32) -> (i32, i32) {
    %c0_i32 = arith.constant 0 : i32
    %c0_i32_0 = arith.constant 0 : i32
    %c0_i32_1 = arith.constant 0 : i32
    return %c0_i32, %c0_i32_0 : i32, i32
  }
  func.func @transform_12(%arg0: i32) -> (i32, i32) {
    %c0_i32 = arith.constant 0 : i32
    %c0_i32_0 = arith.constant 0 : i32
    %c0_i32_1 = arith.constant 0 : i32
    return %c0_i32, %c0_i32_0 : i32, i32
  }
}

</mosaic_0001>

<llo_original>
// kernel: rnn_encoder_forward.1
$region0: #{rnn_encoder_forward.1}
  #allocation0 [shape = 'u32[]', space=smem, size = 0x4, offset = 0x4, fixed_abs, tag = 'smem constant byte address 0x4 - core index']
  #allocation1 [shape = 'u32[144,128]{1,0:T(1,128)}', space=vmem, size = 0x12000, scoped, tag = 'internal scratch']
  #allocation2 [shape = 'f32[64,512]{1,0:T(8,128)}', space=vmem, size = 0x20000, scoped, tag = 'scratch operand']
  #allocation3 [shape = 'f32[64,512]{1,0:T(8,128)}', space=vmem, size = 0x20000, scoped, tag = 'scratch operand']
  #allocation4 [shape = 'f32[8,128]{1,0:T(8,128)}', space=vmem, size = 0x1000, scoped, tag = 'scratch operand']
  #allocation5 [shape = 'f32[8,128]{1,0:T(8,128)}', space=vmem, size = 0x1000, scoped, tag = 'scratch operand']
  #allocation6 [shape = 'f32[8,128]{1,0:T(8,128)}', space=vmem, size = 0x1000, scoped, tag = 'scratch operand']
  #allocation7 [shape = 'f32[8,128]{1,0:T(8,128)}', space=vmem, size = 0x1000, scoped, tag = 'scratch operand']
  %s0 = inlined_call_operand.vmem [shape: f32[64,16], index: 0, kind: input, shape index: {}, may-alias: {0,1}]
  %s1 = inlined_call_operand.vmem [shape: f32[64,16], index: 1, kind: input, shape index: {}, may-alias: {0,1}]
  %s2 = inlined_call_operand.vmem [shape: s32[8,128], index: 2, kind: input, shape index: {}]
  %s3 = inlined_call_operand.vmem [shape: f32[16,512], index: 3, kind: input, shape index: {}]
  %s4 = inlined_call_operand.vmem [shape: f32[16,512], index: 4, kind: input, shape index: {}]
  %s5 = inlined_call_operand.vmem [shape: f32[128,512], index: 5, kind: input, shape index: {}]
  %s6 = inlined_call_operand.vmem [shape: f32[128,512], index: 6, kind: input, shape index: {}]
  %s7 = inlined_call_operand.vmem [shape: f32[1,512], index: 7, kind: input, shape index: {}]
  %s8 = inlined_call_operand.vmem [shape: f32[1,512], index: 8, kind: input, shape index: {}]
  %s9 = inlined_call_operand.vmem [shape: f32[64,128], index: 9, kind: output, shape index: {0}]
  %s10 = inlined_call_operand.vmem [shape: f32[64,128], index: 10, kind: output, shape index: {1}]
  %s11 = inlined_call_operand.vmem [shape: f32[8,128], index: 11, kind: output, shape index: {2}]
  %s12 = inlined_call_operand.vmem [shape: f32[8,128], index: 12, kind: output, shape index: {3}]
  %13 = xla_tuple %s9, %s10, %s11, %s12
  %s14 = sld [smem:[#allocation0]]
  $region74: #{rnn_encoder_forward.1} parent=0
    _
  %s16 = ssub.s32 1, %s14
  %s17 = scalar_select 0, %s16, %s14
  // Predicated region
  $region2: #{rnn_encoder_forward.1} parent=0 // pred_check
    _
  $region3: #{rnn_encoder_forward.1} parent=0 // pred_check_branch
    %19 = sbr.rel (0) target = $region5
  $region4: #{rnn_encoder_forward.1} parent=0 // pred_region
    _
  $region5: #{rnn_encoder_forward.1} parent=0 // pred_fallthru
    _
  // Predicated region
  $region6: #{rnn_encoder_forward.1} parent=0 // pred_check
    _
  $region7: #{rnn_encoder_forward.1} parent=0 // pred_check_branch
    %21 = sbr.rel (0) target = $region9
  $region8: #{rnn_encoder_forward.1} parent=0 // pred_region
    %s22 = ssub.s32 0, 0
    %s23 = smul.u32 8, %s22
    %p24 = scmp.lt.s32.totalorder %s23, 7
    %s25 = scalar_select %p24, %s23, 7
    %s26 = smul.addr %s25, 8
    %s27 = scalar_lea.vmem %s1, %s26
    %s28 = ssub.s32 0, 0
    %s29 = smul.u32 8, %s28
  $region9: #{rnn_encoder_forward.1} parent=0 // pred_fallthru
    _
  // Predicated region
  $region10: #{rnn_encoder_forward.1} parent=0 // pred_check
    _
  $region11: #{rnn_encoder_forward.1} parent=0 // pred_check_branch
    %31 = sbr.rel (0) target = $region13
  $region12: #{rnn_encoder_forward.1} parent=0 // pred_region
    _
  $region13: #{rnn_encoder_forward.1} parent=0 // pred_fallthru
    _
  // Predicated region
  $region14: #{rnn_encoder_forward.1} parent=0 // pred_check
    _
  $region15: #{rnn_encoder_forward.1} parent=0 // pred_check_branch
    %33 = sbr.rel (0) target = $region17
  $region16: #{rnn_encoder_forward.1} parent=0 // pred_region
    _
  $region17: #{rnn_encoder_forward.1} parent=0 // pred_fallthru
    _
  // Predicated region
  $region18: #{rnn_encoder_forward.1} parent=0 // pred_check
    _
  $region19: #{rnn_encoder_forward.1} parent=0 // pred_check_branch
    %35 = sbr.rel (0) target = $region21
  $region20: #{rnn_encoder_forward.1} parent=0 // pred_region
    _
  $region21: #{rnn_encoder_forward.1} parent=0 // pred_fallthru
    _
  // Predicated region
  $region22: #{rnn_encoder_forward.1} parent=0 // pred_check
    _
  $region23: #{rnn_encoder_forward.1} parent=0 // pred_check_branch
    %37 = sbr.rel (0) target = $region25
  $region24: #{rnn_encoder_forward.1} parent=0 // pred_region
    _
  $region25: #{rnn_encoder_forward.1} parent=0 // pred_fallthru
    _
  // Predicated region
  $region26: #{rnn_encoder_forward.1} parent=0 // pred_check
    _
  $region27: #{rnn_encoder_forward.1} parent=0 // pred_check_branch
    %39 = sbr.rel (0) target = $region29
  $region28: #{rnn_encoder_forward.1} parent=0 // pred_region
    _
  $region29: #{rnn_encoder_forward.1} parent=0 // pred_fallthru
    _
  // Predicated region
  $region30: #{rnn_encoder_forward.1} parent=0 // pred_check
    _
  $region31: #{rnn_encoder_forward.1} parent=0 // pred_check_branch
    %41 = sbr.rel (0) target = $region33
  $region32: #{rnn_encoder_forward.1} parent=0 // pred_region
    _
  $region33: #{rnn_encoder_forward.1} parent=0 // pred_fallthru
    _
  // Predicated region
  $region34: #{rnn_encoder_forward.1} parent=0 // pred_check
    _
  $region35: #{rnn_encoder_forward.1} parent=0 // pred_check_branch
    %43 = sbr.rel (0) target = $region37
  $region36: #{rnn_encoder_forward.1} parent=0 // pred_region
    _
  $region37: #{rnn_encoder_forward.1} parent=0 // pred_fallthru
    _
  %s44 = ssub.s32 0, 0
  %s45 = smul.u32 8, %s44
  %p46 = scmp.lt.s32.totalorder %s45, 7
  %s47 = scalar_select %p46, %s45, 7
  %s48 = smul.addr %s47, 8
  %s49 = scalar_lea.vmem %s1, %s48
  %s50 = ssub.s32 0, 0
  %s51 = smul.u32 8, %s50
  %p52 = scmp.lt.s32.totalorder %s51, 7
  %s53 = scalar_select %p52, %s51, 7
  %s54 = smul.addr %s53, 8
  %s55 = scalar_lea.vmem %s10, %s54
  %s56 = ssub.s32 0, 0
  %s57 = smul.u32 8, %s56
  %p58 = scmp.lt.s32.totalorder %s57, 7
  %s59 = scalar_select %p58, %s57, 7
  %s60 = smul.addr %s59, 8
  %s61 = scalar_lea.vmem %s1, %s60
  %s62 = ssub.s32 0, 0
  %s63 = smul.u32 8, %s62
  %s64 = ssub.s32 0, 0
  %s65 = smul.u32 8, %s64
  %p66 = scmp.lt.s32.totalorder %s65, 7
  %s67 = scalar_select %p66, %s65, 7
  %s68 = smul.addr %s67, 8
  %s69 = scalar_lea.vmem %s10, %s68
  %s70 = ssub.s32 0, 0
  %s71 = smul.u32 8, %s70
  %p72 = scmp.eq.s32.totalorder 0, 0
  // Predicated region
  $region38: #{rnn_encoder_forward.1} parent=0 // pred_check
    %p73 = pneg %p72
  $region39: #{rnn_encoder_forward.1} parent=0 // pred_check_branch
    %75 = sbr.rel (%p73) target = $region41
  $region40: #{rnn_encoder_forward.1} parent=0 // pred_region
    %76 = vst [vmem:[#allocation4] sm:$0xff] 0.0
    %77 = vst [vmem:[#allocation5] sm:$0xff] 0.0
    %78 = vst [vmem:[#allocation6] sm:$0xff] 0.0
    %79 = vst [vmem:[#allocation7] sm:$0xff] 0.0
  $region41: #{rnn_encoder_forward.1} parent=0 // pred_fallthru
    _
  %v80 = vld [vmem:[%s0] sm:$0xff]
  %v81 = vld [vmem:[%s0 + $0x8] sm:$0xff]
  %v82 = vld [vmem:[%s0 + $0x10] sm:$0xff]
  %v83 = vld [vmem:[%s0 + $0x18] sm:$0xff]
  %v84 = vld [vmem:[%s0 + $0x20] sm:$0xff]
  %v85 = vld [vmem:[%s0 + $0x28] sm:$0xff]
  %v86 = vld [vmem:[%s0 + $0x30] sm:$0xff]
  %v87 = vld [vmem:[%s0 + $0x38] sm:$0xff]
  %v88 = vld [vmem:[%s3] sm:$0xff]
  %v89 = vld [vmem:[%s3 + $0x8] sm:$0xff]
  %v90 = vld [vmem:[%s3 + $0x10] sm:$0xff]
  %v91 = vld [vmem:[%s3 + $0x18] sm:$0xff]
  %v92 = vld [vmem:[%s3 + $0x20] sm:$0xff]
  %v93 = vld [vmem:[%s3 + $0x28] sm:$0xff]
  %v94 = vld [vmem:[%s3 + $0x30] sm:$0xff]
  %v95 = vld [vmem:[%s3 + $0x38] sm:$0xff]
  %v96 = vld [vmem:[%s7] sm:$0xf]
  %v98 = vlaneseq
  %v99 = vshrl.u32 %v98, 7
  %v100 = vsub.s32 0, %v99
  %v101 = vrot.slane %v96, %v100
  %v102 = vlaneseq
  %v103 = vshrl.u32 %v102, 7
  %v104 = vsub.s32 1, %v103
  %v105 = vrot.slane %v96, %v104
  %v106 = vlaneseq
  %v107 = vshrl.u32 %v106, 7
  %v108 = vsub.s32 2, %v107
  %v109 = vrot.slane %v96, %v108
  %v110 = vlaneseq
  %v111 = vshrl.u32 %v110, 7
  %v112 = vsub.s32 3, %v111
  %v113 = vrot.slane %v96, %v112
  %vm118 = vcmask 130048
  %v120 = vsel %vm118, %v80, 0
  %v123 = vsel %vm118, %v81, 0
  %v126 = vsel %vm118, %v82, 0
  %v129 = vsel %vm118, %v83, 0
  %v132 = vsel %vm118, %v84, 0
  %v135 = vsel %vm118, %v85, 0
  %v138 = vsel %vm118, %v86, 0
  %v141 = vsel %vm118, %v87, 0
  %143 = vmatprep.subr.mxu0 %v89
  %144 = vmatpush1.msra.mxu0 %v88
  %145 = vmatprep.subr.mxu0 %v93
  %146 = vmatpush1.msra.mxu0 %v92
  %147 = vmatprep.subr.mxu0 0.0
  %148 = vmatpush1.msra.mxu0 0.0
  %149 = vmatprep.subr.mxu0 0.0
  %150 = vmatpush1.msra.mxu0 0.0
  %151 = vmatprep.subr.mxu0 0.0
  %152 = vmatpush1.msra.mxu0 0.0
  %153 = vmatprep.subr.mxu0 0.0
  %154 = vmatpush1.msra.mxu0 0.0
  %155 = vmatprep.subr.mxu0 0.0
  %156 = vmatpush1.msra.mxu0 0.0
  %157 = vmatprep.subr.mxu0 0.0
  %158 = vmatpush1.msra.mxu0 0.0
  %159 = vmatprep.subr.mxu0 0.0
  %160 = vmatpush1.msra.mxu0 0.0
  %161 = vmatprep.subr.mxu0 0.0
  %162 = vmatpush1.msra.mxu0 0.0
  %163 = vmatprep.subr.mxu0 0.0
  %164 = vmatpush1.msra.mxu0 0.0
  %165 = vmatprep.subr.mxu0 0.0
  %166 = vmatpush1.msra.mxu0 0.0
  %167 = vmatprep.subr.mxu0 0.0
  %168 = vmatpush1.msra.mxu0 0.0
  %169 = vmatprep.subr.mxu0 0.0
  %170 = vmatpush1.msra.mxu0 0.0
  %171 = vmatprep.subr.mxu0 0.0
  %172 = vmatpush1.msra.mxu0 0.0
  %173 = vmatprep.subr.mxu0 0.0
  %174 = vmatpush1.msra.mxu0 0.0
  %175 = vmatprep.subr.mxu0 0.0
  %176 = vmatpush1.msra.mxu0 0.0
  %177 = vmatprep.subr.mxu0 0.0
  %178 = vmatpush1.msra.mxu0 0.0
  %179 = vmatprep.subr.mxu0 0.0
  %180 = vmatpush1.msra.mxu0 0.0
  %181 = vmatprep.subr.mxu0 0.0
  %182 = vmatpush1.msra.mxu0 0.0
  %183 = vmatprep.subr.mxu0 0.0
  %184 = vmatpush1.msra.mxu0 0.0
  %185 = vmatprep.subr.mxu0 0.0
  %186 = vmatpush1.msra.mxu0 0.0
  %187 = vmatprep.subr.mxu0 0.0
  %188 = vmatpush1.msra.mxu0 0.0
  %189 = vmatprep.subr.mxu0 0.0
  %190 = vmatpush1.msra.mxu0 0.0
  %191 = vmatprep.subr.mxu0 0.0
  %192 = vmatpush1.msra.mxu0 0.0
  %193 = vmatprep.subr.mxu0 0.0
  %194 = vmatpush1.msra.mxu0 0.0
  %195 = vmatprep.subr.mxu0 0.0
  %196 = vmatpush1.msra.mxu0 0.0
  %197 = vmatprep.subr.mxu0 0.0
  %198 = vmatpush1.msra.mxu0 0.0
  %199 = vmatprep.subr.mxu0 0.0
  %200 = vmatpush1.msra.mxu0 0.0
  %201 = vmatprep.subr.mxu0 0.0
  %202 = vmatpush1.msra.mxu0 0.0
  %203 = vmatprep.subr.mxu0 0.0
  %204 = vmatpush1.msra.mxu0 0.0
  %205 = vmatprep.subr.mxu0 0.0
  %206 = vmatpush1.msra.mxu0 0.0
  %207 = vmatprep.mubr.f32.mxu0 0.0
  %208 = vmatmul.mubr.f32.gmra.mrb[0].mxu0 %v120
  %v209 = vpop.f32.mrb[0].mxu0
  %v210 = vadd.f32 %v101, %v209
  %v211 = vpop.f32.mrb[0].mxu0
  %v212 = vadd.f32 %v105, %v211
  %213 = vmatprep.mubr.f32.mxu0 0.0
  %214 = vmatmul.mubr.f32.gmra.mrb[0].mxu0 %v123
  %v215 = vpop.f32.mrb[0].mxu0
  %v216 = vadd.f32 %v101, %v215
  %v217 = vpop.f32.mrb[0].mxu0
  %v218 = vadd.f32 %v105, %v217
  %219 = vmatprep.mubr.f32.mxu0 0.0
  %220 = vmatmul.mubr.f32.gmra.mrb[0].mxu0 %v126
  %v221 = vpop.f32.mrb[0].mxu0
  %v222 = vadd.f32 %v101, %v221
  %v223 = vpop.f32.mrb[0].mxu0
  %v224 = vadd.f32 %v105, %v223
  %225 = vmatprep.mubr.f32.mxu0 0.0
  %226 = vmatmul.mubr.f32.gmra.mrb[0].mxu0 %v129
  %v227 = vpop.f32.mrb[0].mxu0
  %v228 = vadd.f32 %v101, %v227
  %v229 = vpop.f32.mrb[0].mxu0
  %v230 = vadd.f32 %v105, %v229
  %231 = vmatprep.mubr.f32.mxu0 0.0
  %232 = vmatmul.mubr.f32.gmra.mrb[0].mxu0 %v132
  %v233 = vpop.f32.mrb[0].mxu0
  %v234 = vadd.f32 %v101, %v233
  %v235 = vpop.f32.mrb[0].mxu0
  %v236 = vadd.f32 %v105, %v235
  %237 = vmatprep.mubr.f32.mxu0 0.0
  %238 = vmatmul.mubr.f32.gmra.mrb[0].mxu0 %v135
  %v239 = vpop.f32.mrb[0].mxu0
  %v240 = vadd.f32 %v101, %v239
  %v241 = vpop.f32.mrb[0].mxu0
  %v242 = vadd.f32 %v105, %v241
  %243 = vmatprep.mubr.f32.mxu0 0.0
  %244 = vmatmul.mubr.f32.gmra.mrb[0].mxu0 %v138
  %v245 = vpop.f32.mrb[0].mxu0
  %v246 = vadd.f32 %v101, %v245
  %v247 = vpop.f32.mrb[0].mxu0
  %v248 = vadd.f32 %v105, %v247
  %249 = vmatprep.mubr.f32.mxu0 0.0
  %250 = vmatmul.mubr.f32.gmra.mrb[0].mxu0 %v141
  %v251 = vpop.f32.mrb[0].mxu0
  %v252 = vadd.f32 %v101, %v251
  %v253 = vpop.f32.mrb[0].mxu0
  %v254 = vadd.f32 %v105, %v253
  %255 = vdwg.mxu0
  %256 = vmatprep.subr.mxu0 %v91
  %257 = vmatpush1.msra.mxu0 %v90
  %258 = vmatprep.subr.mxu0 %v95
  %259 = vmatpush1.msra.mxu0 %v94
  %260 = vmatprep.subr.mxu0 0.0
  %261 = vmatpush1.msra.mxu0 0.0
  %262 = vmatprep.subr.mxu0 0.0
  %263 = vmatpush1.msra.mxu0 0.0
  %264 = vmatprep.subr.mxu0 0.0
  %265 = vmatpush1.msra.mxu0 0.0
  %266 = vmatprep.subr.mxu0 0.0
  %267 = vmatpush1.msra.mxu0 0.0
  %268 = vmatprep.subr.mxu0 0.0
  %269 = vmatpush1.msra.mxu0 0.0
  %270 = vmatprep.subr.mxu0 0.0
  %271 = vmatpush1.msra.mxu0 0.0
  %272 = vmatprep.subr.mxu0 0.0
  %273 = vmatpush1.msra.mxu0 0.0
  %274 = vmatprep.subr.mxu0 0.0
  %275 = vmatpush1.msra.mxu0 0.0
  %276 = vmatprep.subr.mxu0 0.0
  %277 = vmatpush1.msra.mxu0 0.0
  %278 = vmatprep.subr.mxu0 0.0
  %279 = vmatpush1.msra.mxu0 0.0
  %280 = vmatprep.subr.mxu0 0.0
  %281 = vmatpush1.msra.mxu0 0.0
  %282 = vmatprep.subr.mxu0 0.0
  %283 = vmatpush1.msra.mxu0 0.0
  %284 = vmatprep.subr.mxu0 0.0
  %285 = vmatpush1.msra.mxu0 0.0
  %286 = vmatprep.subr.mxu0 0.0
  %287 = vmatpush1.msra.mxu0 0.0
  %288 = vmatprep.subr.mxu0 0.0
  %289 = vmatpush1.msra.mxu0 0.0
  %290 = vmatprep.subr.mxu0 0.0
  %291 = vmatpush1.msra.mxu0 0.0
  %292 = vmatprep.subr.mxu0 0.0
  %293 = vmatpush1.msra.mxu0 0.0
  %294 = vmatprep.subr.mxu0 0.0
  %295 = vmatpush1.msra.mxu0 0.0
  %296 = vmatprep.subr.mxu0 0.0
  %297 = vmatpush1.msra.mxu0 0.0
  %298 = vmatprep.subr.mxu0 0.0
  %299 = vmatpush1.msra.mxu0 0.0
  %300 = vmatprep.subr.mxu0 0.0
  %301 = vmatpush1.msra.mxu0 0.0
  %302 = vmatprep.subr.mxu0 0.0
  %303 = vmatpush1.msra.mxu0 0.0
  %304 = vmatprep.subr.mxu0 0.0
  %305 = vmatpush1.msra.mxu0 0.0
  %306 = vmatprep.subr.mxu0 0.0
  %307 = vmatpush1.msra.mxu0 0.0
  %308 = vmatprep.subr.mxu0 0.0
  %309 = vmatpush1.msra.mxu0 0.0
  %310 = vmatprep.subr.mxu0 0.0
  %311 = vmatpush1.msra.mxu0 0.0
  %312 = vmatprep.subr.mxu0 0.0
  %313 = vmatpush1.msra.mxu0 0.0
  %314 = vmatprep.subr.mxu0 0.0
  %315 = vmatpush1.msra.mxu0 0.0
  %316 = vmatprep.subr.mxu0 0.0
  %317 = vmatpush1.msra.mxu0 0.0
  %318 = vmatprep.subr.mxu0 0.0
  %319 = vmatpush1.msra.mxu0 0.0
  %320 = vmatprep.mubr.f32.mxu0 0.0
  %321 = vmatmul.mubr.f32.gmra.mrb[0].mxu0 %v120
  %v322 = vpop.f32.mrb[0].mxu0
  %v323 = vadd.f32 %v109, %v322
  %v324 = vpop.f32.mrb[0].mxu0
  %v325 = vadd.f32 %v113, %v324
  %326 = vmatprep.mubr.f32.mxu0 0.0
  %327 = vmatmul.mubr.f32.gmra.mrb[0].mxu0 %v123
  %v328 = vpop.f32.mrb[0].mxu0
  %v329 = vadd.f32 %v109, %v328
  %v330 = vpop.f32.mrb[0].mxu0
  %v331 = vadd.f32 %v113, %v330
  %332 = vmatprep.mubr.f32.mxu0 0.0
  %333 = vmatmul.mubr.f32.gmra.mrb[0].mxu0 %v126
  %v334 = vpop.f32.mrb[0].mxu0
  %v335 = vadd.f32 %v109, %v334
  %v336 = vpop.f32.mrb[0].mxu0
  %v337 = vadd.f32 %v113, %v336
  %338 = vmatprep.mubr.f32.mxu0 0.0
  %339 = vmatmul.mubr.f32.gmra.mrb[0].mxu0 %v129
  %v340 = vpop.f32.mrb[0].mxu0
  %v341 = vadd.f32 %v109, %v340
  %v342 = vpop.f32.mrb[0].mxu0
  %v343 = vadd.f32 %v113, %v342
  %344 = vmatprep.mubr.f32.mxu0 0.0
  %345 = vmatmul.mubr.f32.gmra.mrb[0].mxu0 %v132
  %v346 = vpop.f32.mrb[0].mxu0
  %v347 = vadd.f32 %v109, %v346
  %v348 = vpop.f32.mrb[0].mxu0
  %v349 = vadd.f32 %v113, %v348
  %350 = vmatprep.mubr.f32.mxu0 0.0
  %351 = vmatmul.mubr.f32.gmra.mrb[0].mxu0 %v135
  %v352 = vpop.f32.mrb[0].mxu0
  %v353 = vadd.f32 %v109, %v352
  %v354 = vpop.f32.mrb[0].mxu0
  %v355 = vadd.f32 %v113, %v354
  %356 = vmatprep.mubr.f32.mxu0 0.0
  %357 = vmatmul.mubr.f32.gmra.mrb[0].mxu0 %v138
  %v358 = vpop.f32.mrb[0].mxu0
  %v359 = vadd.f32 %v109, %v358
  %v360 = vpop.f32.mrb[0].mxu0
  %v361 = vadd.f32 %v113, %v360
  %362 = vmatprep.mubr.f32.mxu0 0.0
  %363 = vmatmul.mubr.f32.gmra.mrb[0].mxu0 %v141
  %v364 = vpop.f32.mrb[0].mxu0
  %v365 = vadd.f32 %v109, %v364
  %v366 = vpop.f32.mrb[0].mxu0
  %v367 = vadd.f32 %v113, %v366
  %368 = vdwg.mxu0
  %369 = vst [vmem:[#allocation2] sm:$0xff] %v210
  %370 = vst [vmem:[#allocation2 + $0x8] sm:$0xff] %v212
  %371 = vst [vmem:[#allocation2 + $0x10] sm:$0xff] %v323
  %372 = vst [vmem:[#allocation2 + $0x18] sm:$0xff] %v325
  %373 = vst [vmem:[#allocation2 + $0x20] sm:$0xff] %v216
  %374 = vst [vmem:[#allocation2 + $0x28] sm:$0xff] %v218
  %375 = vst [vmem:[#allocation2 + $0x30] sm:$0xff] %v329
  %376 = vst [vmem:[#allocation2 + $0x38] sm:$0xff] %v331
  %377 = vst [vmem:[#allocation2 + $0x40] sm:$0xff] %v222
  %378 = vst [vmem:[#allocation2 + $0x48] sm:$0xff] %v224
  %379 = vst [vmem:[#allocation2 + $0x50] sm:$0xff] %v335
  %380 = vst [vmem:[#allocation2 + $0x58] sm:$0xff] %v337
  %381 = vst [vmem:[#allocation2 + $0x60] sm:$0xff] %v228
  %382 = vst [vmem:[#allocation2 + $0x68] sm:$0xff] %v230
  %383 = vst [vmem:[#allocation2 + $0x70] sm:$0xff] %v341
  %384 = vst [vmem:[#allocation2 + $0x78] sm:$0xff] %v343
  %385 = vst [vmem:[#allocation2 + $0x80] sm:$0xff] %v234
  %386 = vst [vmem:[#allocation2 + $0x88] sm:$0xff] %v236
  %387 = vst [vmem:[#allocation2 + $0x90] sm:$0xff] %v347
  %388 = vst [vmem:[#allocation2 + $0x98] sm:$0xff] %v349
  %389 = vst [vmem:[#allocation2 + $0xa0] sm:$0xff] %v240
  %390 = vst [vmem:[#allocation2 + $0xa8] sm:$0xff] %v242
  %391 = vst [vmem:[#allocation2 + $0xb0] sm:$0xff] %v353
  %392 = vst [vmem:[#allocation2 + $0xb8] sm:$0xff] %v355
  %393 = vst [vmem:[#allocation2 + $0xc0] sm:$0xff] %v246
  %394 = vst [vmem:[#allocation2 + $0xc8] sm:$0xff] %v248
  %395 = vst [vmem:[#allocation2 + $0xd0] sm:$0xff] %v359
  %396 = vst [vmem:[#allocation2 + $0xd8] sm:$0xff] %v361
  %397 = vst [vmem:[#allocation2 + $0xe0] sm:$0xff] %v252
  %398 = vst [vmem:[#allocation2 + $0xe8] sm:$0xff] %v254
  %399 = vst [vmem:[#allocation2 + $0xf0] sm:$0xff] %v365
  %400 = vst [vmem:[#allocation2 + $0xf8] sm:$0xff] %v367
  %v401 = vld [vmem:[%s61] sm:$0xff]
  %v402 = vld [vmem:[%s61 + $0x8] sm:$0xff]
  %v403 = vld [vmem:[%s61 + $0x10] sm:$0xff]
  %v404 = vld [vmem:[%s61 + $0x18] sm:$0xff]
  %v405 = vld [vmem:[%s61 + $0x20] sm:$0xff]
  %v406 = vld [vmem:[%s61 + $0x28] sm:$0xff]
  %v407 = vld [vmem:[%s61 + $0x30] sm:$0xff]
  %v408 = vld [vmem:[%s61 + $0x38] sm:$0xff]
  %v409 = vld [vmem:[%s4] sm:$0xff]
  %v410 = vld [vmem:[%s4 + $0x8] sm:$0xff]
  %v411 = vld [vmem:[%s4 + $0x10] sm:$0xff]
  %v412 = vld [vmem:[%s4 + $0x18] sm:$0xff]
  %v413 = vld [vmem:[%s4 + $0x20] sm:$0xff]
  %v414 = vld [vmem:[%s4 + $0x28] sm:$0xff]
  %v415 = vld [vmem:[%s4 + $0x30] sm:$0xff]
  %v416 = vld [vmem:[%s4 + $0x38] sm:$0xff]
  %v417 = vld [vmem:[%s8] sm:$0xf]
  %v419 = vlaneseq
  %v420 = vshrl.u32 %v419, 7
  %v421 = vsub.s32 0, %v420
  %v422 = vrot.slane %v417, %v421
  %v423 = vlaneseq
  %v424 = vshrl.u32 %v423, 7
  %v425 = vsub.s32 1, %v424
  %v426 = vrot.slane %v417, %v425
  %v427 = vlaneseq
  %v428 = vshrl.u32 %v427, 7
  %v429 = vsub.s32 2, %v428
  %v430 = vrot.slane %v417, %v429
  %v431 = vlaneseq
  %v432 = vshrl.u32 %v431, 7
  %v433 = vsub.s32 3, %v432
  %v434 = vrot.slane %v417, %v433
  %v440 = vsel %vm118, %v401, 0
  %v443 = vsel %vm118, %v402, 0
  %v446 = vsel %vm118, %v403, 0
  %v449 = vsel %vm118, %v404, 0
  %v452 = vsel %vm118, %v405, 0
  %v455 = vsel %vm118, %v406, 0
  %v458 = vsel %vm118, %v407, 0
  %v461 = vsel %vm118, %v408, 0
  %463 = vmatprep.subr.mxu0 %v410
  %464 = vmatpush1.msra.mxu0 %v409
  %465 = vmatprep.subr.mxu0 %v414
  %466 = vmatpush1.msra.mxu0 %v413
  %467 = vmatprep.subr.mxu0 0.0
  %468 = vmatpush1.msra.mxu0 0.0
  %469 = vmatprep.subr.mxu0 0.0
  %470 = vmatpush1.msra.mxu0 0.0
  %471 = vmatprep.subr.mxu0 0.0
  %472 = vmatpush1.msra.mxu0 0.0
  %473 = vmatprep.subr.mxu0 0.0
  %474 = vmatpush1.msra.mxu0 0.0
  %475 = vmatprep.subr.mxu0 0.0
  %476 = vmatpush1.msra.mxu0 0.0
  %477 = vmatprep.subr.mxu0 0.0
  %478 = vmatpush1.msra.mxu0 0.0
  %479 = vmatprep.subr.mxu0 0.0
  %480 = vmatpush1.msra.mxu0 0.0
  %481 = vmatprep.subr.mxu0 0.0
  %482 = vmatpush1.msra.mxu0 0.0
  %483 = vmatprep.subr.mxu0 0.0
  %484 = vmatpush1.msra.mxu0 0.0
  %485 = vmatprep.subr.mxu0 0.0
  %486 = vmatpush1.msra.mxu0 0.0
  %487 = vmatprep.subr.mxu0 0.0
  %488 = vmatpush1.msra.mxu0 0.0
  %489 = vmatprep.subr.mxu0 0.0
  %490 = vmatpush1.msra.mxu0 0.0
  %491 = vmatprep.subr.mxu0 0.0
  %492 = vmatpush1.msra.mxu0 0.0
  %493 = vmatprep.subr.mxu0 0.0
  %494 = vmatpush1.msra.mxu0 0.0
  %495 = vmatprep.subr.mxu0 0.0
  %496 = vmatpush1.msra.mxu0 0.0
  %497 = vmatprep.subr.mxu0 0.0
  %498 = vmatpush1.msra.mxu0 0.0
  %499 = vmatprep.subr.mxu0 0.0
  %500 = vmatpush1.msra.mxu0 0.0
  %501 = vmatprep.subr.mxu0 0.0
  %502 = vmatpush1.msra.mxu0 0.0
  %503 = vmatprep.subr.mxu0 0.0
  %504 = vmatpush1.msra.mxu0 0.0
  %505 = vmatprep.subr.mxu0 0.0
  %506 = vmatpush1.msra.mxu0 0.0
  %507 = vmatprep.subr.mxu0 0.0
  %508 = vmatpush1.msra.mxu0 0.0
  %509 = vmatprep.subr.mxu0 0.0
  %510 = vmatpush1.msra.mxu0 0.0
  %511 = vmatprep.subr.mxu0 0.0
  %512 = vmatpush1.msra.mxu0 0.0
  %513 = vmatprep.subr.mxu0 0.0
  %514 = vmatpush1.msra.mxu0 0.0
  %515 = vmatprep.subr.mxu0 0.0
  %516 = vmatpush1.msra.mxu0 0.0
  %517 = vmatprep.subr.mxu0 0.0
  %518 = vmatpush1.msra.mxu0 0.0
  %519 = vmatprep.subr.mxu0 0.0
  %520 = vmatpush1.msra.mxu0 0.0
  %521 = vmatprep.subr.mxu0 0.0
  %522 = vmatpush1.msra.mxu0 0.0
  %523 = vmatprep.subr.mxu0 0.0
  %524 = vmatpush1.msra.mxu0 0.0
  %525 = vmatprep.subr.mxu0 0.0
  %526 = vmatpush1.msra.mxu0 0.0
  %527 = vmatprep.mubr.f32.mxu0 0.0
  %528 = vmatmul.mubr.f32.gmra.mrb[0].mxu0 %v440
  %v529 = vpop.f32.mrb[0].mxu0
  %v530 = vadd.f32 %v422, %v529
  %v531 = vpop.f32.mrb[0].mxu0
  %v532 = vadd.f32 %v426, %v531
  %533 = vmatprep.mubr.f32.mxu0 0.0
  %534 = vmatmul.mubr.f32.gmra.mrb[0].mxu0 %v443
  %v535 = vpop.f32.mrb[0].mxu0
  %v536 = vadd.f32 %v422, %v535
  %v537 = vpop.f32.mrb[0].mxu0
  %v538 = vadd.f32 %v426, %v537
  %539 = vmatprep.mubr.f32.mxu0 0.0
  %540 = vmatmul.mubr.f32.gmra.mrb[0].mxu0 %v446
  %v541 = vpop.f32.mrb[0].mxu0
  %v542 = vadd.f32 %v422, %v541
  %v543 = vpop.f32.mrb[0].mxu0
  %v544 = vadd.f32 %v426, %v543
  %545 = vmatprep.mubr.f32.mxu0 0.0
  %546 = vmatmul.mubr.f32.gmra.mrb[0].mxu0 %v449
  %v547 = vpop.f32.mrb[0].mxu0
  %v548 = vadd.f32 %v422, %v547
  %v549 = vpop.f32.mrb[0].mxu0
  %v550 = vadd.f32 %v426, %v549
  %551 = vmatprep.mubr.f32.mxu0 0.0
  %552 = vmatmul.mubr.f32.gmra.mrb[0].mxu0 %v452
  %v553 = vpop.f32.mrb[0].mxu0
  %v554 = vadd.f32 %v422, %v553
  %v555 = vpop.f32.mrb[0].mxu0
  %v556 = vadd.f32 %v426, %v555
  %557 = vmatprep.mubr.f32.mxu0 0.0
  %558 = vmatmul.mubr.f32.gmra.mrb[0].mxu0 %v455
  %v559 = vpop.f32.mrb[0].mxu0
  %v560 = vadd.f32 %v422, %v559
  %v561 = vpop.f32.mrb[0].mxu0
  %v562 = vadd.f32 %v426, %v561
  %563 = vmatprep.mubr.f32.mxu0 0.0
  %564 = vmatmul.mubr.f32.gmra.mrb[0].mxu0 %v458
  %v565 = vpop.f32.mrb[0].mxu0
  %v566 = vadd.f32 %v422, %v565
  %v567 = vpop.f32.mrb[0].mxu0
  %v568 = vadd.f32 %v426, %v567
  %569 = vmatprep.mubr.f32.mxu0 0.0
  %570 = vmatmul.mubr.f32.gmra.mrb[0].mxu0 %v461
  %v571 = vpop.f32.mrb[0].mxu0
  %v572 = vadd.f32 %v422, %v571
  %v573 = vpop.f32.mrb[0].mxu0
  %v574 = vadd.f32 %v426, %v573
  %575 = vdwg.mxu0
  %576 = vmatprep.subr.mxu0 %v412
  %577 = vmatpush1.msra.mxu0 %v411
  %578 = vmatprep.subr.mxu0 %v416
  %579 = vmatpush1.msra.mxu0 %v415
  %580 = vmatprep.subr.mxu0 0.0
  %581 = vmatpush1.msra.mxu0 0.0
  %582 = vmatprep.subr.mxu0 0.0
  %583 = vmatpush1.msra.mxu0 0.0
  %584 = vmatprep.subr.mxu0 0.0
  %585 = vmatpush1.msra.mxu0 0.0
  %586 = vmatprep.subr.mxu0 0.0
  %587 = vmatpush1.msra.mxu0 0.0
  %588 = vmatprep.subr.mxu0 0.0
  %589 = vmatpush1.msra.mxu0 0.0
  %590 = vmatprep.subr.mxu0 0.0
  %591 = vmatpush1.msra.mxu0 0.0
  %592 = vmatprep.subr.mxu0 0.0
  %593 = vmatpush1.msra.mxu0 0.0
  %594 = vmatprep.subr.mxu0 0.0
  %595 = vmatpush1.msra.mxu0 0.0
  %596 = vmatprep.subr.mxu0 0.0
  %597 = vmatpush1.msra.mxu0 0.0
  %598 = vmatprep.subr.mxu0 0.0
  %599 = vmatpush1.msra.mxu0 0.0
  %600 = vmatprep.subr.mxu0 0.0
  %601 = vmatpush1.msra.mxu0 0.0
  %602 = vmatprep.subr.mxu0 0.0
  %603 = vmatpush1.msra.mxu0 0.0
  %604 = vmatprep.subr.mxu0 0.0
  %605 = vmatpush1.msra.mxu0 0.0
  %606 = vmatprep.subr.mxu0 0.0
  %607 = vmatpush1.msra.mxu0 0.0
  %608 = vmatprep.subr.mxu0 0.0
  %609 = vmatpush1.msra.mxu0 0.0
  %610 = vmatprep.subr.mxu0 0.0
  %611 = vmatpush1.msra.mxu0 0.0
  %612 = vmatprep.subr.mxu0 0.0
  %613 = vmatpush1.msra.mxu0 0.0
  %614 = vmatprep.subr.mxu0 0.0
  %615 = vmatpush1.msra.mxu0 0.0
  %616 = vmatprep.subr.mxu0 0.0
  %617 = vmatpush1.msra.mxu0 0.0
  %618 = vmatprep.subr.mxu0 0.0
  %619 = vmatpush1.msra.mxu0 0.0
  %620 = vmatprep.subr.mxu0 0.0
  %621 = vmatpush1.msra.mxu0 0.0
  %622 = vmatprep.subr.mxu0 0.0
  %623 = vmatpush1.msra.mxu0 0.0
  %624 = vmatprep.subr.mxu0 0.0
  %625 = vmatpush1.msra.mxu0 0.0
  %626 = vmatprep.subr.mxu0 0.0
  %627 = vmatpush1.msra.mxu0 0.0
  %628 = vmatprep.subr.mxu0 0.0
  %629 = vmatpush1.msra.mxu0 0.0
  %630 = vmatprep.subr.mxu0 0.0
  %631 = vmatpush1.msra.mxu0 0.0
  %632 = vmatprep.subr.mxu0 0.0
  %633 = vmatpush1.msra.mxu0 0.0
  %634 = vmatprep.subr.mxu0 0.0
  %635 = vmatpush1.msra.mxu0 0.0
  %636 = vmatprep.subr.mxu0 0.0
  %637 = vmatpush1.msra.mxu0 0.0
  %638 = vmatprep.subr.mxu0 0.0
  %639 = vmatpush1.msra.mxu0 0.0
  %640 = vmatprep.mubr.f32.mxu0 0.0
  %641 = vmatmul.mubr.f32.gmra.mrb[0].mxu0 %v440
  %v642 = vpop.f32.mrb[0].mxu0
  %v643 = vadd.f32 %v430, %v642
  %v644 = vpop.f32.mrb[0].mxu0
  %v645 = vadd.f32 %v434, %v644
  %646 = vmatprep.mubr.f32.mxu0 0.0
  %647 = vmatmul.mubr.f32.gmra.mrb[0].mxu0 %v443
  %v648 = vpop.f32.mrb[0].mxu0
  %v649 = vadd.f32 %v430, %v648
  %v650 = vpop.f32.mrb[0].mxu0
  %v651 = vadd.f32 %v434, %v650
  %652 = vmatprep.mubr.f32.mxu0 0.0
  %653 = vmatmul.mubr.f32.gmra.mrb[0].mxu0 %v446
  %v654 = vpop.f32.mrb[0].mxu0
  %v655 = vadd.f32 %v430, %v654
  %v656 = vpop.f32.mrb[0].mxu0
  %v657 = vadd.f32 %v434, %v656
  %658 = vmatprep.mubr.f32.mxu0 0.0
  %659 = vmatmul.mubr.f32.gmra.mrb[0].mxu0 %v449
  %v660 = vpop.f32.mrb[0].mxu0
  %v661 = vadd.f32 %v430, %v660
  %v662 = vpop.f32.mrb[0].mxu0
  %v663 = vadd.f32 %v434, %v662
  %664 = vmatprep.mubr.f32.mxu0 0.0
  %665 = vmatmul.mubr.f32.gmra.mrb[0].mxu0 %v452
  %v666 = vpop.f32.mrb[0].mxu0
  %v667 = vadd.f32 %v430, %v666
  %v668 = vpop.f32.mrb[0].mxu0
  %v669 = vadd.f32 %v434, %v668
  %670 = vmatprep.mubr.f32.mxu0 0.0
  %671 = vmatmul.mubr.f32.gmra.mrb[0].mxu0 %v455
  %v672 = vpop.f32.mrb[0].mxu0
  %v673 = vadd.f32 %v430, %v672
  %v674 = vpop.f32.mrb[0].mxu0
  %v675 = vadd.f32 %v434, %v674
  %676 = vmatprep.mubr.f32.mxu0 0.0
  %677 = vmatmul.mubr.f32.gmra.mrb[0].mxu0 %v458
  %v678 = vpop.f32.mrb[0].mxu0
  %v679 = vadd.f32 %v430, %v678
  %v680 = vpop.f32.mrb[0].mxu0
  %v681 = vadd.f32 %v434, %v680
  %682 = vmatprep.mubr.f32.mxu0 0.0
  %683 = vmatmul.mubr.f32.gmra.mrb[0].mxu0 %v461
  %v684 = vpop.f32.mrb[0].mxu0
  %v685 = vadd.f32 %v430, %v684
  %v686 = vpop.f32.mrb[0].mxu0
  %v687 = vadd.f32 %v434, %v686
  %688 = vdwg.mxu0
  %689 = vst [vmem:[#allocation3] sm:$0xff] %v530
  %690 = vst [vmem:[#allocation3 + $0x8] sm:$0xff] %v532
  %691 = vst [vmem:[#allocation3 + $0x10] sm:$0xff] %v643
  %692 = vst [vmem:[#allocation3 + $0x18] sm:$0xff] %v645
  %693 = vst [vmem:[#allocation3 + $0x20] sm:$0xff] %v536
  %694 = vst [vmem:[#allocation3 + $0x28] sm:$0xff] %v538
  %695 = vst [vmem:[#allocation3 + $0x30] sm:$0xff] %v649
  %696 = vst [vmem:[#allocation3 + $0x38] sm:$0xff] %v651
  %697 = vst [vmem:[#allocation3 + $0x40] sm:$0xff] %v542
  %698 = vst [vmem:[#allocation3 + $0x48] sm:$0xff] %v544
  %699 = vst [vmem:[#allocation3 + $0x50] sm:$0xff] %v655
  %700 = vst [vmem:[#allocation3 + $0x58] sm:$0xff] %v657
  %701 = vst [vmem:[#allocation3 + $0x60] sm:$0xff] %v548
  %702 = vst [vmem:[#allocation3 + $0x68] sm:$0xff] %v550
  %703 = vst [vmem:[#allocation3 + $0x70] sm:$0xff] %v661
  %704 = vst [vmem:[#allocation3 + $0x78] sm:$0xff] %v663
  %705 = vst [vmem:[#allocation3 + $0x80] sm:$0xff] %v554
  %706 = vst [vmem:[#allocation3 + $0x88] sm:$0xff] %v556
  %707 = vst [vmem:[#allocation3 + $0x90] sm:$0xff] %v667
  %708 = vst [vmem:[#allocation3 + $0x98] sm:$0xff] %v669
  %709 = vst [vmem:[#allocation3 + $0xa0] sm:$0xff] %v560
  %710 = vst [vmem:[#allocation3 + $0xa8] sm:$0xff] %v562
  %711 = vst [vmem:[#allocation3 + $0xb0] sm:$0xff] %v673
  %712 = vst [vmem:[#allocation3 + $0xb8] sm:$0xff] %v675
  %713 = vst [vmem:[#allocation3 + $0xc0] sm:$0xff] %v566
  %714 = vst [vmem:[#allocation3 + $0xc8] sm:$0xff] %v568
  %715 = vst [vmem:[#allocation3 + $0xd0] sm:$0xff] %v679
  %716 = vst [vmem:[#allocation3 + $0xd8] sm:$0xff] %v681
  %717 = vst [vmem:[#allocation3 + $0xe0] sm:$0xff] %v572
  %718 = vst [vmem:[#allocation3 + $0xe8] sm:$0xff] %v574
  %719 = vst [vmem:[#allocation3 + $0xf0] sm:$0xff] %v685
  %720 = vst [vmem:[#allocation3 + $0xf8] sm:$0xff] %v687
  %v721 = vld [vmem:[%s5] sm:$0xff]
  %v722 = vld [vmem:[%s5 + $0x8] sm:$0xff]
  %v723 = vld [vmem:[%s5 + $0x10] sm:$0xff]
  %v724 = vld [vmem:[%s5 + $0x18] sm:$0xff]
  %v725 = vld [vmem:[%s5 + $0x20] sm:$0xff]
  %v726 = vld [vmem:[%s5 + $0x28] sm:$0xff]
  %v727 = vld [vmem:[%s5 + $0x30] sm:$0xff]
  %v728 = vld [vmem:[%s5 + $0x38] sm:$0xff]
  %v729 = vld [vmem:[%s5 + $0x40] sm:$0xff]
  %v730 = vld [vmem:[%s5 + $0x48] sm:$0xff]
  %v731 = vld [vmem:[%s5 + $0x50] sm:$0xff]
  %v732 = vld [vmem:[%s5 + $0x58] sm:$0xff]
  %v733 = vld [vmem:[%s5 + $0x60] sm:$0xff]
  %v734 = vld [vmem:[%s5 + $0x68] sm:$0xff]
  %v735 = vld [vmem:[%s5 + $0x70] sm:$0xff]
  %v736 = vld [vmem:[%s5 + $0x78] sm:$0xff]
  %v737 = vld [vmem:[%s5 + $0x80] sm:$0xff]
  %v738 = vld [vmem:[%s5 + $0x88] sm:$0xff]
  %v739 = vld [vmem:[%s5 + $0x90] sm:$0xff]
  %v740 = vld [vmem:[%s5 + $0x98] sm:$0xff]
  %v741 = vld [vmem:[%s5 + $0xa0] sm:$0xff]
  %v742 = vld [vmem:[%s5 + $0xa8] sm:$0xff]
  %v743 = vld [vmem:[%s5 + $0xb0] sm:$0xff]
  %v744 = vld [vmem:[%s5 + $0xb8] sm:$0xff]
  %v745 = vld [vmem:[%s5 + $0xc0] sm:$0xff]
  %v746 = vld [vmem:[%s5 + $0xc8] sm:$0xff]
  %v747 = vld [vmem:[%s5 + $0xd0] sm:$0xff]
  %v748 = vld [vmem:[%s5 + $0xd8] sm:$0xff]
  %v749 = vld [vmem:[%s5 + $0xe0] sm:$0xff]
  %v750 = vld [vmem:[%s5 + $0xe8] sm:$0xff]
  %v751 = vld [vmem:[%s5 + $0xf0] sm:$0xff]
  %v752 = vld [vmem:[%s5 + $0xf8] sm:$0xff]
  %v753 = vld [vmem:[%s5 + $0x100] sm:$0xff]
  %v754 = vld [vmem:[%s5 + $0x108] sm:$0xff]
  %v755 = vld [vmem:[%s5 + $0x110] sm:$0xff]
  %v756 = vld [vmem:[%s5 + $0x118] sm:$0xff]
  %v757 = vld [vmem:[%s5 + $0x120] sm:$0xff]
  %v758 = vld [vmem:[%s5 + $0x128] sm:$0xff]
  %v759 = vld [vmem:[%s5 + $0x130] sm:$0xff]
  %v760 = vld [vmem:[%s5 + $0x138] sm:$0xff]
  %v761 = vld [vmem:[%s5 + $0x140] sm:$0xff]
  %v762 = vld [vmem:[%s5 + $0x148] sm:$0xff]
  %v763 = vld [vmem:[%s5 + $0x150] sm:$0xff]
  %v764 = vld [vmem:[%s5 + $0x158] sm:$0xff]
  %v765 = vld [vmem:[%s5 + $0x160] sm:$0xff]
  %v766 = vld [vmem:[%s5 + $0x168] sm:$0xff]
  %v767 = vld [vmem:[%s5 + $0x170] sm:$0xff]
  %v768 = vld [vmem:[%s5 + $0x178] sm:$0xff]
  %v769 = vld [vmem:[%s5 + $0x180] sm:$0xff]
  %v770 = vld [vmem:[%s5 + $0x188] sm:$0xff]
  %v771 = vld [vmem:[%s5 + $0x190] sm:$0xff]
  %v772 = vld [vmem:[%s5 + $0x198] sm:$0xff]
  %v773 = vld [vmem:[%s5 + $0x1a0] sm:$0xff]
  %v774 = vld [vmem:[%s5 + $0x1a8] sm:$0xff]
  %v775 = vld [vmem:[%s5 + $0x1b0] sm:$0xff]
  %v776 = vld [vmem:[%s5 + $0x1b8] sm:$0xff]
  %v777 = vld [vmem:[%s5 + $0x1c0] sm:$0xff]
  %v778 = vld [vmem:[%s5 + $0x1c8] sm:$0xff]
  %v779 = vld [vmem:[%s5 + $0x1d0] sm:$0xff]
  %v780 = vld [vmem:[%s5 + $0x1d8] sm:$0xff]
  %v781 = vld [vmem:[%s5 + $0x1e0] sm:$0xff]
  %v782 = vld [vmem:[%s5 + $0x1e8] sm:$0xff]
  %v783 = vld [vmem:[%s5 + $0x1f0] sm:$0xff]
  %v784 = vld [vmem:[%s5 + $0x1f8] sm:$0xff]
  %v785 = vld [vmem:[%s6] sm:$0xff]
  %v786 = vld [vmem:[%s6 + $0x8] sm:$0xff]
  %v787 = vld [vmem:[%s6 + $0x10] sm:$0xff]
  %v788 = vld [vmem:[%s6 + $0x18] sm:$0xff]
  %v789 = vld [vmem:[%s6 + $0x20] sm:$0xff]
  %v790 = vld [vmem:[%s6 + $0x28] sm:$0xff]
  %v791 = vld [vmem:[%s6 + $0x30] sm:$0xff]
  %v792 = vld [vmem:[%s6 + $0x38] sm:$0xff]
  %v793 = vld [vmem:[%s6 + $0x40] sm:$0xff]
  %v794 = vld [vmem:[%s6 + $0x48] sm:$0xff]
  %v795 = vld [vmem:[%s6 + $0x50] sm:$0xff]
  %v796 = vld [vmem:[%s6 + $0x58] sm:$0xff]
  %v797 = vld [vmem:[%s6 + $0x60] sm:$0xff]
  %v798 = vld [vmem:[%s6 + $0x68] sm:$0xff]
  %v799 = vld [vmem:[%s6 + $0x70] sm:$0xff]
  %v800 = vld [vmem:[%s6 + $0x78] sm:$0xff]
  %v801 = vld [vmem:[%s6 + $0x80] sm:$0xff]
  %v802 = vld [vmem:[%s6 + $0x88] sm:$0xff]
  %v803 = vld [vmem:[%s6 + $0x90] sm:$0xff]
  %v804 = vld [vmem:[%s6 + $0x98] sm:$0xff]
  %v805 = vld [vmem:[%s6 + $0xa0] sm:$0xff]
  %v806 = vld [vmem:[%s6 + $0xa8] sm:$0xff]
  %v807 = vld [vmem:[%s6 + $0xb0] sm:$0xff]
  %v808 = vld [vmem:[%s6 + $0xb8] sm:$0xff]
  %v809 = vld [vmem:[%s6 + $0xc0] sm:$0xff]
  %v810 = vld [vmem:[%s6 + $0xc8] sm:$0xff]
  %v811 = vld [vmem:[%s6 + $0xd0] sm:$0xff]
  %v812 = vld [vmem:[%s6 + $0xd8] sm:$0xff]
  %v813 = vld [vmem:[%s6 + $0xe0] sm:$0xff]
  %v814 = vld [vmem:[%s6 + $0xe8] sm:$0xff]
  %v815 = vld [vmem:[%s6 + $0xf0] sm:$0xff]
  %v816 = vld [vmem:[%s6 + $0xf8] sm:$0xff]
  %v817 = vld [vmem:[%s6 + $0x100] sm:$0xff]
  %v818 = vld [vmem:[%s6 + $0x108] sm:$0xff]
  %v819 = vld [vmem:[%s6 + $0x110] sm:$0xff]
  %v820 = vld [vmem:[%s6 + $0x118] sm:$0xff]
  %v821 = vld [vmem:[%s6 + $0x120] sm:$0xff]
  %v822 = vld [vmem:[%s6 + $0x128] sm:$0xff]
  %v823 = vld [vmem:[%s6 + $0x130] sm:$0xff]
  %v824 = vld [vmem:[%s6 + $0x138] sm:$0xff]
  %v825 = vld [vmem:[%s6 + $0x140] sm:$0xff]
  %v826 = vld [vmem:[%s6 + $0x148] sm:$0xff]
  %v827 = vld [vmem:[%s6 + $0x150] sm:$0xff]
  %v828 = vld [vmem:[%s6 + $0x158] sm:$0xff]
  %v829 = vld [vmem:[%s6 + $0x160] sm:$0xff]
  %v830 = vld [vmem:[%s6 + $0x168] sm:$0xff]
  %v831 = vld [vmem:[%s6 + $0x170] sm:$0xff]
  %v832 = vld [vmem:[%s6 + $0x178] sm:$0xff]
  %v833 = vld [vmem:[%s6 + $0x180] sm:$0xff]
  %v834 = vld [vmem:[%s6 + $0x188] sm:$0xff]
  %v835 = vld [vmem:[%s6 + $0x190] sm:$0xff]
  %v836 = vld [vmem:[%s6 + $0x198] sm:$0xff]
  %v837 = vld [vmem:[%s6 + $0x1a0] sm:$0xff]
  %v838 = vld [vmem:[%s6 + $0x1a8] sm:$0xff]
  %v839 = vld [vmem:[%s6 + $0x1b0] sm:$0xff]
  %v840 = vld [vmem:[%s6 + $0x1b8] sm:$0xff]
  %v841 = vld [vmem:[%s6 + $0x1c0] sm:$0xff]
  %v842 = vld [vmem:[%s6 + $0x1c8] sm:$0xff]
  %v843 = vld [vmem:[%s6 + $0x1d0] sm:$0xff]
  %v844 = vld [vmem:[%s6 + $0x1d8] sm:$0xff]
  %v845 = vld [vmem:[%s6 + $0x1e0] sm:$0xff]
  %v846 = vld [vmem:[%s6 + $0x1e8] sm:$0xff]
  %v847 = vld [vmem:[%s6 + $0x1f0] sm:$0xff]
  %v848 = vld [vmem:[%s6 + $0x1f8] sm:$0xff]
  %v849 = vld [vmem:[%s2] sm:$0xff]
  %s850 = smul.u32 0, 8
  %s851 = ssub.s32 0, 0
  %s852 = smul.u32 %s851, 8
  %v853 = vld [vmem:[#allocation4] sm:$0xff]
  %v854 = vld [vmem:[#allocation5] sm:$0xff]
  %v855 = vld [vmem:[#allocation6] sm:$0xff]
  %v856 = vld [vmem:[#allocation7] sm:$0xff]
  %s857 = smul.u32 0, 4
  %s858 = smul.addr %s857, 8
  %s859 = scalar_lea.vmem [#allocation2], %s858
  %v860 = vld [vmem:[%s859] sm:$0xff]
  %v861 = vld [vmem:[%s859 + $0x8] sm:$0xff]
  %v862 = vld [vmem:[%s859 + $0x10] sm:$0xff]
  %v863 = vld [vmem:[%s859 + $0x18] sm:$0xff]
  %864 = vmatprep.subr.mxu0 %v722
  %865 = vmatpush1.msra.mxu0 %v721
  %866 = vmatprep.subr.mxu0 %v726
  %867 = vmatpush1.msra.mxu0 %v725
  %868 = vmatprep.subr.mxu0 %v730
  %869 = vmatpush1.msra.mxu0 %v729
  %870 = vmatprep.subr.mxu0 %v734
  %871 = vmatpush1.msra.mxu0 %v733
  %872 = vmatprep.subr.mxu0 %v738
  %873 = vmatpush1.msra.mxu0 %v737
  %874 = vmatprep.subr.mxu0 %v742
  %875 = vmatpush1.msra.mxu0 %v741
  %876 = vmatprep.subr.mxu0 %v746
  %877 = vmatpush1.msra.mxu0 %v745
  %878 = vmatprep.subr.mxu0 %v750
  %879 = vmatpush1.msra.mxu0 %v749
  %880 = vmatprep.subr.mxu0 %v754
  %881 = vmatpush1.msra.mxu0 %v753
  %882 = vmatprep.subr.mxu0 %v758
  %883 = vmatpush1.msra.mxu0 %v757
  %884 = vmatprep.subr.mxu0 %v762
  %885 = vmatpush1.msra.mxu0 %v761
  %886 = vmatprep.subr.mxu0 %v766
  %887 = vmatpush1.msra.mxu0 %v765
  %888 = vmatprep.subr.mxu0 %v770
  %889 = vmatpush1.msra.mxu0 %v769
  %890 = vmatprep.subr.mxu0 %v774
  %891 = vmatpush1.msra.mxu0 %v773
  %892 = vmatprep.subr.mxu0 %v778
  %893 = vmatpush1.msra.mxu0 %v777
  %894 = vmatprep.subr.mxu0 %v782
  %895 = vmatpush1.msra.mxu0 %v781
  %896 = vmatprep.subr.mxu0 0.0
  %897 = vmatpush1.msra.mxu0 0.0
  %898 = vmatprep.subr.mxu0 0.0
  %899 = vmatpush1.msra.mxu0 0.0
  %900 = vmatprep.subr.mxu0 0.0
  %901 = vmatpush1.msra.mxu0 0.0
  %902 = vmatprep.subr.mxu0 0.0
  %903 = vmatpush1.msra.mxu0 0.0
  %904 = vmatprep.subr.mxu0 0.0
  %905 = vmatpush1.msra.mxu0 0.0
  %906 = vmatprep.subr.mxu0 0.0
  %907 = vmatpush1.msra.mxu0 0.0
  %908 = vmatprep.subr.mxu0 0.0
  %909 = vmatpush1.msra.mxu0 0.0
  %910 = vmatprep.subr.mxu0 0.0
  %911 = vmatpush1.msra.mxu0 0.0
  %912 = vmatprep.subr.mxu0 0.0
  %913 = vmatpush1.msra.mxu0 0.0
  %914 = vmatprep.subr.mxu0 0.0
  %915 = vmatpush1.msra.mxu0 0.0
  %916 = vmatprep.subr.mxu0 0.0
  %917 = vmatpush1.msra.mxu0 0.0
  %918 = vmatprep.subr.mxu0 0.0
  %919 = vmatpush1.msra.mxu0 0.0
  %920 = vmatprep.subr.mxu0 0.0
  %921 = vmatpush1.msra.mxu0 0.0
  %922 = vmatprep.subr.mxu0 0.0
  %923 = vmatpush1.msra.mxu0 0.0
  %924 = vmatprep.subr.mxu0 0.0
  %925 = vmatpush1.msra.mxu0 0.0
  %926 = vmatprep.subr.mxu0 0.0
  %927 = vmatpush1.msra.mxu0 0.0
  %928 = vmatprep.mubr.f32.mxu0 0.0
  %929 = vmatmul.mubr.f32.gmra.mrb[0].mxu0 %v853
  %v930 = vpop.f32.mrb[0].mxu0
  %v931 = vadd.f32 0.0, %v930
  %v932 = vpop.f32.mrb[0].mxu0
  %v933 = vadd.f32 0.0, %v932
  %934 = vdwg.mxu0
  %935 = vmatprep.subr.mxu0 %v724
  %936 = vmatpush1.msra.mxu0 %v723
  %937 = vmatprep.subr.mxu0 %v728
  %938 = vmatpush1.msra.mxu0 %v727
  %939 = vmatprep.subr.mxu0 %v732
  %940 = vmatpush1.msra.mxu0 %v731
  %941 = vmatprep.subr.mxu0 %v736
  %942 = vmatpush1.msra.mxu0 %v735
  %943 = vmatprep.subr.mxu0 %v740
  %944 = vmatpush1.msra.mxu0 %v739
  %945 = vmatprep.subr.mxu0 %v744
  %946 = vmatpush1.msra.mxu0 %v743
  %947 = vmatprep.subr.mxu0 %v748
  %948 = vmatpush1.msra.mxu0 %v747
  %949 = vmatprep.subr.mxu0 %v752
  %950 = vmatpush1.msra.mxu0 %v751
  %951 = vmatprep.subr.mxu0 %v756
  %952 = vmatpush1.msra.mxu0 %v755
  %953 = vmatprep.subr.mxu0 %v760
  %954 = vmatpush1.msra.mxu0 %v759
  %955 = vmatprep.subr.mxu0 %v764
  %956 = vmatpush1.msra.mxu0 %v763
  %957 = vmatprep.subr.mxu0 %v768
  %958 = vmatpush1.msra.mxu0 %v767
  %959 = vmatprep.subr.mxu0 %v772
  %960 = vmatpush1.msra.mxu0 %v771
  %961 = vmatprep.subr.mxu0 %v776
  %962 = vmatpush1.msra.mxu0 %v775
  %963 = vmatprep.subr.mxu0 %v780
  %964 = vmatpush1.msra.mxu0 %v779
  %965 = vmatprep.subr.mxu0 %v784
  %966 = vmatpush1.msra.mxu0 %v783
  %967 = vmatprep.subr.mxu0 0.0
  %968 = vmatpush1.msra.mxu0 0.0
  %969 = vmatprep.subr.mxu0 0.0
  %970 = vmatpush1.msra.mxu0 0.0
  %971 = vmatprep.subr.mxu0 0.0
  %972 = vmatpush1.msra.mxu0 0.0
  %973 = vmatprep.subr.mxu0 0.0
  %974 = vmatpush1.msra.mxu0 0.0
  %975 = vmatprep.subr.mxu0 0.0
  %976 = vmatpush1.msra.mxu0 0.0
  %977 = vmatprep.subr.mxu0 0.0
  %978 = vmatpush1.msra.mxu0 0.0
  %979 = vmatprep.subr.mxu0 0.0
  %980 = vmatpush1.msra.mxu0 0.0
  %981 = vmatprep.subr.mxu0 0.0
  %982 = vmatpush1.msra.mxu0 0.0
  %983 = vmatprep.subr.mxu0 0.0
  %984 = vmatpush1.msra.mxu0 0.0
  %985 = vmatprep.subr.mxu0 0.0
  %986 = vmatpush1.msra.mxu0 0.0
  %987 = vmatprep.subr.mxu0 0.0
  %988 = vmatpush1.msra.mxu0 0.0
  %989 = vmatprep.subr.mxu0 0.0
  %990 = vmatpush1.msra.mxu0 0.0
  %991 = vmatprep.subr.mxu0 0.0
  %992 = vmatpush1.msra.mxu0 0.0
  %993 = vmatprep.subr.mxu0 0.0
  %994 = vmatpush1.msra.mxu0 0.0
  %995 = vmatprep.subr.mxu0 0.0
  %996 = vmatpush1.msra.mxu0 0.0
  %997 = vmatprep.subr.mxu0 0.0
  %998 = vmatpush1.msra.mxu0 0.0
  %999 = vmatprep.mubr.f32.mxu0 0.0
  %1000 = vmatmul.mubr.f32.gmra.mrb[0].mxu0 %v853
  %v1001 = vpop.f32.mrb[0].mxu0
  %v1002 = vadd.f32 0.0, %v1001
  %v1003 = vpop.f32.mrb[0].mxu0
  %v1004 = vadd.f32 0.0, %v1003
  %1005 = vdwg.mxu0
  %v1006 = vadd.f32 %v860, %v931
  %v1007 = vadd.f32 %v861, %v933
  %v1008 = vadd.f32 %v862, %v1002
  %v1009 = vadd.f32 %v863, %v1004
  %v1010 = vxor.u32 %v1006, 2147483648
  %v1011 = vmul.f32 %v1010, 1.442695
  %v1012 = vpow.pop %v1011
  %v1013 = vadd.f32 %v1012, 1.0
  %v1014 = vrcp.pop %v1013
  %v1015 = vmul.f32 1.0, %v1014
  %v1016 = vxor.u32 %v1007, 2147483648
  %v1017 = vmul.f32 %v1016, 1.442695
  %v1018 = vpow.pop %v1017
  %v1019 = vadd.f32 %v1018, 1.0
  %v1020 = vrcp.pop %v1019
  %v1021 = vmul.f32 1.0, %v1020
  %v1022 = vtanh.pop %v1008
  %v1023 = vxor.u32 %v1009, 2147483648
  %v1024 = vmul.f32 %v1023, 1.442695
  %v1025 = vpow.pop %v1024
  %v1026 = vadd.f32 %v1025, 1.0
  %v1027 = vrcp.pop %v1026
  %v1028 = vmul.f32 1.0, %v1027
  %v1029 = vmul.f32 %v1021, %v854
  %v1030 = vmul.f32 %v1015, %v1022
  %v1031 = vadd.f32 %v1029, %v1030
  %v1032 = vtanh.pop %v1031
  %v1033 = vmul.f32 %v1028, %v1032
  %v1034 = vstv %s850
  %vm1035 = vcmp.lt.s32.totalorder %v1034, %v849
  %v1036 = vsel %vm1035, %v1033, 0.0
  %1037 = vst [vmem:[%s9] sm:$0xff] %v1036
  %v1038 = vsel %vm1035, %v1033, %v853
  %v1039 = vsel %vm1035, %v1031, %v854
  %s1040 = smul.u32 7, 4
  %s1041 = smul.addr %s1040, 8
  %s1042 = scalar_lea.vmem [#allocation3], %s1041
  %v1043 = vld [vmem:[%s1042] sm:$0xff]
  %v1044 = vld [vmem:[%s1042 + $0x8] sm:$0xff]
  %v1045 = vld [vmem:[%s1042 + $0x10] sm:$0xff]
  %v1046 = vld [vmem:[%s1042 + $0x18] sm:$0xff]
  %1047 = vmatprep.subr.mxu0 %v786
  %1048 = vmatpush1.msra.mxu0 %v785
  %1049 = vmatprep.subr.mxu0 %v790
  %1050 = vmatpush1.msra.mxu0 %v789
  %1051 = vmatprep.subr.mxu0 %v794
  %1052 = vmatpush1.msra.mxu0 %v793
  %1053 = vmatprep.subr.mxu0 %v798
  %1054 = vmatpush1.msra.mxu0 %v797
  %1055 = vmatprep.subr.mxu0 %v802
  %1056 = vmatpush1.msra.mxu0 %v801
  %1057 = vmatprep.subr.mxu0 %v806
  %1058 = vmatpush1.msra.mxu0 %v805
  %1059 = vmatprep.subr.mxu0 %v810
  %1060 = vmatpush1.msra.mxu0 %v809
  %1061 = vmatprep.subr.mxu0 %v814
  %1062 = vmatpush1.msra.mxu0 %v813
  %1063 = vmatprep.subr.mxu0 %v818
  %1064 = vmatpush1.msra.mxu0 %v817
  %1065 = vmatprep.subr.mxu0 %v822
  %1066 = vmatpush1.msra.mxu0 %v821
  %1067 = vmatprep.subr.mxu0 %v826
  %1068 = vmatpush1.msra.mxu0 %v825
  %1069 = vmatprep.subr.mxu0 %v830
  %1070 = vmatpush1.msra.mxu0 %v829
  %1071 = vmatprep.subr.mxu0 %v834
  %1072 = vmatpush1.msra.mxu0 %v833
  %1073 = vmatprep.subr.mxu0 %v838
  %1074 = vmatpush1.msra.mxu0 %v837
  %1075 = vmatprep.subr.mxu0 %v842
  %1076 = vmatpush1.msra.mxu0 %v841
  %1077 = vmatprep.subr.mxu0 %v846
  %1078 = vmatpush1.msra.mxu0 %v845
  %1079 = vmatprep.subr.mxu0 0.0
  %1080 = vmatpush1.msra.mxu0 0.0
  %1081 = vmatprep.subr.mxu0 0.0
  %1082 = vmatpush1.msra.mxu0 0.0
  %1083 = vmatprep.subr.mxu0 0.0
  %1084 = vmatpush1.msra.mxu0 0.0
  %1085 = vmatprep.subr.mxu0 0.0
  %1086 = vmatpush1.msra.mxu0 0.0
  %1087 = vmatprep.subr.mxu0 0.0
  %1088 = vmatpush1.msra.mxu0 0.0
  %1089 = vmatprep.subr.mxu0 0.0
  %1090 = vmatpush1.msra.mxu0 0.0
  %1091 = vmatprep.subr.mxu0 0.0
  %1092 = vmatpush1.msra.mxu0 0.0
  %1093 = vmatprep.subr.mxu0 0.0
  %1094 = vmatpush1.msra.mxu0 0.0
  %1095 = vmatprep.subr.mxu0 0.0
  %1096 = vmatpush1.msra.mxu0 0.0
  %1097 = vmatprep.subr.mxu0 0.0
  %1098 = vmatpush1.msra.mxu0 0.0
  %1099 = vmatprep.subr.mxu0 0.0
  %1100 = vmatpush1.msra.mxu0 0.0
  %1101 = vmatprep.subr.mxu0 0.0
  %1102 = vmatpush1.msra.mxu0 0.0
  %1103 = vmatprep.subr.mxu0 0.0
  %1104 = vmatpush1.msra.mxu0 0.0
  %1105 = vmatprep.subr.mxu0 0.0
  %1106 = vmatpush1.msra.mxu0 0.0
  %1107 = vmatprep.subr.mxu0 0.0
  %1108 = vmatpush1.msra.mxu0 0.0
  %1109 = vmatprep.subr.mxu0 0.0
  %1110 = vmatpush1.msra.mxu0 0.0
  %1111 = vmatprep.mubr.f32.mxu0 0.0
  %1112 = vmatmul.mubr.f32.gmra.mrb[0].mxu0 %v855
  %v1113 = vpop.f32.mrb[0].mxu0
  %v1114 = vadd.f32 0.0, %v1113
  %v1115 = vpop.f32.mrb[0].mxu0
  %v1116 = vadd.f32 0.0, %v1115
  %1117 = vdwg.mxu0
  %1118 = vmatprep.subr.mxu0 %v788
  %1119 = vmatpush1.msra.mxu0 %v787
  %1120 = vmatprep.subr.mxu0 %v792
  %1121 = vmatpush1.msra.mxu0 %v791
  %1122 = vmatprep.subr.mxu0 %v796
  %1123 = vmatpush1.msra.mxu0 %v795
  %1124 = vmatprep.subr.mxu0 %v800
  %1125 = vmatpush1.msra.mxu0 %v799
  %1126 = vmatprep.subr.mxu0 %v804
  %1127 = vmatpush1.msra.mxu0 %v803
  %1128 = vmatprep.subr.mxu0 %v808
  %1129 = vmatpush1.msra.mxu0 %v807
  %1130 = vmatprep.subr.mxu0 %v812
  %1131 = vmatpush1.msra.mxu0 %v811
  %1132 = vmatprep.subr.mxu0 %v816
  %1133 = vmatpush1.msra.mxu0 %v815
  %1134 = vmatprep.subr.mxu0 %v820
  %1135 = vmatpush1.msra.mxu0 %v819
  %1136 = vmatprep.subr.mxu0 %v824
  %1137 = vmatpush1.msra.mxu0 %v823
  %1138 = vmatprep.subr.mxu0 %v828
  %1139 = vmatpush1.msra.mxu0 %v827
  %1140 = vmatprep.subr.mxu0 %v832
  %1141 = vmatpush1.msra.mxu0 %v831
  %1142 = vmatprep.subr.mxu0 %v836
  %1143 = vmatpush1.msra.mxu0 %v835
  %1144 = vmatprep.subr.mxu0 %v840
  %1145 = vmatpush1.msra.mxu0 %v839
  %1146 = vmatprep.subr.mxu0 %v844
  %1147 = vmatpush1.msra.mxu0 %v843
  %1148 = vmatprep.subr.mxu0 %v848
  %1149 = vmatpush1.msra.mxu0 %v847
  %1150 = vmatprep.subr.mxu0 0.0
  %1151 = vmatpush1.msra.mxu0 0.0
  %1152 = vmatprep.subr.mxu0 0.0
  %1153 = vmatpush1.msra.mxu0 0.0
  %1154 = vmatprep.subr.mxu0 0.0
  %1155 = vmatpush1.msra.mxu0 0.0
  %1156 = vmatprep.subr.mxu0 0.0
  %1157 = vmatpush1.msra.mxu0 0.0
  %1158 = vmatprep.subr.mxu0 0.0
  %1159 = vmatpush1.msra.mxu0 0.0
  %1160 = vmatprep.subr.mxu0 0.0
  %1161 = vmatpush1.msra.mxu0 0.0
  %1162 = vmatprep.subr.mxu0 0.0
  %1163 = vmatpush1.msra.mxu0 0.0
  %1164 = vmatprep.subr.mxu0 0.0
  %1165 = vmatpush1.msra.mxu0 0.0
  %1166 = vmatprep.subr.mxu0 0.0
  %1167 = vmatpush1.msra.mxu0 0.0
  %1168 = vmatprep.subr.mxu0 0.0
  %1169 = vmatpush1.msra.mxu0 0.0
  %1170 = vmatprep.subr.mxu0 0.0
  %1171 = vmatpush1.msra.mxu0 0.0
  %1172 = vmatprep.subr.mxu0 0.0
  %1173 = vmatpush1.msra.mxu0 0.0
  %1174 = vmatprep.subr.mxu0 0.0
  %1175 = vmatpush1.msra.mxu0 0.0
  %1176 = vmatprep.subr.mxu0 0.0
  %1177 = vmatpush1.msra.mxu0 0.0
  %1178 = vmatprep.subr.mxu0 0.0
  %1179 = vmatpush1.msra.mxu0 0.0
  %1180 = vmatprep.subr.mxu0 0.0
  %1181 = vmatpush1.msra.mxu0 0.0
  %1182 = vmatprep.mubr.f32.mxu0 0.0
  %1183 = vmatmul.mubr.f32.gmra.mrb[0].mxu0 %v855
  %v1184 = vpop.f32.mrb[0].mxu0
  %v1185 = vadd.f32 0.0, %v1184
  %v1186 = vpop.f32.mrb[0].mxu0
  %v1187 = vadd.f32 0.0, %v1186
  %1188 = vdwg.mxu0
  %v1189 = vadd.f32 %v1043, %v1114
  %v1190 = vadd.f32 %v1044, %v1116
  %v1191 = vadd.f32 %v1045, %v1185
  %v1192 = vadd.f32 %v1046, %v1187
  %v1193 = vxor.u32 %v1189, 2147483648
  %v1194 = vmul.f32 %v1193, 1.442695
  %v1195 = vpow.pop %v1194
  %v1196 = vadd.f32 %v1195, 1.0
  %v1197 = vrcp.pop %v1196
  %v1198 = vmul.f32 1.0, %v1197
  %v1199 = vxor.u32 %v1190, 2147483648
  %v1200 = vmul.f32 %v1199, 1.442695
  %v1201 = vpow.pop %v1200
  %v1202 = vadd.f32 %v1201, 1.0
  %v1203 = vrcp.pop %v1202
  %v1204 = vmul.f32 1.0, %v1203
  %v1205 = vtanh.pop %v1191
  %v1206 = vxor.u32 %v1192, 2147483648
  %v1207 = vmul.f32 %v1206, 1.442695
  %v1208 = vpow.pop %v1207
  %v1209 = vadd.f32 %v1208, 1.0
  %v1210 = vrcp.pop %v1209
  %v1211 = vmul.f32 1.0, %v1210
  %v1212 = vmul.f32 %v1204, %v856
  %v1213 = vmul.f32 %v1198, %v1205
  %v1214 = vadd.f32 %v1212, %v1213
  %v1215 = vtanh.pop %v1214
  %v1216 = vmul.f32 %v1211, %v1215
  %s1217 = sadd.s32 %s852, 7
  %v1218 = vstv %s1217
  %vm1219 = vcmp.lt.s32.totalorder %v1218, %v849
  %v1220 = vsel %vm1219, %v1216, 0.0
  %s1221 = scalar_lea.vmem %s69, 56
  %1222 = vst [vmem:[%s1221] sm:$0xff] %v1220
  %v1223 = vsel %vm1219, %v1216, %v855
  %v1224 = vsel %vm1219, %v1214, %v856
  %s1225 = smul.u32 1, 4
  %s1226 = smul.addr %s1225, 8
  %s1227 = scalar_lea.vmem [#allocation2], %s1226
  %v1228 = vld [vmem:[%s1227] sm:$0xff]
  %v1229 = vld [vmem:[%s1227 + $0x8] sm:$0xff]
  %v1230 = vld [vmem:[%s1227 + $0x10] sm:$0xff]
  %v1231 = vld [vmem:[%s1227 + $0x18] sm:$0xff]
  %1232 = vmatprep.subr.mxu0 %v722
  %1233 = vmatpush1.msra.mxu0 %v721
  %1234 = vmatprep.subr.mxu0 %v726
  %1235 = vmatpush1.msra.mxu0 %v725
  %1236 = vmatprep.subr.mxu0 %v730
  %1237 = vmatpush1.msra.mxu0 %v729
  %1238 = vmatprep.subr.mxu0 %v734
  %1239 = vmatpush1.msra.mxu0 %v733
  %1240 = vmatprep.subr.mxu0 %v738
  %1241 = vmatpush1.msra.mxu0 %v737
  %1242 = vmatprep.subr.mxu0 %v742
  %1243 = vmatpush1.msra.mxu0 %v741
  %1244 = vmatprep.subr.mxu0 %v746
  %1245 = vmatpush1.msra.mxu0 %v745
  %1246 = vmatprep.subr.mxu0 %v750
  %1247 = vmatpush1.msra.mxu0 %v749
  %1248 = vmatprep.subr.mxu0 %v754
  %1249 = vmatpush1.msra.mxu0 %v753
  %1250 = vmatprep.subr.mxu0 %v758
  %1251 = vmatpush1.msra.mxu0 %v757
  %1252 = vmatprep.subr.mxu0 %v762
  %1253 = vmatpush1.msra.mxu0 %v761
  %1254 = vmatprep.subr.mxu0 %v766
  %1255 = vmatpush1.msra.mxu0 %v765
  %1256 = vmatprep.subr.mxu0 %v770
  %1257 = vmatpush1.msra.mxu0 %v769
  %1258 = vmatprep.subr.mxu0 %v774
  %1259 = vmatpush1.msra.mxu0 %v773
  %1260 = vmatprep.subr.mxu0 %v778
  %1261 = vmatpush1.msra.mxu0 %v777
  %1262 = vmatprep.subr.mxu0 %v782
  %1263 = vmatpush1.msra.mxu0 %v781
  %1264 = vmatprep.subr.mxu0 0.0
  %1265 = vmatpush1.msra.mxu0 0.0
  %1266 = vmatprep.subr.mxu0 0.0
  %1267 = vmatpush1.msra.mxu0 0.0
  %1268 = vmatprep.subr.mxu0 0.0
  %1269 = vmatpush1.msra.mxu0 0.0
  %1270 = vmatprep.subr.mxu0 0.0
  %1271 = vmatpush1.msra.mxu0 0.0
  %1272 = vmatprep.subr.mxu0 0.0
  %1273 = vmatpush1.msra.mxu0 0.0
  %1274 = vmatprep.subr.mxu0 0.0
  %1275 = vmatpush1.msra.mxu0 0.0
  %1276 = vmatprep.subr.mxu0 0.0
  %1277 = vmatpush1.msra.mxu0 0.0
  %1278 = vmatprep.subr.mxu0 0.0
  %1279 = vmatpush1.msra.mxu0 0.0
  %1280 = vmatprep.subr.mxu0 0.0
  %1281 = vmatpush1.msra.mxu0 0.0
  %1282 = vmatprep.subr.mxu0 0.0
  %1283 = vmatpush1.msra.mxu0 0.0
  %1284 = vmatprep.subr.mxu0 0.0
  %1285 = vmatpush1.msra.mxu0 0.0
  %1286 = vmatprep.subr.mxu0 0.0
  %1287 = vmatpush1.msra.mxu0 0.0
  %1288 = vmatprep.subr.mxu0 0.0
  %1289 = vmatpush1.msra.mxu0 0.0
  %1290 = vmatprep.subr.mxu0 0.0
  %1291 = vmatpush1.msra.mxu0 0.0
  %1292 = vmatprep.subr.mxu0 0.0
  %1293 = vmatpush1.msra.mxu0 0.0
  %1294 = vmatprep.subr.mxu0 0.0
  %1295 = vmatpush1.msra.mxu0 0.0
  %1296 = vmatprep.mubr.f32.mxu0 0.0
  %1297 = vmatmul.mubr.f32.gmra.mrb[0].mxu0 %v1038
  %v1298 = vpop.f32.mrb[0].mxu0
  %v1299 = vadd.f32 0.0, %v1298
  %v1300 = vpop.f32.mrb[0].mxu0
  %v1301 = vadd.f32 0.0, %v1300
  %1302 = vdwg.mxu0
  %1303 = vmatprep.subr.mxu0 %v724
  %1304 = vmatpush1.msra.mxu0 %v723
  %1305 = vmatprep.subr.mxu0 %v728
  %1306 = vmatpush1.msra.mxu0 %v727
  %1307 = vmatprep.subr.mxu0 %v732
  %1308 = vmatpush1.msra.mxu0 %v731
  %1309 = vmatprep.subr.mxu0 %v736
  %1310 = vmatpush1.msra.mxu0 %v735
  %1311 = vmatprep.subr.mxu0 %v740
  %1312 = vmatpush1.msra.mxu0 %v739
  %1313 = vmatprep.subr.mxu0 %v744
  %1314 = vmatpush1.msra.mxu0 %v743
  %1315 = vmatprep.subr.mxu0 %v748
  %1316 = vmatpush1.msra.mxu0 %v747
  %1317 = vmatprep.subr.mxu0 %v752
  %1318 = vmatpush1.msra.mxu0 %v751
  %1319 = vmatprep.subr.mxu0 %v756
  %1320 = vmatpush1.msra.mxu0 %v755
  %1321 = vmatprep.subr.mxu0 %v760
  %1322 = vmatpush1.msra.mxu0 %v759
  %1323 = vmatprep.subr.mxu0 %v764
  %1324 = vmatpush1.msra.mxu0 %v763
  %1325 = vmatprep.subr.mxu0 %v768
  %1326 = vmatpush1.msra.mxu0 %v767
  %1327 = vmatprep.subr.mxu0 %v772
  %1328 = vmatpush1.msra.mxu0 %v771
  %1329 = vmatprep.subr.mxu0 %v776
  %1330 = vmatpush1.msra.mxu0 %v775
  %1331 = vmatprep.subr.mxu0 %v780
  %1332 = vmatpush1.msra.mxu0 %v779
  %1333 = vmatprep.subr.mxu0 %v784
  %1334 = vmatpush1.msra.mxu0 %v783
  %1335 = vmatprep.subr.mxu0 0.0
  %1336 = vmatpush1.msra.mxu0 0.0
  %1337 = vmatprep.subr.mxu0 0.0
  %1338 = vmatpush1.msra.mxu0 0.0
  %1339 = vmatprep.subr.mxu0 0.0
  %1340 = vmatpush1.msra.mxu0 0.0
  %1341 = vmatprep.subr.mxu0 0.0
  %1342 = vmatpush1.msra.mxu0 0.0
  %1343 = vmatprep.subr.mxu0 0.0
  %1344 = vmatpush1.msra.mxu0 0.0
  %1345 = vmatprep.subr.mxu0 0.0
  %1346 = vmatpush1.msra.mxu0 0.0
  %1347 = vmatprep.subr.mxu0 0.0
  %1348 = vmatpush1.msra.mxu0 0.0
  %1349 = vmatprep.subr.mxu0 0.0
  %1350 = vmatpush1.msra.mxu0 0.0
  %1351 = vmatprep.subr.mxu0 0.0
  %1352 = vmatpush1.msra.mxu0 0.0
  %1353 = vmatprep.subr.mxu0 0.0
  %1354 = vmatpush1.msra.mxu0 0.0
  %1355 = vmatprep.subr.mxu0 0.0
  %1356 = vmatpush1.msra.mxu0 0.0
  %1357 = vmatprep.subr.mxu0 0.0
  %1358 = vmatpush1.msra.mxu0 0.0
  %1359 = vmatprep.subr.mxu0 0.0
  %1360 = vmatpush1.msra.mxu0 0.0
  %1361 = vmatprep.subr.mxu0 0.0
  %1362 = vmatpush1.msra.mxu0 0.0
  %1363 = vmatprep.subr.mxu0 0.0
  %1364 = vmatpush1.msra.mxu0 0.0
  %1365 = vmatprep.subr.mxu0 0.0
  %1366 = vmatpush1.msra.mxu0 0.0
  %1367 = vmatprep.mubr.f32.mxu0 0.0
  %1368 = vmatmul.mubr.f32.gmra.mrb[0].mxu0 %v1038
  %v1369 = vpop.f32.mrb[0].mxu0
  %v1370 = vadd.f32 0.0, %v1369
  %v1371 = vpop.f32.mrb[0].mxu0
  %v1372 = vadd.f32 0.0, %v1371
  %1373 = vdwg.mxu0
  %v1374 = vadd.f32 %v1228, %v1299
  %v1375 = vadd.f32 %v1229, %v1301
  %v1376 = vadd.f32 %v1230, %v1370
  %v1377 = vadd.f32 %v1231, %v1372
  %v1378 = vxor.u32 %v1374, 2147483648
  %v1379 = vmul.f32 %v1378, 1.442695
  %v1380 = vpow.pop %v1379
  %v1381 = vadd.f32 %v1380, 1.0
  %v1382 = vrcp.pop %v1381
  %v1383 = vmul.f32 1.0, %v1382
  %v1384 = vxor.u32 %v1375, 2147483648
  %v1385 = vmul.f32 %v1384, 1.442695
  %v1386 = vpow.pop %v1385
  %v1387 = vadd.f32 %v1386, 1.0
  %v1388 = vrcp.pop %v1387
  %v1389 = vmul.f32 1.0, %v1388
  %v1390 = vtanh.pop %v1376
  %v1391 = vxor.u32 %v1377, 2147483648
  %v1392 = vmul.f32 %v1391, 1.442695
  %v1393 = vpow.pop %v1392
  %v1394 = vadd.f32 %v1393, 1.0
  %v1395 = vrcp.pop %v1394
  %v1396 = vmul.f32 1.0, %v1395
  %v1397 = vmul.f32 %v1389, %v1039
  %v1398 = vmul.f32 %v1383, %v1390
  %v1399 = vadd.f32 %v1397, %v1398
  %v1400 = vtanh.pop %v1399
  %v1401 = vmul.f32 %v1396, %v1400
  %s1402 = sadd.s32 %s850, 1
  %v1403 = vstv %s1402
  %vm1404 = vcmp.lt.s32.totalorder %v1403, %v849
  %v1405 = vsel %vm1404, %v1401, 0.0
  %s1406 = scalar_lea.vmem %s9, 8
  %1407 = vst [vmem:[%s1406] sm:$0xff] %v1405
  %v1408 = vsel %vm1404, %v1401, %v1038
  %v1409 = vsel %vm1404, %v1399, %v1039
  %s1410 = smul.u32 6, 4
  %s1411 = smul.addr %s1410, 8
  %s1412 = scalar_lea.vmem [#allocation3], %s1411
  %v1413 = vld [vmem:[%s1412] sm:$0xff]
  %v1414 = vld [vmem:[%s1412 + $0x8] sm:$0xff]
  %v1415 = vld [vmem:[%s1412 + $0x10] sm:$0xff]
  %v1416 = vld [vmem:[%s1412 + $0x18] sm:$0xff]
  %1417 = vmatprep.subr.mxu0 %v786
  %1418 = vmatpush1.msra.mxu0 %v785
  %1419 = vmatprep.subr.mxu0 %v790
  %1420 = vmatpush1.msra.mxu0 %v789
  %1421 = vmatprep.subr.mxu0 %v794
  %1422 = vmatpush1.msra.mxu0 %v793
  %1423 = vmatprep.subr.mxu0 %v798
  %1424 = vmatpush1.msra.mxu0 %v797
  %1425 = vmatprep.subr.mxu0 %v802
  %1426 = vmatpush1.msra.mxu0 %v801
  %1427 = vmatprep.subr.mxu0 %v806
  %1428 = vmatpush1.msra.mxu0 %v805
  %1429 = vmatprep.subr.mxu0 %v810
  %1430 = vmatpush1.msra.mxu0 %v809
  %1431 = vmatprep.subr.mxu0 %v814
  %1432 = vmatpush1.msra.mxu0 %v813
  %1433 = vmatprep.subr.mxu0 %v818
  %1434 = vmatpush1.msra.mxu0 %v817
  %1435 = vmatprep.subr.mxu0 %v822
  %1436 = vmatpush1.msra.mxu0 %v821
  %1437 = vmatprep.subr.mxu0 %v826
  %1438 = vmatpush1.msra.mxu0 %v825
  %1439 = vmatprep.subr.mxu0 %v830
  %1440 = vmatpush1.msra.mxu0 %v829
  %1441 = vmatprep.subr.mxu0 %v834
  %1442 = vmatpush1.msra.mxu0 %v833
  %1443 = vmatprep.subr.mxu0 %v838
  %1444 = vmatpush1.msra.mxu0 %v837
  %1445 = vmatprep.subr.mxu0 %v842
  %1446 = vmatpush1.msra.mxu0 %v841
  %1447 = vmatprep.subr.mxu0 %v846
  %1448 = vmatpush1.msra.mxu0 %v845
  %1449 = vmatprep.subr.mxu0 0.0
  %1450 = vmatpush1.msra.mxu0 0.0
  %1451 = vmatprep.subr.mxu0 0.0
  %1452 = vmatpush1.msra.mxu0 0.0
  %1453 = vmatprep.subr.mxu0 0.0
  %1454 = vmatpush1.msra.mxu0 0.0
  %1455 = vmatprep.subr.mxu0 0.0
  %1456 = vmatpush1.msra.mxu0 0.0
  %1457 = vmatprep.subr.mxu0 0.0
  %1458 = vmatpush1.msra.mxu0 0.0
  %1459 = vmatprep.subr.mxu0 0.0
  %1460 = vmatpush1.msra.mxu0 0.0
  %1461 = vmatprep.subr.mxu0 0.0
  %1462 = vmatpush1.msra.mxu0 0.0
  %1463 = vmatprep.subr.mxu0 0.0
  %1464 = vmatpush1.msra.mxu0 0.0
  %1465 = vmatprep.subr.mxu0 0.0
  %1466 = vmatpush1.msra.mxu0 0.0
  %1467 = vmatprep.subr.mxu0 0.0
  %1468 = vmatpush1.msra.mxu0 0.0
  %1469 = vmatprep.subr.mxu0 0.0
  %1470 = vmatpush1.msra.mxu0 0.0
  %1471 = vmatprep.subr.mxu0 0.0
  %1472 = vmatpush1.msra.mxu0 0.0
  %1473 = vmatprep.subr.mxu0 0.0
  %1474 = vmatpush1.msra.mxu0 0.0
  %1475 = vmatprep.subr.mxu0 0.0
  %1476 = vmatpush1.msra.mxu0 0.0
  %1477 = vmatprep.subr.mxu0 0.0
  %1478 = vmatpush1.msra.mxu0 0.0
  %1479 = vmatprep.subr.mxu0 0.0
  %1480 = vmatpush1.msra.mxu0 0.0
  %1481 = vmatprep.mubr.f32.mxu0 0.0
  %1482 = vmatmul.mubr.f32.gmra.mrb[0].mxu0 %v1223
  %v1483 = vpop.f32.mrb[0].mxu0
  %v1484 = vadd.f32 0.0, %v1483
  %v1485 = vpop.f32.mrb[0].mxu0
  %v1486 = vadd.f32 0.0, %v1485
  %1487 = vdwg.mxu0
  %1488 = vmatprep.subr.mxu0 %v788
  %1489 = vmatpush1.msra.mxu0 %v787
  %1490 = vmatprep.subr.mxu0 %v792
  %1491 = vmatpush1.msra.mxu0 %v791
  %1492 = vmatprep.subr.mxu0 %v796
  %1493 = vmatpush1.msra.mxu0 %v795
  %1494 = vmatprep.subr.mxu0 %v800
  %1495 = vmatpush1.msra.mxu0 %v799
  %1496 = vmatprep.subr.mxu0 %v804
  %1497 = vmatpush1.msra.mxu0 %v803
  %1498 = vmatprep.subr.mxu0 %v808
  %1499 = vmatpush1.msra.mxu0 %v807
  %1500 = vmatprep.subr.mxu0 %v812
  %1501 = vmatpush1.msra.mxu0 %v811
  %1502 = vmatprep.subr.mxu0 %v816
  %1503 = vmatpush1.msra.mxu0 %v815
  %1504 = vmatprep.subr.mxu0 %v820
  %1505 = vmatpush1.msra.mxu0 %v819
  %1506 = vmatprep.subr.mxu0 %v824
  %1507 = vmatpush1.msra.mxu0 %v823
  %1508 = vmatprep.subr.mxu0 %v828
  %1509 = vmatpush1.msra.mxu0 %v827
  %1510 = vmatprep.subr.mxu0 %v832
  %1511 = vmatpush1.msra.mxu0 %v831
  %1512 = vmatprep.subr.mxu0 %v836
  %1513 = vmatpush1.msra.mxu0 %v835
  %1514 = vmatprep.subr.mxu0 %v840
  %1515 = vmatpush1.msra.mxu0 %v839
  %1516 = vmatprep.subr.mxu0 %v844
  %1517 = vmatpush1.msra.mxu0 %v843
  %1518 = vmatprep.subr.mxu0 %v848
  %1519 = vmatpush1.msra.mxu0 %v847
  %1520 = vmatprep.subr.mxu0 0.0
  %1521 = vmatpush1.msra.mxu0 0.0
  %1522 = vmatprep.subr.mxu0 0.0
  %1523 = vmatpush1.msra.mxu0 0.0
  %1524 = vmatprep.subr.mxu0 0.0
  %1525 = vmatpush1.msra.mxu0 0.0
  %1526 = vmatprep.subr.mxu0 0.0
  %1527 = vmatpush1.msra.mxu0 0.0
  %1528 = vmatprep.subr.mxu0 0.0
  %1529 = vmatpush1.msra.mxu0 0.0
  %1530 = vmatprep.subr.mxu0 0.0
  %1531 = vmatpush1.msra.mxu0 0.0
  %1532 = vmatprep.subr.mxu0 0.0
  %1533 = vmatpush1.msra.mxu0 0.0
  %1534 = vmatprep.subr.mxu0 0.0
  %1535 = vmatpush1.msra.mxu0 0.0
  %1536 = vmatprep.subr.mxu0 0.0
  %1537 = vmatpush1.msra.mxu0 0.0
  %1538 = vmatprep.subr.mxu0 0.0
  %1539 = vmatpush1.msra.mxu0 0.0
  %1540 = vmatprep.subr.mxu0 0.0
  %1541 = vmatpush1.msra.mxu0 0.0
  %1542 = vmatprep.subr.mxu0 0.0
  %1543 = vmatpush1.msra.mxu0 0.0
  %1544 = vmatprep.subr.mxu0 0.0
  %1545 = vmatpush1.msra.mxu0 0.0
  %1546 = vmatprep.subr.mxu0 0.0
  %1547 = vmatpush1.msra.mxu0 0.0
  %1548 = vmatprep.subr.mxu0 0.0
  %1549 = vmatpush1.msra.mxu0 0.0
  %1550 = vmatprep.subr.mxu0 0.0
  %1551 = vmatpush1.msra.mxu0 0.0
  %1552 = vmatprep.mubr.f32.mxu0 0.0
  %1553 = vmatmul.mubr.f32.gmra.mrb[0].mxu0 %v1223
  %v1554 = vpop.f32.mrb[0].mxu0
  %v1555 = vadd.f32 0.0, %v1554
  %v1556 = vpop.f32.mrb[0].mxu0
  %v1557 = vadd.f32 0.0, %v1556
  %1558 = vdwg.mxu0
  %v1559 = vadd.f32 %v1413, %v1484
  %v1560 = vadd.f32 %v1414, %v1486
  %v1561 = vadd.f32 %v1415, %v1555
  %v1562 = vadd.f32 %v1416, %v1557
  %v1563 = vxor.u32 %v1559, 2147483648
  %v1564 = vmul.f32 %v1563, 1.442695
  %v1565 = vpow.pop %v1564
  %v1566 = vadd.f32 %v1565, 1.0
  %v1567 = vrcp.pop %v1566
  %v1568 = vmul.f32 1.0, %v1567
  %v1569 = vxor.u32 %v1560, 2147483648
  %v1570 = vmul.f32 %v1569, 1.442695
  %v1571 = vpow.pop %v1570
  %v1572 = vadd.f32 %v1571, 1.0
  %v1573 = vrcp.pop %v1572
  %v1574 = vmul.f32 1.0, %v1573
  %v1575 = vtanh.pop %v1561
  %v1576 = vxor.u32 %v1562, 2147483648
  %v1577 = vmul.f32 %v1576, 1.442695
  %v1578 = vpow.pop %v1577
  %v1579 = vadd.f32 %v1578, 1.0
  %v1580 = vrcp.pop %v1579
  %v1581 = vmul.f32 1.0, %v1580
  %v1582 = vmul.f32 %v1574, %v1224
  %v1583 = vmul.f32 %v1568, %v1575
  %v1584 = vadd.f32 %v1582, %v1583
  %v1585 = vtanh.pop %v1584
  %v1586 = vmul.f32 %v1581, %v1585
  %s1587 = sadd.s32 %s852, 6
  %v1588 = vstv %s1587
  %vm1589 = vcmp.lt.s32.totalorder %v1588, %v849
  %v1590 = vsel %vm1589, %v1586, 0.0
  %s1591 = scalar_lea.vmem %s69, 48
  %1592 = vst [vmem:[%s1591] sm:$0xff] %v1590
  %v1593 = vsel %vm1589, %v1586, %v1223
  %v1594 = vsel %vm1589, %v1584, %v1224
  %s1595 = smul.u32 2, 4
  %s1596 = smul.addr %s1595, 8
  %s1597 = scalar_lea.vmem [#allocation2], %s1596
  %v1598 = vld [vmem:[%s1597] sm:$0xff]
  %v1599 = vld [vmem:[%s1597 + $0x8] sm:$0xff]
  %v1600 = vld [vmem:[%s1597 + $0x10] sm:$0xff]
  %v1601 = vld [vmem:[%s1597 + $0x18] sm:$0xff]
  %1602 = vmatprep.subr.mxu0 %v722
  %1603 = vmatpush1.msra.mxu0 %v721
  %1604 = vmatprep.subr.mxu0 %v726
  %1605 = vmatpush1.msra.mxu0 %v725
  %1606 = vmatprep.subr.mxu0 %v730
  %1607 = vmatpush1.msra.mxu0 %v729
  %1608 = vmatprep.subr.mxu0 %v734
  %1609 = vmatpush1.msra.mxu0 %v733
  %1610 = vmatprep.subr.mxu0 %v738
  %1611 = vmatpush1.msra.mxu0 %v737
  %1612 = vmatprep.subr.mxu0 %v742
  %1613 = vmatpush1.msra.mxu0 %v741
  %1614 = vmatprep.subr.mxu0 %v746
  %1615 = vmatpush1.msra.mxu0 %v745
  %1616 = vmatprep.subr.mxu0 %v750
  %1617 = vmatpush1.msra.mxu0 %v749
  %1618 = vmatprep.subr.mxu0 %v754
  %1619 = vmatpush1.msra.mxu0 %v753
  %1620 = vmatprep.subr.mxu0 %v758
  %1621 = vmatpush1.msra.mxu0 %v757
  %1622 = vmatprep.subr.mxu0 %v762
  %1623 = vmatpush1.msra.mxu0 %v761
  %1624 = vmatprep.subr.mxu0 %v766
  %1625 = vmatpush1.msra.mxu0 %v765
  %1626 = vmatprep.subr.mxu0 %v770
  %1627 = vmatpush1.msra.mxu0 %v769
  %1628 = vmatprep.subr.mxu0 %v774
  %1629 = vmatpush1.msra.mxu0 %v773
  %1630 = vmatprep.subr.mxu0 %v778
  %1631 = vmatpush1.msra.mxu0 %v777
  %1632 = vmatprep.subr.mxu0 %v782
  %1633 = vmatpush1.msra.mxu0 %v781
  %1634 = vmatprep.subr.mxu0 0.0
  %1635 = vmatpush1.msra.mxu0 0.0
  %1636 = vmatprep.subr.mxu0 0.0
  %1637 = vmatpush1.msra.mxu0 0.0
  %1638 = vmatprep.subr.mxu0 0.0
  %1639 = vmatpush1.msra.mxu0 0.0
  %1640 = vmatprep.subr.mxu0 0.0
  %1641 = vmatpush1.msra.mxu0 0.0
  %1642 = vmatprep.subr.mxu0 0.0
  %1643 = vmatpush1.msra.mxu0 0.0
  %1644 = vmatprep.subr.mxu0 0.0
  %1645 = vmatpush1.msra.mxu0 0.0
  %1646 = vmatprep.subr.mxu0 0.0
  %1647 = vmatpush1.msra.mxu0 0.0
  %1648 = vmatprep.subr.mxu0 0.0
  %1649 = vmatpush1.msra.mxu0 0.0
  %1650 = vmatprep.subr.mxu0 0.0
  %1651 = vmatpush1.msra.mxu0 0.0
  %1652 = vmatprep.subr.mxu0 0.0
  %1653 = vmatpush1.msra.mxu0 0.0
  %1654 = vmatprep.subr.mxu0 0.0
  %1655 = vmatpush1.msra.mxu0 0.0
  %1656 = vmatprep.subr.mxu0 0.0
  %1657 = vmatpush1.msra.mxu0 0.0
  %1658 = vmatprep.subr.mxu0 0.0
  %1659 = vmatpush1.msra.mxu0 0.0
  %1660 = vmatprep.subr.mxu0 0.0
  %1661 = vmatpush1.msra.mxu0 0.0
  %1662 = vmatprep.subr.mxu0 0.0
  %1663 = vmatpush1.msra.mxu0 0.0
  %1664 = vmatprep.subr.mxu0 0.0
  %1665 = vmatpush1.msra.mxu0 0.0
  %1666 = vmatprep.mubr.f32.mxu0 0.0
  %1667 = vmatmul.mubr.f32.gmra.mrb[0].mxu0 %v1408
  %v1668 = vpop.f32.mrb[0].mxu0
  %v1669 = vadd.f32 0.0, %v1668
  %v1670 = vpop.f32.mrb[0].mxu0
  %v1671 = vadd.f32 0.0, %v1670
  %1672 = vdwg.mxu0
  %1673 = vmatprep.subr.mxu0 %v724
  %1674 = vmatpush1.msra.mxu0 %v723
  %1675 = vmatprep.subr.mxu0 %v728
  %1676 = vmatpush1.msra.mxu0 %v727
  %1677 = vmatprep.subr.mxu0 %v732
  %1678 = vmatpush1.msra.mxu0 %v731
  %1679 = vmatprep.subr.mxu0 %v736
  %1680 = vmatpush1.msra.mxu0 %v735
  %1681 = vmatprep.subr.mxu0 %v740
  %1682 = vmatpush1.msra.mxu0 %v739
  %1683 = vmatprep.subr.mxu0 %v744
  %1684 = vmatpush1.msra.mxu0 %v743
  %1685 = vmatprep.subr.mxu0 %v748
  %1686 = vmatpush1.msra.mxu0 %v747
  %1687 = vmatprep.subr.mxu0 %v752
  %1688 = vmatpush1.msra.mxu0 %v751
  %1689 = vmatprep.subr.mxu0 %v756
  %1690 = vmatpush1.msra.mxu0 %v755
  %1691 = vmatprep.subr.mxu0 %v760
  %1692 = vmatpush1.msra.mxu0 %v759
  %1693 = vmatprep.subr.mxu0 %v764
  %1694 = vmatpush1.msra.mxu0 %v763
  %1695 = vmatprep.subr.mxu0 %v768
  %1696 = vmatpush1.msra.mxu0 %v767
  %1697 = vmatprep.subr.mxu0 %v772
  %1698 = vmatpush1.msra.mxu0 %v771
  %1699 = vmatprep.subr.mxu0 %v776
  %1700 = vmatpush1.msra.mxu0 %v775
  %1701 = vmatprep.subr.mxu0 %v780
  %1702 = vmatpush1.msra.mxu0 %v779
  %1703 = vmatprep.subr.mxu0 %v784
  %1704 = vmatpush1.msra.mxu0 %v783
  %1705 = vmatprep.subr.mxu0 0.0
  %1706 = vmatpush1.msra.mxu0 0.0
  %1707 = vmatprep.subr.mxu0 0.0
  %1708 = vmatpush1.msra.mxu0 0.0
  %1709 = vmatprep.subr.mxu0 0.0
  %1710 = vmatpush1.msra.mxu0 0.0
  %1711 = vmatprep.subr.mxu0 0.0
  %1712 = vmatpush1.msra.mxu0 0.0
  %1713 = vmatprep.subr.mxu0 0.0
  %1714 = vmatpush1.msra.mxu0 0.0
  %1715 = vmatprep.subr.mxu0 0.0
  %1716 = vmatpush1.msra.mxu0 0.0
  %1717 = vmatprep.subr.mxu0 0.0
  %1718 = vmatpush1.msra.mxu0 0.0
  %1719 = vmatprep.subr.mxu0 0.0
  %1720 = vmatpush1.msra.mxu0 0.0
  %1721 = vmatprep.subr.mxu0 0.0
  %1722 = vmatpush1.msra.mxu0 0.0
  %1723 = vmatprep.subr.mxu0 0.0
  %1724 = vmatpush1.msra.mxu0 0.0
  %1725 = vmatprep.subr.mxu0 0.0
  %1726 = vmatpush1.msra.mxu0 0.0
  %1727 = vmatprep.subr.mxu0 0.0
  %1728 = vmatpush1.msra.mxu0 0.0
  %1729 = vmatprep.subr.mxu0 0.0
  %1730 = vmatpush1.msra.mxu0 0.0
  %1731 = vmatprep.subr.mxu0 0.0
  %1732 = vmatpush1.msra.mxu0 0.0
  %1733 = vmatprep.subr.mxu0 0.0
  %1734 = vmatpush1.msra.mxu0 0.0
  %1735 = vmatprep.subr.mxu0 0.0
  %1736 = vmatpush1.msra.mxu0 0.0
  %1737 = vmatprep.mubr.f32.mxu0 0.0
  %1738 = vmatmul.mubr.f32.gmra.mrb[0].mxu0 %v1408
  %v1739 = vpop.f32.mrb[0].mxu0
  %v1740 = vadd.f32 0.0, %v1739
  %v1741 = vpop.f32.mrb[0].mxu0
  %v1742 = vadd.f32 0.0, %v1741
  %1743 = vdwg.mxu0
  %v1744 = vadd.f32 %v1598, %v1669
  %v1745 = vadd.f32 %v1599, %v1671
  %v1746 = vadd.f32 %v1600, %v1740
  %v1747 = vadd.f32 %v1601, %v1742
  %v1748 = vxor.u32 %v1744, 2147483648
  %v1749 = vmul.f32 %v1748, 1.442695
  %v1750 = vpow.pop %v1749
  %v1751 = vadd.f32 %v1750, 1.0
  %v1752 = vrcp.pop %v1751
  %v1753 = vmul.f32 1.0, %v1752
  %v1754 = vxor.u32 %v1745, 2147483648
  %v1755 = vmul.f32 %v1754, 1.442695
  %v1756 = vpow.pop %v1755
  %v1757 = vadd.f32 %v1756, 1.0
  %v1758 = vrcp.pop %v1757
  %v1759 = vmul.f32 1.0, %v1758
  %v1760 = vtanh.pop %v1746
  %v1761 = vxor.u32 %v1747, 2147483648
  %v1762 = vmul.f32 %v1761, 1.442695
  %v1763 = vpow.pop %v1762
  %v1764 = vadd.f32 %v1763, 1.0
  %v1765 = vrcp.pop %v1764
  %v1766 = vmul.f32 1.0, %v1765
  %v1767 = vmul.f32 %v1759, %v1409
  %v1768 = vmul.f32 %v1753, %v1760
  %v1769 = vadd.f32 %v1767, %v1768
  %v1770 = vtanh.pop %v1769
  %v1771 = vmul.f32 %v1766, %v1770
  %s1772 = sadd.s32 %s850, 2
  %v1773 = vstv %s1772
  %vm1774 = vcmp.lt.s32.totalorder %v1773, %v849
  %v1775 = vsel %vm1774, %v1771, 0.0
  %s1776 = scalar_lea.vmem %s9, 16
  %1777 = vst [vmem:[%s1776] sm:$0xff] %v1775
  %v1778 = vsel %vm1774, %v1771, %v1408
  %v1779 = vsel %vm1774, %v1769, %v1409
  %s1780 = smul.u32 5, 4
  %s1781 = smul.addr %s1780, 8
  %s1782 = scalar_lea.vmem [#allocation3], %s1781
  %v1783 = vld [vmem:[%s1782] sm:$0xff]
  %v1784 = vld [vmem:[%s1782 + $0x8] sm:$0xff]
  %v1785 = vld [vmem:[%s1782 + $0x10] sm:$0xff]
  %v1786 = vld [vmem:[%s1782 + $0x18] sm:$0xff]
  %1787 = vmatprep.subr.mxu0 %v786
  %1788 = vmatpush1.msra.mxu0 %v785
  %1789 = vmatprep.subr.mxu0 %v790
  %1790 = vmatpush1.msra.mxu0 %v789
  %1791 = vmatprep.subr.mxu0 %v794
  %1792 = vmatpush1.msra.mxu0 %v793
  %1793 = vmatprep.subr.mxu0 %v798
  %1794 = vmatpush1.msra.mxu0 %v797
  %1795 = vmatprep.subr.mxu0 %v802
  %1796 = vmatpush1.msra.mxu0 %v801
  %1797 = vmatprep.subr.mxu0 %v806
  %1798 = vmatpush1.msra.mxu0 %v805
  %1799 = vmatprep.subr.mxu0 %v810
  %1800 = vmatpush1.msra.mxu0 %v809
  %1801 = vmatprep.subr.mxu0 %v814
  %1802 = vmatpush1.msra.mxu0 %v813
  %1803 = vmatprep.subr.mxu0 %v818
  %1804 = vmatpush1.msra.mxu0 %v817
  %1805 = vmatprep.subr.mxu0 %v822
  %1806 = vmatpush1.msra.mxu0 %v821
  %1807 = vmatprep.subr.mxu0 %v826
  %1808 = vmatpush1.msra.mxu0 %v825
  %1809 = vmatprep.subr.mxu0 %v830
  %1810 = vmatpush1.msra.mxu0 %v829
  %1811 = vmatprep.subr.mxu0 %v834
  %1812 = vmatpush1.msra.mxu0 %v833
  %1813 = vmatprep.subr.mxu0 %v838
  %1814 = vmatpush1.msra.mxu0 %v837
  %1815 = vmatprep.subr.mxu0 %v842
  %1816 = vmatpush1.msra.mxu0 %v841
  %1817 = vmatprep.subr.mxu0 %v846
  %1818 = vmatpush1.msra.mxu0 %v845
  %1819 = vmatprep.subr.mxu0 0.0
  %1820 = vmatpush1.msra.mxu0 0.0
  %1821 = vmatprep.subr.mxu0 0.0
  %1822 = vmatpush1.msra.mxu0 0.0
  %1823 = vmatprep.subr.mxu0 0.0
  %1824 = vmatpush1.msra.mxu0 0.0
  %1825 = vmatprep.subr.mxu0 0.0
  %1826 = vmatpush1.msra.mxu0 0.0
  %1827 = vmatprep.subr.mxu0 0.0
  %1828 = vmatpush1.msra.mxu0 0.0
  %1829 = vmatprep.subr.mxu0 0.0
  %1830 = vmatpush1.msra.mxu0 0.0
  %1831 = vmatprep.subr.mxu0 0.0
  %1832 = vmatpush1.msra.mxu0 0.0
  %1833 = vmatprep.subr.mxu0 0.0
  %1834 = vmatpush1.msra.mxu0 0.0
  %1835 = vmatprep.subr.mxu0 0.0
  %1836 = vmatpush1.msra.mxu0 0.0
  %1837 = vmatprep.subr.mxu0 0.0
  %1838 = vmatpush1.msra.mxu0 0.0
  %1839 = vmatprep.subr.mxu0 0.0
  %1840 = vmatpush1.msra.mxu0 0.0
  %1841 = vmatprep.subr.mxu0 0.0
  %1842 = vmatpush1.msra.mxu0 0.0
  %1843 = vmatprep.subr.mxu0 0.0
  %1844 = vmatpush1.msra.mxu0 0.0
  %1845 = vmatprep.subr.mxu0 0.0
  %1846 = vmatpush1.msra.mxu0 0.0
  %1847 = vmatprep.subr.mxu0 0.0
  %1848 = vmatpush1.msra.mxu0 0.0
  %1849 = vmatprep.subr.mxu0 0.0
  %1850 = vmatpush1.msra.mxu0 0.0
  %1851 = vmatprep.mubr.f32.mxu0 0.0
  %1852 = vmatmul.mubr.f32.gmra.mrb[0].mxu0 %v1593
  %v1853 = vpop.f32.mrb[0].mxu0
  %v1854 = vadd.f32 0.0, %v1853
  %v1855 = vpop.f32.mrb[0].mxu0
  %v1856 = vadd.f32 0.0, %v1855
  %1857 = vdwg.mxu0
  %1858 = vmatprep.subr.mxu0 %v788
  %1859 = vmatpush1.msra.mxu0 %v787
  %1860 = vmatprep.subr.mxu0 %v792
  %1861 = vmatpush1.msra.mxu0 %v791
  %1862 = vmatprep.subr.mxu0 %v796
  %1863 = vmatpush1.msra.mxu0 %v795
  %1864 = vmatprep.subr.mxu0 %v800
  %1865 = vmatpush1.msra.mxu0 %v799
  %1866 = vmatprep.subr.mxu0 %v804
  %1867 = vmatpush1.msra.mxu0 %v803
  %1868 = vmatprep.subr.mxu0 %v808
  %1869 = vmatpush1.msra.mxu0 %v807
  %1870 = vmatprep.subr.mxu0 %v812
  %1871 = vmatpush1.msra.mxu0 %v811
  %1872 = vmatprep.subr.mxu0 %v816
  %1873 = vmatpush1.msra.mxu0 %v815
  %1874 = vmatprep.subr.mxu0 %v820
  %1875 = vmatpush1.msra.mxu0 %v819
  %1876 = vmatprep.subr.mxu0 %v824
  %1877 = vmatpush1.msra.mxu0 %v823
  %1878 = vmatprep.subr.mxu0 %v828
  %1879 = vmatpush1.msra.mxu0 %v827
  %1880 = vmatprep.subr.mxu0 %v832
  %1881 = vmatpush1.msra.mxu0 %v831
  %1882 = vmatprep.subr.mxu0 %v836
  %1883 = vmatpush1.msra.mxu0 %v835
  %1884 = vmatprep.subr.mxu0 %v840
  %1885 = vmatpush1.msra.mxu0 %v839
  %1886 = vmatprep.subr.mxu0 %v844
  %1887 = vmatpush1.msra.mxu0 %v843
  %1888 = vmatprep.subr.mxu0 %v848
  %1889 = vmatpush1.msra.mxu0 %v847
  %1890 = vmatprep.subr.mxu0 0.0
  %1891 = vmatpush1.msra.mxu0 0.0
  %1892 = vmatprep.subr.mxu0 0.0
  %1893 = vmatpush1.msra.mxu0 0.0
  %1894 = vmatprep.subr.mxu0 0.0
  %1895 = vmatpush1.msra.mxu0 0.0
  %1896 = vmatprep.subr.mxu0 0.0
  %1897 = vmatpush1.msra.mxu0 0.0
  %1898 = vmatprep.subr.mxu0 0.0
  %1899 = vmatpush1.msra.mxu0 0.0
  %1900 = vmatprep.subr.mxu0 0.0
  %1901 = vmatpush1.msra.mxu0 0.0
  %1902 = vmatprep.subr.mxu0 0.0
  %1903 = vmatpush1.msra.mxu0 0.0
  %1904 = vmatprep.subr.mxu0 0.0
  %1905 = vmatpush1.msra.mxu0 0.0
  %1906 = vmatprep.subr.mxu0 0.0
  %1907 = vmatpush1.msra.mxu0 0.0
  %1908 = vmatprep.subr.mxu0 0.0
  %1909 = vmatpush1.msra.mxu0 0.0
  %1910 = vmatprep.subr.mxu0 0.0
  %1911 = vmatpush1.msra.mxu0 0.0
  %1912 = vmatprep.subr.mxu0 0.0
  %1913 = vmatpush1.msra.mxu0 0.0
  %1914 = vmatprep.subr.mxu0 0.0
  %1915 = vmatpush1.msra.mxu0 0.0
  %1916 = vmatprep.subr.mxu0 0.0
  %1917 = vmatpush1.msra.mxu0 0.0
  %1918 = vmatprep.subr.mxu0 0.0
  %1919 = vmatpush1.msra.mxu0 0.0
  %1920 = vmatprep.subr.mxu0 0.0
  %1921 = vmatpush1.msra.mxu0 0.0
  %1922 = vmatprep.mubr.f32.mxu0 0.0
  %1923 = vmatmul.mubr.f32.gmra.mrb[0].mxu0 %v1593
  %v1924 = vpop.f32.mrb[0].mxu0
  %v1925 = vadd.f32 0.0, %v1924
  %v1926 = vpop.f32.mrb[0].mxu0
  %v1927 = vadd.f32 0.0, %v1926
  %1928 = vdwg.mxu0
  %v1929 = vadd.f32 %v1783, %v1854
  %v1930 = vadd.f32 %v1784, %v1856
  %v1931 = vadd.f32 %v1785, %v1925
  %v1932 = vadd.f32 %v1786, %v1927
  %v1933 = vxor.u32 %v1929, 2147483648
  %v1934 = vmul.f32 %v1933, 1.442695
  %v1935 = vpow.pop %v1934
  %v1936 = vadd.f32 %v1935, 1.0
  %v1937 = vrcp.pop %v1936
  %v1938 = vmul.f32 1.0, %v1937
  %v1939 = vxor.u32 %v1930, 2147483648
  %v1940 = vmul.f32 %v1939, 1.442695
  %v1941 = vpow.pop %v1940
  %v1942 = vadd.f32 %v1941, 1.0
  %v1943 = vrcp.pop %v1942
  %v1944 = vmul.f32 1.0, %v1943
  %v1945 = vtanh.pop %v1931
  %v1946 = vxor.u32 %v1932, 2147483648
  %v1947 = vmul.f32 %v1946, 1.442695
  %v1948 = vpow.pop %v1947
  %v1949 = vadd.f32 %v1948, 1.0
  %v1950 = vrcp.pop %v1949
  %v1951 = vmul.f32 1.0, %v1950
  %v1952 = vmul.f32 %v1944, %v1594
  %v1953 = vmul.f32 %v1938, %v1945
  %v1954 = vadd.f32 %v1952, %v1953
  %v1955 = vtanh.pop %v1954
  %v1956 = vmul.f32 %v1951, %v1955
  %s1957 = sadd.s32 %s852, 5
  %v1958 = vstv %s1957
  %vm1959 = vcmp.lt.s32.totalorder %v1958, %v849
  %v1960 = vsel %vm1959, %v1956, 0.0
  %s1961 = scalar_lea.vmem %s69, 40
  %1962 = vst [vmem:[%s1961] sm:$0xff] %v1960
  %v1963 = vsel %vm1959, %v1956, %v1593
  %v1964 = vsel %vm1959, %v1954, %v1594
  %s1965 = smul.u32 3, 4
  %s1966 = smul.addr %s1965, 8
  %s1967 = scalar_lea.vmem [#allocation2], %s1966
  %v1968 = vld [vmem:[%s1967] sm:$0xff]
  %v1969 = vld [vmem:[%s1967 + $0x8] sm:$0xff]
  %v1970 = vld [vmem:[%s1967 + $0x10] sm:$0xff]
  %v1971 = vld [vmem:[%s1967 + $0x18] sm:$0xff]
  %1972 = vmatprep.subr.mxu0 %v722
  %1973 = vmatpush1.msra.mxu0 %v721
  %1974 = vmatprep.subr.mxu0 %v726
  %1975 = vmatpush1.msra.mxu0 %v725
  %1976 = vmatprep.subr.mxu0 %v730
  %1977 = vmatpush1.msra.mxu0 %v729
  %1978 = vmatprep.subr.mxu0 %v734
  %1979 = vmatpush1.msra.mxu0 %v733
  %1980 = vmatprep.subr.mxu0 %v738
  %1981 = vmatpush1.msra.mxu0 %v737
  %1982 = vmatprep.subr.mxu0 %v742
  %1983 = vmatpush1.msra.mxu0 %v741
  %1984 = vmatprep.subr.mxu0 %v746
  %1985 = vmatpush1.msra.mxu0 %v745
  %1986 = vmatprep.subr.mxu0 %v750
  %1987 = vmatpush1.msra.mxu0 %v749
  %1988 = vmatprep.subr.mxu0 %v754
  %1989 = vmatpush1.msra.mxu0 %v753
  %1990 = vmatprep.subr.mxu0 %v758
  %1991 = vmatpush1.msra.mxu0 %v757
  %1992 = vmatprep.subr.mxu0 %v762
  %1993 = vmatpush1.msra.mxu0 %v761
  %1994 = vmatprep.subr.mxu0 %v766
  %1995 = vmatpush1.msra.mxu0 %v765
  %1996 = vmatprep.subr.mxu0 %v770
  %1997 = vmatpush1.msra.mxu0 %v769
  %1998 = vmatprep.subr.mxu0 %v774
  %1999 = vmatpush1.msra.mxu0 %v773
  %2000 = vmatprep.subr.mxu0 %v778
  %2001 = vmatpush1.msra.mxu0 %v777
  %2002 = vmatprep.subr.mxu0 %v782
  %2003 = vmatpush1.msra.mxu0 %v781
  %2004 = vmatprep.subr.mxu0 0.0
  %2005 = vmatpush1.msra.mxu0 0.0
  %2006 = vmatprep.subr.mxu0 0.0
  %2007 = vmatpush1.msra.mxu0 0.0
  %2008 = vmatprep.subr.mxu0 0.0
  %2009 = vmatpush1.msra.mxu0 0.0
  %2010 = vmatprep.subr.mxu0 0.0
  %2011 = vmatpush1.msra.mxu0 0.0
  %2012 = vmatprep.subr.mxu0 0.0
  %2013 = vmatpush1.msra.mxu0 0.0
  %2014 = vmatprep.subr.mxu0 0.0
  %2015 = vmatpush1.msra.mxu0 0.0
  %2016 = vmatprep.subr.mxu0 0.0
  %2017 = vmatpush1.msra.mxu0 0.0
  %2018 = vmatprep.subr.mxu0 0.0
  %2019 = vmatpush1.msra.mxu0 0.0
  %2020 = vmatprep.subr.mxu0 0.0
  %2021 = vmatpush1.msra.mxu0 0.0
  %2022 = vmatprep.subr.mxu0 0.0
  %2023 = vmatpush1.msra.mxu0 0.0
  %2024 = vmatprep.subr.mxu0 0.0
  %2025 = vmatpush1.msra.mxu0 0.0
  %2026 = vmatprep.subr.mxu0 0.0
  %2027 = vmatpush1.msra.mxu0 0.0
  %2028 = vmatprep.subr.mxu0 0.0
  %2029 = vmatpush1.msra.mxu0 0.0
  %2030 = vmatprep.subr.mxu0 0.0
  %2031 = vmatpush1.msra.mxu0 0.0
  %2032 = vmatprep.subr.mxu0 0.0
  %2033 = vmatpush1.msra.mxu0 0.0
  %2034 = vmatprep.subr.mxu0 0.0
  %2035 = vmatpush1.msra.mxu0 0.0
  %2036 = vmatprep.mubr.f32.mxu0 0.0
  %2037 = vmatmul.mubr.f32.gmra.mrb[0].mxu0 %v1778
  %v2038 = vpop.f32.mrb[0].mxu0
  %v2039 = vadd.f32 0.0, %v2038
  %v2040 = vpop.f32.mrb[0].mxu0
  %v2041 = vadd.f32 0.0, %v2040
  %2042 = vdwg.mxu0
  %2043 = vmatprep.subr.mxu0 %v724
  %2044 = vmatpush1.msra.mxu0 %v723
  %2045 = vmatprep.subr.mxu0 %v728
  %2046 = vmatpush1.msra.mxu0 %v727
  %2047 = vmatprep.subr.mxu0 %v732
  %2048 = vmatpush1.msra.mxu0 %v731
  %2049 = vmatprep.subr.mxu0 %v736
  %2050 = vmatpush1.msra.mxu0 %v735
  %2051 = vmatprep.subr.mxu0 %v740
  %2052 = vmatpush1.msra.mxu0 %v739
  %2053 = vmatprep.subr.mxu0 %v744
  %2054 = vmatpush1.msra.mxu0 %v743
  %2055 = vmatprep.subr.mxu0 %v748
  %2056 = vmatpush1.msra.mxu0 %v747
  %2057 = vmatprep.subr.mxu0 %v752
  %2058 = vmatpush1.msra.mxu0 %v751
  %2059 = vmatprep.subr.mxu0 %v756
  %2060 = vmatpush1.msra.mxu0 %v755
  %2061 = vmatprep.subr.mxu0 %v760
  %2062 = vmatpush1.msra.mxu0 %v759
  %2063 = vmatprep.subr.mxu0 %v764
  %2064 = vmatpush1.msra.mxu0 %v763
  %2065 = vmatprep.subr.mxu0 %v768
  %2066 = vmatpush1.msra.mxu0 %v767
  %2067 = vmatprep.subr.mxu0 %v772
  %2068 = vmatpush1.msra.mxu0 %v771
  %2069 = vmatprep.subr.mxu0 %v776
  %2070 = vmatpush1.msra.mxu0 %v775
  %2071 = vmatprep.subr.mxu0 %v780
  %2072 = vmatpush1.msra.mxu0 %v779
  %2073 = vmatprep.subr.mxu0 %v784
  %2074 = vmatpush1.msra.mxu0 %v783
  %2075 = vmatprep.subr.mxu0 0.0
  %2076 = vmatpush1.msra.mxu0 0.0
  %2077 = vmatprep.subr.mxu0 0.0
  %2078 = vmatpush1.msra.mxu0 0.0
  %2079 = vmatprep.subr.mxu0 0.0
  %2080 = vmatpush1.msra.mxu0 0.0
  %2081 = vmatprep.subr.mxu0 0.0
  %2082 = vmatpush1.msra.mxu0 0.0
  %2083 = vmatprep.subr.mxu0 0.0
  %2084 = vmatpush1.msra.mxu0 0.0
  %2085 = vmatprep.subr.mxu0 0.0
  %2086 = vmatpush1.msra.mxu0 0.0
  %2087 = vmatprep.subr.mxu0 0.0
  %2088 = vmatpush1.msra.mxu0 0.0
  %2089 = vmatprep.subr.mxu0 0.0
  %2090 = vmatpush1.msra.mxu0 0.0
  %2091 = vmatprep.subr.mxu0 0.0
  %2092 = vmatpush1.msra.mxu0 0.0
  %2093 = vmatprep.subr.mxu0 0.0
  %2094 = vmatpush1.msra.mxu0 0.0
  %2095 = vmatprep.subr.mxu0 0.0
  %2096 = vmatpush1.msra.mxu0 0.0
  %2097 = vmatprep.subr.mxu0 0.0
  %2098 = vmatpush1.msra.mxu0 0.0
  %2099 = vmatprep.subr.mxu0 0.0
  %2100 = vmatpush1.msra.mxu0 0.0
  %2101 = vmatprep.subr.mxu0 0.0
  %2102 = vmatpush1.msra.mxu0 0.0
  %2103 = vmatprep.subr.mxu0 0.0
  %2104 = vmatpush1.msra.mxu0 0.0
  %2105 = vmatprep.subr.mxu0 0.0
  %2106 = vmatpush1.msra.mxu0 0.0
  %2107 = vmatprep.mubr.f32.mxu0 0.0
  %2108 = vmatmul.mubr.f32.gmra.mrb[0].mxu0 %v1778
  %v2109 = vpop.f32.mrb[0].mxu0
  %v2110 = vadd.f32 0.0, %v2109
  %v2111 = vpop.f32.mrb[0].mxu0
  %v2112 = vadd.f32 0.0, %v2111
  %2113 = vdwg.mxu0
  %v2114 = vadd.f32 %v1968, %v2039
  %v2115 = vadd.f32 %v1969, %v2041
  %v2116 = vadd.f32 %v1970, %v2110
  %v2117 = vadd.f32 %v1971, %v2112
  %v2118 = vxor.u32 %v2114, 2147483648
  %v2119 = vmul.f32 %v2118, 1.442695
  %v2120 = vpow.pop %v2119
  %v2121 = vadd.f32 %v2120, 1.0
  %v2122 = vrcp.pop %v2121
  %v2123 = vmul.f32 1.0, %v2122
  %v2124 = vxor.u32 %v2115, 2147483648
  %v2125 = vmul.f32 %v2124, 1.442695
  %v2126 = vpow.pop %v2125
  %v2127 = vadd.f32 %v2126, 1.0
  %v2128 = vrcp.pop %v2127
  %v2129 = vmul.f32 1.0, %v2128
  %v2130 = vtanh.pop %v2116
  %v2131 = vxor.u32 %v2117, 2147483648
  %v2132 = vmul.f32 %v2131, 1.442695
  %v2133 = vpow.pop %v2132
  %v2134 = vadd.f32 %v2133, 1.0
  %v2135 = vrcp.pop %v2134
  %v2136 = vmul.f32 1.0, %v2135
  %v2137 = vmul.f32 %v2129, %v1779
  %v2138 = vmul.f32 %v2123, %v2130
  %v2139 = vadd.f32 %v2137, %v2138
  %v2140 = vtanh.pop %v2139
  %v2141 = vmul.f32 %v2136, %v2140
  %s2142 = sadd.s32 %s850, 3
  %v2143 = vstv %s2142
  %vm2144 = vcmp.lt.s32.totalorder %v2143, %v849
  %v2145 = vsel %vm2144, %v2141, 0.0
  %s2146 = scalar_lea.vmem %s9, 24
  %2147 = vst [vmem:[%s2146] sm:$0xff] %v2145
  %v2148 = vsel %vm2144, %v2141, %v1778
  %v2149 = vsel %vm2144, %v2139, %v1779
  %s2150 = smul.u32 4, 4
  %s2151 = smul.addr %s2150, 8
  %s2152 = scalar_lea.vmem [#allocation3], %s2151
  %v2153 = vld [vmem:[%s2152] sm:$0xff]
  %v2154 = vld [vmem:[%s2152 + $0x8] sm:$0xff]
  %v2155 = vld [vmem:[%s2152 + $0x10] sm:$0xff]
  %v2156 = vld [vmem:[%s2152 + $0x18] sm:$0xff]
  %2157 = vmatprep.subr.mxu0 %v786
  %2158 = vmatpush1.msra.mxu0 %v785
  %2159 = vmatprep.subr.mxu0 %v790
  %2160 = vmatpush1.msra.mxu0 %v789
  %2161 = vmatprep.subr.mxu0 %v794
  %2162 = vmatpush1.msra.mxu0 %v793
  %2163 = vmatprep.subr.mxu0 %v798
  %2164 = vmatpush1.msra.mxu0 %v797
  %2165 = vmatprep.subr.mxu0 %v802
  %2166 = vmatpush1.msra.mxu0 %v801
  %2167 = vmatprep.subr.mxu0 %v806
  %2168 = vmatpush1.msra.mxu0 %v805
  %2169 = vmatprep.subr.mxu0 %v810
  %2170 = vmatpush1.msra.mxu0 %v809
  %2171 = vmatprep.subr.mxu0 %v814
  %2172 = vmatpush1.msra.mxu0 %v813
  %2173 = vmatprep.subr.mxu0 %v818
  %2174 = vmatpush1.msra.mxu0 %v817
  %2175 = vmatprep.subr.mxu0 %v822
  %2176 = vmatpush1.msra.mxu0 %v821
  %2177 = vmatprep.subr.mxu0 %v826
  %2178 = vmatpush1.msra.mxu0 %v825
  %2179 = vmatprep.subr.mxu0 %v830
  %2180 = vmatpush1.msra.mxu0 %v829
  %2181 = vmatprep.subr.mxu0 %v834
  %2182 = vmatpush1.msra.mxu0 %v833
  %2183 = vmatprep.subr.mxu0 %v838
  %2184 = vmatpush1.msra.mxu0 %v837
  %2185 = vmatprep.subr.mxu0 %v842
  %2186 = vmatpush1.msra.mxu0 %v841
  %2187 = vmatprep.subr.mxu0 %v846
  %2188 = vmatpush1.msra.mxu0 %v845
  %2189 = vmatprep.subr.mxu0 0.0
  %2190 = vmatpush1.msra.mxu0 0.0
  %2191 = vmatprep.subr.mxu0 0.0
  %2192 = vmatpush1.msra.mxu0 0.0
  %2193 = vmatprep.subr.mxu0 0.0
  %2194 = vmatpush1.msra.mxu0 0.0
  %2195 = vmatprep.subr.mxu0 0.0
  %2196 = vmatpush1.msra.mxu0 0.0
  %2197 = vmatprep.subr.mxu0 0.0
  %2198 = vmatpush1.msra.mxu0 0.0
  %2199 = vmatprep.subr.mxu0 0.0
  %2200 = vmatpush1.msra.mxu0 0.0
  %2201 = vmatprep.subr.mxu0 0.0
  %2202 = vmatpush1.msra.mxu0 0.0
  %2203 = vmatprep.subr.mxu0 0.0
  %2204 = vmatpush1.msra.mxu0 0.0
  %2205 = vmatprep.subr.mxu0 0.0
  %2206 = vmatpush1.msra.mxu0 0.0
  %2207 = vmatprep.subr.mxu0 0.0
  %2208 = vmatpush1.msra.mxu0 0.0
  %2209 = vmatprep.subr.mxu0 0.0
  %2210 = vmatpush1.msra.mxu0 0.0
  %2211 = vmatprep.subr.mxu0 0.0
  %2212 = vmatpush1.msra.mxu0 0.0
  %2213 = vmatprep.subr.mxu0 0.0
  %2214 = vmatpush1.msra.mxu0 0.0
  %2215 = vmatprep.subr.mxu0 0.0
  %2216 = vmatpush1.msra.mxu0 0.0
  %2217 = vmatprep.subr.mxu0 0.0
  %2218 = vmatpush1.msra.mxu0 0.0
  %2219 = vmatprep.subr.mxu0 0.0
  %2220 = vmatpush1.msra.mxu0 0.0
  %2221 = vmatprep.mubr.f32.mxu0 0.0
  %2222 = vmatmul.mubr.f32.gmra.mrb[0].mxu0 %v1963
  %v2223 = vpop.f32.mrb[0].mxu0
  %v2224 = vadd.f32 0.0, %v2223
  %v2225 = vpop.f32.mrb[0].mxu0
  %v2226 = vadd.f32 0.0, %v2225
  %2227 = vdwg.mxu0
  %2228 = vmatprep.subr.mxu0 %v788
  %2229 = vmatpush1.msra.mxu0 %v787
  %2230 = vmatprep.subr.mxu0 %v792
  %2231 = vmatpush1.msra.mxu0 %v791
  %2232 = vmatprep.subr.mxu0 %v796
  %2233 = vmatpush1.msra.mxu0 %v795
  %2234 = vmatprep.subr.mxu0 %v800
  %2235 = vmatpush1.msra.mxu0 %v799
  %2236 = vmatprep.subr.mxu0 %v804
  %2237 = vmatpush1.msra.mxu0 %v803
  %2238 = vmatprep.subr.mxu0 %v808
  %2239 = vmatpush1.msra.mxu0 %v807
  %2240 = vmatprep.subr.mxu0 %v812
  %2241 = vmatpush1.msra.mxu0 %v811
  %2242 = vmatprep.subr.mxu0 %v816
  %2243 = vmatpush1.msra.mxu0 %v815
  %2244 = vmatprep.subr.mxu0 %v820
  %2245 = vmatpush1.msra.mxu0 %v819
  %2246 = vmatprep.subr.mxu0 %v824
  %2247 = vmatpush1.msra.mxu0 %v823
  %2248 = vmatprep.subr.mxu0 %v828
  %2249 = vmatpush1.msra.mxu0 %v827
  %2250 = vmatprep.subr.mxu0 %v832
  %2251 = vmatpush1.msra.mxu0 %v831
  %2252 = vmatprep.subr.mxu0 %v836
  %2253 = vmatpush1.msra.mxu0 %v835
  %2254 = vmatprep.subr.mxu0 %v840
  %2255 = vmatpush1.msra.mxu0 %v839
  %2256 = vmatprep.subr.mxu0 %v844
  %2257 = vmatpush1.msra.mxu0 %v843
  %2258 = vmatprep.subr.mxu0 %v848
  %2259 = vmatpush1.msra.mxu0 %v847
  %2260 = vmatprep.subr.mxu0 0.0
  %2261 = vmatpush1.msra.mxu0 0.0
  %2262 = vmatprep.subr.mxu0 0.0
  %2263 = vmatpush1.msra.mxu0 0.0
  %2264 = vmatprep.subr.mxu0 0.0
  %2265 = vmatpush1.msra.mxu0 0.0
  %2266 = vmatprep.subr.mxu0 0.0
  %2267 = vmatpush1.msra.mxu0 0.0
  %2268 = vmatprep.subr.mxu0 0.0
  %2269 = vmatpush1.msra.mxu0 0.0
  %2270 = vmatprep.subr.mxu0 0.0
  %2271 = vmatpush1.msra.mxu0 0.0
  %2272 = vmatprep.subr.mxu0 0.0
  %2273 = vmatpush1.msra.mxu0 0.0
  %2274 = vmatprep.subr.mxu0 0.0
  %2275 = vmatpush1.msra.mxu0 0.0
  %2276 = vmatprep.subr.mxu0 0.0
  %2277 = vmatpush1.msra.mxu0 0.0
  %2278 = vmatprep.subr.mxu0 0.0
  %2279 = vmatpush1.msra.mxu0 0.0
  %2280 = vmatprep.subr.mxu0 0.0
  %2281 = vmatpush1.msra.mxu0 0.0
  %2282 = vmatprep.subr.mxu0 0.0
  %2283 = vmatpush1.msra.mxu0 0.0
  %2284 = vmatprep.subr.mxu0 0.0
  %2285 = vmatpush1.msra.mxu0 0.0
  %2286 = vmatprep.subr.mxu0 0.0
  %2287 = vmatpush1.msra.mxu0 0.0
  %2288 = vmatprep.subr.mxu0 0.0
  %2289 = vmatpush1.msra.mxu0 0.0
  %2290 = vmatprep.subr.mxu0 0.0
  %2291 = vmatpush1.msra.mxu0 0.0
  %2292 = vmatprep.mubr.f32.mxu0 0.0
  %2293 = vmatmul.mubr.f32.gmra.mrb[0].mxu0 %v1963
  %v2294 = vpop.f32.mrb[0].mxu0
  %v2295 = vadd.f32 0.0, %v2294
  %v2296 = vpop.f32.mrb[0].mxu0
  %v2297 = vadd.f32 0.0, %v2296
  %2298 = vdwg.mxu0
  %v2299 = vadd.f32 %v2153, %v2224
  %v2300 = vadd.f32 %v2154, %v2226
  %v2301 = vadd.f32 %v2155, %v2295
  %v2302 = vadd.f32 %v2156, %v2297
  %v2303 = vxor.u32 %v2299, 2147483648
  %v2304 = vmul.f32 %v2303, 1.442695
  %v2305 = vpow.pop %v2304
  %v2306 = vadd.f32 %v2305, 1.0
  %v2307 = vrcp.pop %v2306
  %v2308 = vmul.f32 1.0, %v2307
  %v2309 = vxor.u32 %v2300, 2147483648
  %v2310 = vmul.f32 %v2309, 1.442695
  %v2311 = vpow.pop %v2310
  %v2312 = vadd.f32 %v2311, 1.0
  %v2313 = vrcp.pop %v2312
  %v2314 = vmul.f32 1.0, %v2313
  %v2315 = vtanh.pop %v2301
  %v2316 = vxor.u32 %v2302, 2147483648
  %v2317 = vmul.f32 %v2316, 1.442695
  %v2318 = vpow.pop %v2317
  %v2319 = vadd.f32 %v2318, 1.0
  %v2320 = vrcp.pop %v2319
  %v2321 = vmul.f32 1.0, %v2320
  %v2322 = vmul.f32 %v2314, %v1964
  %v2323 = vmul.f32 %v2308, %v2315
  %v2324 = vadd.f32 %v2322, %v2323
  %v2325 = vtanh.pop %v2324
  %v2326 = vmul.f32 %v2321, %v2325
  %s2327 = sadd.s32 %s852, 4
  %v2328 = vstv %s2327
  %vm2329 = vcmp.lt.s32.totalorder %v2328, %v849
  %v2330 = vsel %vm2329, %v2326, 0.0
  %s2331 = scalar_lea.vmem %s69, 32
  %2332 = vst [vmem:[%s2331] sm:$0xff] %v2330
  %v2333 = vsel %vm2329, %v2326, %v1963
  %v2334 = vsel %vm2329, %v2324, %v1964
  %s2335 = smul.addr %s2150, 8
  %s2336 = scalar_lea.vmem [#allocation2], %s2335
  %v2337 = vld [vmem:[%s2336] sm:$0xff]
  %v2338 = vld [vmem:[%s2336 + $0x8] sm:$0xff]
  %v2339 = vld [vmem:[%s2336 + $0x10] sm:$0xff]
  %v2340 = vld [vmem:[%s2336 + $0x18] sm:$0xff]
  %2341 = vmatprep.subr.mxu0 %v722
  %2342 = vmatpush1.msra.mxu0 %v721
  %2343 = vmatprep.subr.mxu0 %v726
  %2344 = vmatpush1.msra.mxu0 %v725
  %2345 = vmatprep.subr.mxu0 %v730
  %2346 = vmatpush1.msra.mxu0 %v729
  %2347 = vmatprep.subr.mxu0 %v734
  %2348 = vmatpush1.msra.mxu0 %v733
  %2349 = vmatprep.subr.mxu0 %v738
  %2350 = vmatpush1.msra.mxu0 %v737
  %2351 = vmatprep.subr.mxu0 %v742
  %2352 = vmatpush1.msra.mxu0 %v741
  %2353 = vmatprep.subr.mxu0 %v746
  %2354 = vmatpush1.msra.mxu0 %v745
  %2355 = vmatprep.subr.mxu0 %v750
  %2356 = vmatpush1.msra.mxu0 %v749
  %2357 = vmatprep.subr.mxu0 %v754
  %2358 = vmatpush1.msra.mxu0 %v753
  %2359 = vmatprep.subr.mxu0 %v758
  %2360 = vmatpush1.msra.mxu0 %v757
  %2361 = vmatprep.subr.mxu0 %v762
  %2362 = vmatpush1.msra.mxu0 %v761
  %2363 = vmatprep.subr.mxu0 %v766
  %2364 = vmatpush1.msra.mxu0 %v765
  %2365 = vmatprep.subr.mxu0 %v770
  %2366 = vmatpush1.msra.mxu0 %v769
  %2367 = vmatprep.subr.mxu0 %v774
  %2368 = vmatpush1.msra.mxu0 %v773
  %2369 = vmatprep.subr.mxu0 %v778
  %2370 = vmatpush1.msra.mxu0 %v777
  %2371 = vmatprep.subr.mxu0 %v782
  %2372 = vmatpush1.msra.mxu0 %v781
  %2373 = vmatprep.subr.mxu0 0.0
  %2374 = vmatpush1.msra.mxu0 0.0
  %2375 = vmatprep.subr.mxu0 0.0
  %2376 = vmatpush1.msra.mxu0 0.0
  %2377 = vmatprep.subr.mxu0 0.0
  %2378 = vmatpush1.msra.mxu0 0.0
  %2379 = vmatprep.subr.mxu0 0.0
  %2380 = vmatpush1.msra.mxu0 0.0
  %2381 = vmatprep.subr.mxu0 0.0
  %2382 = vmatpush1.msra.mxu0 0.0
  %2383 = vmatprep.subr.mxu0 0.0
  %2384 = vmatpush1.msra.mxu0 0.0
  %2385 = vmatprep.subr.mxu0 0.0
  %2386 = vmatpush1.msra.mxu0 0.0
  %2387 = vmatprep.subr.mxu0 0.0
  %2388 = vmatpush1.msra.mxu0 0.0
  %2389 = vmatprep.subr.mxu0 0.0
  %2390 = vmatpush1.msra.mxu0 0.0
  %2391 = vmatprep.subr.mxu0 0.0
  %2392 = vmatpush1.msra.mxu0 0.0
  %2393 = vmatprep.subr.mxu0 0.0
  %2394 = vmatpush1.msra.mxu0 0.0
  %2395 = vmatprep.subr.mxu0 0.0
  %2396 = vmatpush1.msra.mxu0 0.0
  %2397 = vmatprep.subr.mxu0 0.0
  %2398 = vmatpush1.msra.mxu0 0.0
  %2399 = vmatprep.subr.mxu0 0.0
  %2400 = vmatpush1.msra.mxu0 0.0
  %2401 = vmatprep.subr.mxu0 0.0
  %2402 = vmatpush1.msra.mxu0 0.0
  %2403 = vmatprep.subr.mxu0 0.0
  %2404 = vmatpush1.msra.mxu0 0.0
  %2405 = vmatprep.mubr.f32.mxu0 0.0
  %2406 = vmatmul.mubr.f32.gmra.mrb[0].mxu0 %v2148
  %v2407 = vpop.f32.mrb[0].mxu0
  %v2408 = vadd.f32 0.0, %v2407
  %v2409 = vpop.f32.mrb[0].mxu0
  %v2410 = vadd.f32 0.0, %v2409
  %2411 = vdwg.mxu0
  %2412 = vmatprep.subr.mxu0 %v724
  %2413 = vmatpush1.msra.mxu0 %v723
  %2414 = vmatprep.subr.mxu0 %v728
  %2415 = vmatpush1.msra.mxu0 %v727
  %2416 = vmatprep.subr.mxu0 %v732
  %2417 = vmatpush1.msra.mxu0 %v731
  %2418 = vmatprep.subr.mxu0 %v736
  %2419 = vmatpush1.msra.mxu0 %v735
  %2420 = vmatprep.subr.mxu0 %v740
  %2421 = vmatpush1.msra.mxu0 %v739
  %2422 = vmatprep.subr.mxu0 %v744
  %2423 = vmatpush1.msra.mxu0 %v743
  %2424 = vmatprep.subr.mxu0 %v748
  %2425 = vmatpush1.msra.mxu0 %v747
  %2426 = vmatprep.subr.mxu0 %v752
  %2427 = vmatpush1.msra.mxu0 %v751
  %2428 = vmatprep.subr.mxu0 %v756
  %2429 = vmatpush1.msra.mxu0 %v755
  %2430 = vmatprep.subr.mxu0 %v760
  %2431 = vmatpush1.msra.mxu0 %v759
  %2432 = vmatprep.subr.mxu0 %v764
  %2433 = vmatpush1.msra.mxu0 %v763
  %2434 = vmatprep.subr.mxu0 %v768
  %2435 = vmatpush1.msra.mxu0 %v767
  %2436 = vmatprep.subr.mxu0 %v772
  %2437 = vmatpush1.msra.mxu0 %v771
  %2438 = vmatprep.subr.mxu0 %v776
  %2439 = vmatpush1.msra.mxu0 %v775
  %2440 = vmatprep.subr.mxu0 %v780
  %2441 = vmatpush1.msra.mxu0 %v779
  %2442 = vmatprep.subr.mxu0 %v784
  %2443 = vmatpush1.msra.mxu0 %v783
  %2444 = vmatprep.subr.mxu0 0.0
  %2445 = vmatpush1.msra.mxu0 0.0
  %2446 = vmatprep.subr.mxu0 0.0
  %2447 = vmatpush1.msra.mxu0 0.0
  %2448 = vmatprep.subr.mxu0 0.0
  %2449 = vmatpush1.msra.mxu0 0.0
  %2450 = vmatprep.subr.mxu0 0.0
  %2451 = vmatpush1.msra.mxu0 0.0
  %2452 = vmatprep.subr.mxu0 0.0
  %2453 = vmatpush1.msra.mxu0 0.0
  %2454 = vmatprep.subr.mxu0 0.0
  %2455 = vmatpush1.msra.mxu0 0.0
  %2456 = vmatprep.subr.mxu0 0.0
  %2457 = vmatpush1.msra.mxu0 0.0
  %2458 = vmatprep.subr.mxu0 0.0
  %2459 = vmatpush1.msra.mxu0 0.0
  %2460 = vmatprep.subr.mxu0 0.0
  %2461 = vmatpush1.msra.mxu0 0.0
  %2462 = vmatprep.subr.mxu0 0.0
  %2463 = vmatpush1.msra.mxu0 0.0
  %2464 = vmatprep.subr.mxu0 0.0
  %2465 = vmatpush1.msra.mxu0 0.0
  %2466 = vmatprep.subr.mxu0 0.0
  %2467 = vmatpush1.msra.mxu0 0.0
  %2468 = vmatprep.subr.mxu0 0.0
  %2469 = vmatpush1.msra.mxu0 0.0
  %2470 = vmatprep.subr.mxu0 0.0
  %2471 = vmatpush1.msra.mxu0 0.0
  %2472 = vmatprep.subr.mxu0 0.0
  %2473 = vmatpush1.msra.mxu0 0.0
  %2474 = vmatprep.subr.mxu0 0.0
  %2475 = vmatpush1.msra.mxu0 0.0
  %2476 = vmatprep.mubr.f32.mxu0 0.0
  %2477 = vmatmul.mubr.f32.gmra.mrb[0].mxu0 %v2148
  %v2478 = vpop.f32.mrb[0].mxu0
  %v2479 = vadd.f32 0.0, %v2478
  %v2480 = vpop.f32.mrb[0].mxu0
  %v2481 = vadd.f32 0.0, %v2480
  %2482 = vdwg.mxu0
  %v2483 = vadd.f32 %v2337, %v2408
  %v2484 = vadd.f32 %v2338, %v2410
  %v2485 = vadd.f32 %v2339, %v2479
  %v2486 = vadd.f32 %v2340, %v2481
  %v2487 = vxor.u32 %v2483, 2147483648
  %v2488 = vmul.f32 %v2487, 1.442695
  %v2489 = vpow.pop %v2488
  %v2490 = vadd.f32 %v2489, 1.0
  %v2491 = vrcp.pop %v2490
  %v2492 = vmul.f32 1.0, %v2491
  %v2493 = vxor.u32 %v2484, 2147483648
  %v2494 = vmul.f32 %v2493, 1.442695
  %v2495 = vpow.pop %v2494
  %v2496 = vadd.f32 %v2495, 1.0
  %v2497 = vrcp.pop %v2496
  %v2498 = vmul.f32 1.0, %v2497
  %v2499 = vtanh.pop %v2485
  %v2500 = vxor.u32 %v2486, 2147483648
  %v2501 = vmul.f32 %v2500, 1.442695
  %v2502 = vpow.pop %v2501
  %v2503 = vadd.f32 %v2502, 1.0
  %v2504 = vrcp.pop %v2503
  %v2505 = vmul.f32 1.0, %v2504
  %v2506 = vmul.f32 %v2498, %v2149
  %v2507 = vmul.f32 %v2492, %v2499
  %v2508 = vadd.f32 %v2506, %v2507
  %v2509 = vtanh.pop %v2508
  %v2510 = vmul.f32 %v2505, %v2509
  %s2511 = sadd.s32 %s850, 4
  %v2512 = vstv %s2511
  %vm2513 = vcmp.lt.s32.totalorder %v2512, %v849
  %v2514 = vsel %vm2513, %v2510, 0.0
  %s2515 = scalar_lea.vmem %s9, 32
  %2516 = vst [vmem:[%s2515] sm:$0xff] %v2514
  %v2517 = vsel %vm2513, %v2510, %v2148
  %v2518 = vsel %vm2513, %v2508, %v2149
  %s2519 = smul.addr %s1965, 8
  %s2520 = scalar_lea.vmem [#allocation3], %s2519
  %v2521 = vld [vmem:[%s2520] sm:$0xff]
  %v2522 = vld [vmem:[%s2520 + $0x8] sm:$0xff]
  %v2523 = vld [vmem:[%s2520 + $0x10] sm:$0xff]
  %v2524 = vld [vmem:[%s2520 + $0x18] sm:$0xff]
  %2525 = vmatprep.subr.mxu0 %v786
  %2526 = vmatpush1.msra.mxu0 %v785
  %2527 = vmatprep.subr.mxu0 %v790
  %2528 = vmatpush1.msra.mxu0 %v789
  %2529 = vmatprep.subr.mxu0 %v794
  %2530 = vmatpush1.msra.mxu0 %v793
  %2531 = vmatprep.subr.mxu0 %v798
  %2532 = vmatpush1.msra.mxu0 %v797
  %2533 = vmatprep.subr.mxu0 %v802
  %2534 = vmatpush1.msra.mxu0 %v801
  %2535 = vmatprep.subr.mxu0 %v806
  %2536 = vmatpush1.msra.mxu0 %v805
  %2537 = vmatprep.subr.mxu0 %v810
  %2538 = vmatpush1.msra.mxu0 %v809
  %2539 = vmatprep.subr.mxu0 %v814
  %2540 = vmatpush1.msra.mxu0 %v813
  %2541 = vmatprep.subr.mxu0 %v818
  %2542 = vmatpush1.msra.mxu0 %v817
  %2543 = vmatprep.subr.mxu0 %v822
  %2544 = vmatpush1.msra.mxu0 %v821
  %2545 = vmatprep.subr.mxu0 %v826
  %2546 = vmatpush1.msra.mxu0 %v825
  %2547 = vmatprep.subr.mxu0 %v830
  %2548 = vmatpush1.msra.mxu0 %v829
  %2549 = vmatprep.subr.mxu0 %v834
  %2550 = vmatpush1.msra.mxu0 %v833
  %2551 = vmatprep.subr.mxu0 %v838
  %2552 = vmatpush1.msra.mxu0 %v837
  %2553 = vmatprep.subr.mxu0 %v842
  %2554 = vmatpush1.msra.mxu0 %v841
  %2555 = vmatprep.subr.mxu0 %v846
  %2556 = vmatpush1.msra.mxu0 %v845
  %2557 = vmatprep.subr.mxu0 0.0
  %2558 = vmatpush1.msra.mxu0 0.0
  %2559 = vmatprep.subr.mxu0 0.0
  %2560 = vmatpush1.msra.mxu0 0.0
  %2561 = vmatprep.subr.mxu0 0.0
  %2562 = vmatpush1.msra.mxu0 0.0
  %2563 = vmatprep.subr.mxu0 0.0
  %2564 = vmatpush1.msra.mxu0 0.0
  %2565 = vmatprep.subr.mxu0 0.0
  %2566 = vmatpush1.msra.mxu0 0.0
  %2567 = vmatprep.subr.mxu0 0.0
  %2568 = vmatpush1.msra.mxu0 0.0
  %2569 = vmatprep.subr.mxu0 0.0
  %2570 = vmatpush1.msra.mxu0 0.0
  %2571 = vmatprep.subr.mxu0 0.0
  %2572 = vmatpush1.msra.mxu0 0.0
  %2573 = vmatprep.subr.mxu0 0.0
  %2574 = vmatpush1.msra.mxu0 0.0
  %2575 = vmatprep.subr.mxu0 0.0
  %2576 = vmatpush1.msra.mxu0 0.0
  %2577 = vmatprep.subr.mxu0 0.0
  %2578 = vmatpush1.msra.mxu0 0.0
  %2579 = vmatprep.subr.mxu0 0.0
  %2580 = vmatpush1.msra.mxu0 0.0
  %2581 = vmatprep.subr.mxu0 0.0
  %2582 = vmatpush1.msra.mxu0 0.0
  %2583 = vmatprep.subr.mxu0 0.0
  %2584 = vmatpush1.msra.mxu0 0.0
  %2585 = vmatprep.subr.mxu0 0.0
  %2586 = vmatpush1.msra.mxu0 0.0
  %2587 = vmatprep.subr.mxu0 0.0
  %2588 = vmatpush1.msra.mxu0 0.0
  %2589 = vmatprep.mubr.f32.mxu0 0.0
  %2590 = vmatmul.mubr.f32.gmra.mrb[0].mxu0 %v2333
  %v2591 = vpop.f32.mrb[0].mxu0
  %v2592 = vadd.f32 0.0, %v2591
  %v2593 = vpop.f32.mrb[0].mxu0
  %v2594 = vadd.f32 0.0, %v2593
  %2595 = vdwg.mxu0
  %2596 = vmatprep.subr.mxu0 %v788
  %2597 = vmatpush1.msra.mxu0 %v787
  %2598 = vmatprep.subr.mxu0 %v792
  %2599 = vmatpush1.msra.mxu0 %v791
  %2600 = vmatprep.subr.mxu0 %v796
  %2601 = vmatpush1.msra.mxu0 %v795
  %2602 = vmatprep.subr.mxu0 %v800
  %2603 = vmatpush1.msra.mxu0 %v799
  %2604 = vmatprep.subr.mxu0 %v804
  %2605 = vmatpush1.msra.mxu0 %v803
  %2606 = vmatprep.subr.mxu0 %v808
  %2607 = vmatpush1.msra.mxu0 %v807
  %2608 = vmatprep.subr.mxu0 %v812
  %2609 = vmatpush1.msra.mxu0 %v811
  %2610 = vmatprep.subr.mxu0 %v816
  %2611 = vmatpush1.msra.mxu0 %v815
  %2612 = vmatprep.subr.mxu0 %v820
  %2613 = vmatpush1.msra.mxu0 %v819
  %2614 = vmatprep.subr.mxu0 %v824
  %2615 = vmatpush1.msra.mxu0 %v823
  %2616 = vmatprep.subr.mxu0 %v828
  %2617 = vmatpush1.msra.mxu0 %v827
  %2618 = vmatprep.subr.mxu0 %v832
  %2619 = vmatpush1.msra.mxu0 %v831
  %2620 = vmatprep.subr.mxu0 %v836
  %2621 = vmatpush1.msra.mxu0 %v835
  %2622 = vmatprep.subr.mxu0 %v840
  %2623 = vmatpush1.msra.mxu0 %v839
  %2624 = vmatprep.subr.mxu0 %v844
  %2625 = vmatpush1.msra.mxu0 %v843
  %2626 = vmatprep.subr.mxu0 %v848
  %2627 = vmatpush1.msra.mxu0 %v847
  %2628 = vmatprep.subr.mxu0 0.0
  %2629 = vmatpush1.msra.mxu0 0.0
  %2630 = vmatprep.subr.mxu0 0.0
  %2631 = vmatpush1.msra.mxu0 0.0
  %2632 = vmatprep.subr.mxu0 0.0
  %2633 = vmatpush1.msra.mxu0 0.0
  %2634 = vmatprep.subr.mxu0 0.0
  %2635 = vmatpush1.msra.mxu0 0.0
  %2636 = vmatprep.subr.mxu0 0.0
  %2637 = vmatpush1.msra.mxu0 0.0
  %2638 = vmatprep.subr.mxu0 0.0
  %2639 = vmatpush1.msra.mxu0 0.0
  %2640 = vmatprep.subr.mxu0 0.0
  %2641 = vmatpush1.msra.mxu0 0.0
  %2642 = vmatprep.subr.mxu0 0.0
  %2643 = vmatpush1.msra.mxu0 0.0
  %2644 = vmatprep.subr.mxu0 0.0
  %2645 = vmatpush1.msra.mxu0 0.0
  %2646 = vmatprep.subr.mxu0 0.0
  %2647 = vmatpush1.msra.mxu0 0.0
  %2648 = vmatprep.subr.mxu0 0.0
  %2649 = vmatpush1.msra.mxu0 0.0
  %2650 = vmatprep.subr.mxu0 0.0
  %2651 = vmatpush1.msra.mxu0 0.0
  %2652 = vmatprep.subr.mxu0 0.0
  %2653 = vmatpush1.msra.mxu0 0.0
  %2654 = vmatprep.subr.mxu0 0.0
  %2655 = vmatpush1.msra.mxu0 0.0
  %2656 = vmatprep.subr.mxu0 0.0
  %2657 = vmatpush1.msra.mxu0 0.0
  %2658 = vmatprep.subr.mxu0 0.0
  %2659 = vmatpush1.msra.mxu0 0.0
  %2660 = vmatprep.mubr.f32.mxu0 0.0
  %2661 = vmatmul.mubr.f32.gmra.mrb[0].mxu0 %v2333
  %v2662 = vpop.f32.mrb[0].mxu0
  %v2663 = vadd.f32 0.0, %v2662
  %v2664 = vpop.f32.mrb[0].mxu0
  %v2665 = vadd.f32 0.0, %v2664
  %2666 = vdwg.mxu0
  %v2667 = vadd.f32 %v2521, %v2592
  %v2668 = vadd.f32 %v2522, %v2594
  %v2669 = vadd.f32 %v2523, %v2663
  %v2670 = vadd.f32 %v2524, %v2665
  %v2671 = vxor.u32 %v2667, 2147483648
  %v2672 = vmul.f32 %v2671, 1.442695
  %v2673 = vpow.pop %v2672
  %v2674 = vadd.f32 %v2673, 1.0
  %v2675 = vrcp.pop %v2674
  %v2676 = vmul.f32 1.0, %v2675
  %v2677 = vxor.u32 %v2668, 2147483648
  %v2678 = vmul.f32 %v2677, 1.442695
  %v2679 = vpow.pop %v2678
  %v2680 = vadd.f32 %v2679, 1.0
  %v2681 = vrcp.pop %v2680
  %v2682 = vmul.f32 1.0, %v2681
  %v2683 = vtanh.pop %v2669
  %v2684 = vxor.u32 %v2670, 2147483648
  %v2685 = vmul.f32 %v2684, 1.442695
  %v2686 = vpow.pop %v2685
  %v2687 = vadd.f32 %v2686, 1.0
  %v2688 = vrcp.pop %v2687
  %v2689 = vmul.f32 1.0, %v2688
  %v2690 = vmul.f32 %v2682, %v2334
  %v2691 = vmul.f32 %v2676, %v2683
  %v2692 = vadd.f32 %v2690, %v2691
  %v2693 = vtanh.pop %v2692
  %v2694 = vmul.f32 %v2689, %v2693
  %s2695 = sadd.s32 %s852, 3
  %v2696 = vstv %s2695
  %vm2697 = vcmp.lt.s32.totalorder %v2696, %v849
  %v2698 = vsel %vm2697, %v2694, 0.0
  %s2699 = scalar_lea.vmem %s69, 24
  %2700 = vst [vmem:[%s2699] sm:$0xff] %v2698
  %v2701 = vsel %vm2697, %v2694, %v2333
  %v2702 = vsel %vm2697, %v2692, %v2334
  %s2703 = smul.addr %s1780, 8
  %s2704 = scalar_lea.vmem [#allocation2], %s2703
  %v2705 = vld [vmem:[%s2704] sm:$0xff]
  %v2706 = vld [vmem:[%s2704 + $0x8] sm:$0xff]
  %v2707 = vld [vmem:[%s2704 + $0x10] sm:$0xff]
  %v2708 = vld [vmem:[%s2704 + $0x18] sm:$0xff]
  %2709 = vmatprep.subr.mxu0 %v722
  %2710 = vmatpush1.msra.mxu0 %v721
  %2711 = vmatprep.subr.mxu0 %v726
  %2712 = vmatpush1.msra.mxu0 %v725
  %2713 = vmatprep.subr.mxu0 %v730
  %2714 = vmatpush1.msra.mxu0 %v729
  %2715 = vmatprep.subr.mxu0 %v734
  %2716 = vmatpush1.msra.mxu0 %v733
  %2717 = vmatprep.subr.mxu0 %v738
  %2718 = vmatpush1.msra.mxu0 %v737
  %2719 = vmatprep.subr.mxu0 %v742
  %2720 = vmatpush1.msra.mxu0 %v741
  %2721 = vmatprep.subr.mxu0 %v746
  %2722 = vmatpush1.msra.mxu0 %v745
  %2723 = vmatprep.subr.mxu0 %v750
  %2724 = vmatpush1.msra.mxu0 %v749
  %2725 = vmatprep.subr.mxu0 %v754
  %2726 = vmatpush1.msra.mxu0 %v753
  %2727 = vmatprep.subr.mxu0 %v758
  %2728 = vmatpush1.msra.mxu0 %v757
  %2729 = vmatprep.subr.mxu0 %v762
  %2730 = vmatpush1.msra.mxu0 %v761
  %2731 = vmatprep.subr.mxu0 %v766
  %2732 = vmatpush1.msra.mxu0 %v765
  %2733 = vmatprep.subr.mxu0 %v770
  %2734 = vmatpush1.msra.mxu0 %v769
  %2735 = vmatprep.subr.mxu0 %v774
  %2736 = vmatpush1.msra.mxu0 %v773
  %2737 = vmatprep.subr.mxu0 %v778
  %2738 = vmatpush1.msra.mxu0 %v777
  %2739 = vmatprep.subr.mxu0 %v782
  %2740 = vmatpush1.msra.mxu0 %v781
  %2741 = vmatprep.subr.mxu0 0.0
  %2742 = vmatpush1.msra.mxu0 0.0
  %2743 = vmatprep.subr.mxu0 0.0
  %2744 = vmatpush1.msra.mxu0 0.0
  %2745 = vmatprep.subr.mxu0 0.0
  %2746 = vmatpush1.msra.mxu0 0.0
  %2747 = vmatprep.subr.mxu0 0.0
  %2748 = vmatpush1.msra.mxu0 0.0
  %2749 = vmatprep.subr.mxu0 0.0
  %2750 = vmatpush1.msra.mxu0 0.0
  %2751 = vmatprep.subr.mxu0 0.0
  %2752 = vmatpush1.msra.mxu0 0.0
  %2753 = vmatprep.subr.mxu0 0.0
  %2754 = vmatpush1.msra.mxu0 0.0
  %2755 = vmatprep.subr.mxu0 0.0
  %2756 = vmatpush1.msra.mxu0 0.0
  %2757 = vmatprep.subr.mxu0 0.0
  %2758 = vmatpush1.msra.mxu0 0.0
  %2759 = vmatprep.subr.mxu0 0.0
  %2760 = vmatpush1.msra.mxu0 0.0
  %2761 = vmatprep.subr.mxu0 0.0
  %2762 = vmatpush1.msra.mxu0 0.0
  %2763 = vmatprep.subr.mxu0 0.0
  %2764 = vmatpush1.msra.mxu0 0.0
  %2765 = vmatprep.subr.mxu0 0.0
  %2766 = vmatpush1.msra.mxu0 0.0
  %2767 = vmatprep.subr.mxu0 0.0
  %2768 = vmatpush1.msra.mxu0 0.0
  %2769 = vmatprep.subr.mxu0 0.0
  %2770 = vmatpush1.msra.mxu0 0.0
  %2771 = vmatprep.subr.mxu0 0.0
  %2772 = vmatpush1.msra.mxu0 0.0
  %2773 = vmatprep.mubr.f32.mxu0 0.0
  %2774 = vmatmul.mubr.f32.gmra.mrb[0].mxu0 %v2517
  %v2775 = vpop.f32.mrb[0].mxu0
  %v2776 = vadd.f32 0.0, %v2775
  %v2777 = vpop.f32.mrb[0].mxu0
  %v2778 = vadd.f32 0.0, %v2777
  %2779 = vdwg.mxu0
  %2780 = vmatprep.subr.mxu0 %v724
  %2781 = vmatpush1.msra.mxu0 %v723
  %2782 = vmatprep.subr.mxu0 %v728
  %2783 = vmatpush1.msra.mxu0 %v727
  %2784 = vmatprep.subr.mxu0 %v732
  %2785 = vmatpush1.msra.mxu0 %v731
  %2786 = vmatprep.subr.mxu0 %v736
  %2787 = vmatpush1.msra.mxu0 %v735
  %2788 = vmatprep.subr.mxu0 %v740
  %2789 = vmatpush1.msra.mxu0 %v739
  %2790 = vmatprep.subr.mxu0 %v744
  %2791 = vmatpush1.msra.mxu0 %v743
  %2792 = vmatprep.subr.mxu0 %v748
  %2793 = vmatpush1.msra.mxu0 %v747
  %2794 = vmatprep.subr.mxu0 %v752
  %2795 = vmatpush1.msra.mxu0 %v751
  %2796 = vmatprep.subr.mxu0 %v756
  %2797 = vmatpush1.msra.mxu0 %v755
  %2798 = vmatprep.subr.mxu0 %v760
  %2799 = vmatpush1.msra.mxu0 %v759
  %2800 = vmatprep.subr.mxu0 %v764
  %2801 = vmatpush1.msra.mxu0 %v763
  %2802 = vmatprep.subr.mxu0 %v768
  %2803 = vmatpush1.msra.mxu0 %v767
  %2804 = vmatprep.subr.mxu0 %v772
  %2805 = vmatpush1.msra.mxu0 %v771
  %2806 = vmatprep.subr.mxu0 %v776
  %2807 = vmatpush1.msra.mxu0 %v775
  %2808 = vmatprep.subr.mxu0 %v780
  %2809 = vmatpush1.msra.mxu0 %v779
  %2810 = vmatprep.subr.mxu0 %v784
  %2811 = vmatpush1.msra.mxu0 %v783
  %2812 = vmatprep.subr.mxu0 0.0
  %2813 = vmatpush1.msra.mxu0 0.0
  %2814 = vmatprep.subr.mxu0 0.0
  %2815 = vmatpush1.msra.mxu0 0.0
  %2816 = vmatprep.subr.mxu0 0.0
  %2817 = vmatpush1.msra.mxu0 0.0
  %2818 = vmatprep.subr.mxu0 0.0
  %2819 = vmatpush1.msra.mxu0 0.0
  %2820 = vmatprep.subr.mxu0 0.0
  %2821 = vmatpush1.msra.mxu0 0.0
  %2822 = vmatprep.subr.mxu0 0.0
  %2823 = vmatpush1.msra.mxu0 0.0
  %2824 = vmatprep.subr.mxu0 0.0
  %2825 = vmatpush1.msra.mxu0 0.0
  %2826 = vmatprep.subr.mxu0 0.0
  %2827 = vmatpush1.msra.mxu0 0.0
  %2828 = vmatprep.subr.mxu0 0.0
  %2829 = vmatpush1.msra.mxu0 0.0
  %2830 = vmatprep.subr.mxu0 0.0
  %2831 = vmatpush1.msra.mxu0 0.0
  %2832 = vmatprep.subr.mxu0 0.0
  %2833 = vmatpush1.msra.mxu0 0.0
  %2834 = vmatprep.subr.mxu0 0.0
  %2835 = vmatpush1.msra.mxu0 0.0
  %2836 = vmatprep.subr.mxu0 0.0
  %2837 = vmatpush1.msra.mxu0 0.0
  %2838 = vmatprep.subr.mxu0 0.0
  %2839 = vmatpush1.msra.mxu0 0.0
  %2840 = vmatprep.subr.mxu0 0.0
  %2841 = vmatpush1.msra.mxu0 0.0
  %2842 = vmatprep.subr.mxu0 0.0
  %2843 = vmatpush1.msra.mxu0 0.0
  %2844 = vmatprep.mubr.f32.mxu0 0.0
  %2845 = vmatmul.mubr.f32.gmra.mrb[0].mxu0 %v2517
  %v2846 = vpop.f32.mrb[0].mxu0
  %v2847 = vadd.f32 0.0, %v2846
  %v2848 = vpop.f32.mrb[0].mxu0
  %v2849 = vadd.f32 0.0, %v2848
  %2850 = vdwg.mxu0
  %v2851 = vadd.f32 %v2705, %v2776
  %v2852 = vadd.f32 %v2706, %v2778
  %v2853 = vadd.f32 %v2707, %v2847
  %v2854 = vadd.f32 %v2708, %v2849
  %v2855 = vxor.u32 %v2851, 2147483648
  %v2856 = vmul.f32 %v2855, 1.442695
  %v2857 = vpow.pop %v2856
  %v2858 = vadd.f32 %v2857, 1.0
  %v2859 = vrcp.pop %v2858
  %v2860 = vmul.f32 1.0, %v2859
  %v2861 = vxor.u32 %v2852, 2147483648
  %v2862 = vmul.f32 %v2861, 1.442695
  %v2863 = vpow.pop %v2862
  %v2864 = vadd.f32 %v2863, 1.0
  %v2865 = vrcp.pop %v2864
  %v2866 = vmul.f32 1.0, %v2865
  %v2867 = vtanh.pop %v2853
  %v2868 = vxor.u32 %v2854, 2147483648
  %v2869 = vmul.f32 %v2868, 1.442695
  %v2870 = vpow.pop %v2869
  %v2871 = vadd.f32 %v2870, 1.0
  %v2872 = vrcp.pop %v2871
  %v2873 = vmul.f32 1.0, %v2872
  %v2874 = vmul.f32 %v2866, %v2518
  %v2875 = vmul.f32 %v2860, %v2867
  %v2876 = vadd.f32 %v2874, %v2875
  %v2877 = vtanh.pop %v2876
  %v2878 = vmul.f32 %v2873, %v2877
  %s2879 = sadd.s32 %s850, 5
  %v2880 = vstv %s2879
  %vm2881 = vcmp.lt.s32.totalorder %v2880, %v849
  %v2882 = vsel %vm2881, %v2878, 0.0
  %s2883 = scalar_lea.vmem %s9, 40
  %2884 = vst [vmem:[%s2883] sm:$0xff] %v2882
  %v2885 = vsel %vm2881, %v2878, %v2517
  %v2886 = vsel %vm2881, %v2876, %v2518
  %s2887 = smul.addr %s1595, 8
  %s2888 = scalar_lea.vmem [#allocation3], %s2887
  %v2889 = vld [vmem:[%s2888] sm:$0xff]
  %v2890 = vld [vmem:[%s2888 + $0x8] sm:$0xff]
  %v2891 = vld [vmem:[%s2888 + $0x10] sm:$0xff]
  %v2892 = vld [vmem:[%s2888 + $0x18] sm:$0xff]
  %2893 = vmatprep.subr.mxu0 %v786
  %2894 = vmatpush1.msra.mxu0 %v785
  %2895 = vmatprep.subr.mxu0 %v790
  %2896 = vmatpush1.msra.mxu0 %v789
  %2897 = vmatprep.subr.mxu0 %v794
  %2898 = vmatpush1.msra.mxu0 %v793
  %2899 = vmatprep.subr.mxu0 %v798
  %2900 = vmatpush1.msra.mxu0 %v797
  %2901 = vmatprep.subr.mxu0 %v802
  %2902 = vmatpush1.msra.mxu0 %v801
  %2903 = vmatprep.subr.mxu0 %v806
  %2904 = vmatpush1.msra.mxu0 %v805
  %2905 = vmatprep.subr.mxu0 %v810
  %2906 = vmatpush1.msra.mxu0 %v809
  %2907 = vmatprep.subr.mxu0 %v814
  %2908 = vmatpush1.msra.mxu0 %v813
  %2909 = vmatprep.subr.mxu0 %v818
  %2910 = vmatpush1.msra.mxu0 %v817
  %2911 = vmatprep.subr.mxu0 %v822
  %2912 = vmatpush1.msra.mxu0 %v821
  %2913 = vmatprep.subr.mxu0 %v826
  %2914 = vmatpush1.msra.mxu0 %v825
  %2915 = vmatprep.subr.mxu0 %v830
  %2916 = vmatpush1.msra.mxu0 %v829
  %2917 = vmatprep.subr.mxu0 %v834
  %2918 = vmatpush1.msra.mxu0 %v833
  %2919 = vmatprep.subr.mxu0 %v838
  %2920 = vmatpush1.msra.mxu0 %v837
  %2921 = vmatprep.subr.mxu0 %v842
  %2922 = vmatpush1.msra.mxu0 %v841
  %2923 = vmatprep.subr.mxu0 %v846
  %2924 = vmatpush1.msra.mxu0 %v845
  %2925 = vmatprep.subr.mxu0 0.0
  %2926 = vmatpush1.msra.mxu0 0.0
  %2927 = vmatprep.subr.mxu0 0.0
  %2928 = vmatpush1.msra.mxu0 0.0
  %2929 = vmatprep.subr.mxu0 0.0
  %2930 = vmatpush1.msra.mxu0 0.0
  %2931 = vmatprep.subr.mxu0 0.0
  %2932 = vmatpush1.msra.mxu0 0.0
  %2933 = vmatprep.subr.mxu0 0.0
  %2934 = vmatpush1.msra.mxu0 0.0
  %2935 = vmatprep.subr.mxu0 0.0
  %2936 = vmatpush1.msra.mxu0 0.0
  %2937 = vmatprep.subr.mxu0 0.0
  %2938 = vmatpush1.msra.mxu0 0.0
  %2939 = vmatprep.subr.mxu0 0.0
  %2940 = vmatpush1.msra.mxu0 0.0
  %2941 = vmatprep.subr.mxu0 0.0
  %2942 = vmatpush1.msra.mxu0 0.0
  %2943 = vmatprep.subr.mxu0 0.0
  %2944 = vmatpush1.msra.mxu0 0.0
  %2945 = vmatprep.subr.mxu0 0.0
  %2946 = vmatpush1.msra.mxu0 0.0
  %2947 = vmatprep.subr.mxu0 0.0
  %2948 = vmatpush1.msra.mxu0 0.0
  %2949 = vmatprep.subr.mxu0 0.0
  %2950 = vmatpush1.msra.mxu0 0.0
  %2951 = vmatprep.subr.mxu0 0.0
  %2952 = vmatpush1.msra.mxu0 0.0
  %2953 = vmatprep.subr.mxu0 0.0
  %2954 = vmatpush1.msra.mxu0 0.0
  %2955 = vmatprep.subr.mxu0 0.0
  %2956 = vmatpush1.msra.mxu0 0.0
  %2957 = vmatprep.mubr.f32.mxu0 0.0
  %2958 = vmatmul.mubr.f32.gmra.mrb[0].mxu0 %v2701
  %v2959 = vpop.f32.mrb[0].mxu0
  %v2960 = vadd.f32 0.0, %v2959
  %v2961 = vpop.f32.mrb[0].mxu0
  %v2962 = vadd.f32 0.0, %v2961
  %2963 = vdwg.mxu0
  %2964 = vmatprep.subr.mxu0 %v788
  %2965 = vmatpush1.msra.mxu0 %v787
  %2966 = vmatprep.subr.mxu0 %v792
  %2967 = vmatpush1.msra.mxu0 %v791
  %2968 = vmatprep.subr.mxu0 %v796
  %2969 = vmatpush1.msra.mxu0 %v795
  %2970 = vmatprep.subr.mxu0 %v800
  %2971 = vmatpush1.msra.mxu0 %v799
  %2972 = vmatprep.subr.mxu0 %v804
  %2973 = vmatpush1.msra.mxu0 %v803
  %2974 = vmatprep.subr.mxu0 %v808
  %2975 = vmatpush1.msra.mxu0 %v807
  %2976 = vmatprep.subr.mxu0 %v812
  %2977 = vmatpush1.msra.mxu0 %v811
  %2978 = vmatprep.subr.mxu0 %v816
  %2979 = vmatpush1.msra.mxu0 %v815
  %2980 = vmatprep.subr.mxu0 %v820
  %2981 = vmatpush1.msra.mxu0 %v819
  %2982 = vmatprep.subr.mxu0 %v824
  %2983 = vmatpush1.msra.mxu0 %v823
  %2984 = vmatprep.subr.mxu0 %v828
  %2985 = vmatpush1.msra.mxu0 %v827
  %2986 = vmatprep.subr.mxu0 %v832
  %2987 = vmatpush1.msra.mxu0 %v831
  %2988 = vmatprep.subr.mxu0 %v836
  %2989 = vmatpush1.msra.mxu0 %v835
  %2990 = vmatprep.subr.mxu0 %v840
  %2991 = vmatpush1.msra.mxu0 %v839
  %2992 = vmatprep.subr.mxu0 %v844
  %2993 = vmatpush1.msra.mxu0 %v843
  %2994 = vmatprep.subr.mxu0 %v848
  %2995 = vmatpush1.msra.mxu0 %v847
  %2996 = vmatprep.subr.mxu0 0.0
  %2997 = vmatpush1.msra.mxu0 0.0
  %2998 = vmatprep.subr.mxu0 0.0
  %2999 = vmatpush1.msra.mxu0 0.0
  %3000 = vmatprep.subr.mxu0 0.0
  %3001 = vmatpush1.msra.mxu0 0.0
  %3002 = vmatprep.subr.mxu0 0.0
  %3003 = vmatpush1.msra.mxu0 0.0
  %3004 = vmatprep.subr.mxu0 0.0
  %3005 = vmatpush1.msra.mxu0 0.0
  %3006 = vmatprep.subr.mxu0 0.0
  %3007 = vmatpush1.msra.mxu0 0.0
  %3008 = vmatprep.subr.mxu0 0.0
  %3009 = vmatpush1.msra.mxu0 0.0
  %3010 = vmatprep.subr.mxu0 0.0
  %3011 = vmatpush1.msra.mxu0 0.0
  %3012 = vmatprep.subr.mxu0 0.0
  %3013 = vmatpush1.msra.mxu0 0.0
  %3014 = vmatprep.subr.mxu0 0.0
  %3015 = vmatpush1.msra.mxu0 0.0
  %3016 = vmatprep.subr.mxu0 0.0
  %3017 = vmatpush1.msra.mxu0 0.0
  %3018 = vmatprep.subr.mxu0 0.0
  %3019 = vmatpush1.msra.mxu0 0.0
  %3020 = vmatprep.subr.mxu0 0.0
  %3021 = vmatpush1.msra.mxu0 0.0
  %3022 = vmatprep.subr.mxu0 0.0
  %3023 = vmatpush1.msra.mxu0 0.0
  %3024 = vmatprep.subr.mxu0 0.0
  %3025 = vmatpush1.msra.mxu0 0.0
  %3026 = vmatprep.subr.mxu0 0.0
  %3027 = vmatpush1.msra.mxu0 0.0
  %3028 = vmatprep.mubr.f32.mxu0 0.0
  %3029 = vmatmul.mubr.f32.gmra.mrb[0].mxu0 %v2701
  %v3030 = vpop.f32.mrb[0].mxu0
  %v3031 = vadd.f32 0.0, %v3030
  %v3032 = vpop.f32.mrb[0].mxu0
  %v3033 = vadd.f32 0.0, %v3032
  %3034 = vdwg.mxu0
  %v3035 = vadd.f32 %v2889, %v2960
  %v3036 = vadd.f32 %v2890, %v2962
  %v3037 = vadd.f32 %v2891, %v3031
  %v3038 = vadd.f32 %v2892, %v3033
  %v3039 = vxor.u32 %v3035, 2147483648
  %v3040 = vmul.f32 %v3039, 1.442695
  %v3041 = vpow.pop %v3040
  %v3042 = vadd.f32 %v3041, 1.0
  %v3043 = vrcp.pop %v3042
  %v3044 = vmul.f32 1.0, %v3043
  %v3045 = vxor.u32 %v3036, 2147483648
  %v3046 = vmul.f32 %v3045, 1.442695
  %v3047 = vpow.pop %v3046
  %v3048 = vadd.f32 %v3047, 1.0
  %v3049 = vrcp.pop %v3048
  %v3050 = vmul.f32 1.0, %v3049
  %v3051 = vtanh.pop %v3037
  %v3052 = vxor.u32 %v3038, 2147483648
  %v3053 = vmul.f32 %v3052, 1.442695
  %v3054 = vpow.pop %v3053
  %v3055 = vadd.f32 %v3054, 1.0
  %v3056 = vrcp.pop %v3055
  %v3057 = vmul.f32 1.0, %v3056
  %v3058 = vmul.f32 %v3050, %v2702
  %v3059 = vmul.f32 %v3044, %v3051
  %v3060 = vadd.f32 %v3058, %v3059
  %v3061 = vtanh.pop %v3060
  %v3062 = vmul.f32 %v3057, %v3061
  %s3063 = sadd.s32 %s852, 2
  %v3064 = vstv %s3063
  %vm3065 = vcmp.lt.s32.totalorder %v3064, %v849
  %v3066 = vsel %vm3065, %v3062, 0.0
  %s3067 = scalar_lea.vmem %s69, 16
  %3068 = vst [vmem:[%s3067] sm:$0xff] %v3066
  %v3069 = vsel %vm3065, %v3062, %v2701
  %v3070 = vsel %vm3065, %v3060, %v2702
  %s3071 = smul.addr %s1410, 8
  %s3072 = scalar_lea.vmem [#allocation2], %s3071
  %v3073 = vld [vmem:[%s3072] sm:$0xff]
  %v3074 = vld [vmem:[%s3072 + $0x8] sm:$0xff]
  %v3075 = vld [vmem:[%s3072 + $0x10] sm:$0xff]
  %v3076 = vld [vmem:[%s3072 + $0x18] sm:$0xff]
  %3077 = vmatprep.subr.mxu0 %v722
  %3078 = vmatpush1.msra.mxu0 %v721
  %3079 = vmatprep.subr.mxu0 %v726
  %3080 = vmatpush1.msra.mxu0 %v725
  %3081 = vmatprep.subr.mxu0 %v730
  %3082 = vmatpush1.msra.mxu0 %v729
  %3083 = vmatprep.subr.mxu0 %v734
  %3084 = vmatpush1.msra.mxu0 %v733
  %3085 = vmatprep.subr.mxu0 %v738
  %3086 = vmatpush1.msra.mxu0 %v737
  %3087 = vmatprep.subr.mxu0 %v742
  %3088 = vmatpush1.msra.mxu0 %v741
  %3089 = vmatprep.subr.mxu0 %v746
  %3090 = vmatpush1.msra.mxu0 %v745
  %3091 = vmatprep.subr.mxu0 %v750
  %3092 = vmatpush1.msra.mxu0 %v749
  %3093 = vmatprep.subr.mxu0 %v754
  %3094 = vmatpush1.msra.mxu0 %v753
  %3095 = vmatprep.subr.mxu0 %v758
  %3096 = vmatpush1.msra.mxu0 %v757
  %3097 = vmatprep.subr.mxu0 %v762
  %3098 = vmatpush1.msra.mxu0 %v761
  %3099 = vmatprep.subr.mxu0 %v766
  %3100 = vmatpush1.msra.mxu0 %v765
  %3101 = vmatprep.subr.mxu0 %v770
  %3102 = vmatpush1.msra.mxu0 %v769
  %3103 = vmatprep.subr.mxu0 %v774
  %3104 = vmatpush1.msra.mxu0 %v773
  %3105 = vmatprep.subr.mxu0 %v778
  %3106 = vmatpush1.msra.mxu0 %v777
  %3107 = vmatprep.subr.mxu0 %v782
  %3108 = vmatpush1.msra.mxu0 %v781
  %3109 = vmatprep.subr.mxu0 0.0
  %3110 = vmatpush1.msra.mxu0 0.0
  %3111 = vmatprep.subr.mxu0 0.0
  %3112 = vmatpush1.msra.mxu0 0.0
  %3113 = vmatprep.subr.mxu0 0.0
  %3114 = vmatpush1.msra.mxu0 0.0
  %3115 = vmatprep.subr.mxu0 0.0
  %3116 = vmatpush1.msra.mxu0 0.0
  %3117 = vmatprep.subr.mxu0 0.0
  %3118 = vmatpush1.msra.mxu0 0.0
  %3119 = vmatprep.subr.mxu0 0.0
  %3120 = vmatpush1.msra.mxu0 0.0
  %3121 = vmatprep.subr.mxu0 0.0
  %3122 = vmatpush1.msra.mxu0 0.0
  %3123 = vmatprep.subr.mxu0 0.0
  %3124 = vmatpush1.msra.mxu0 0.0
  %3125 = vmatprep.subr.mxu0 0.0
  %3126 = vmatpush1.msra.mxu0 0.0
  %3127 = vmatprep.subr.mxu0 0.0
  %3128 = vmatpush1.msra.mxu0 0.0
  %3129 = vmatprep.subr.mxu0 0.0
  %3130 = vmatpush1.msra.mxu0 0.0
  %3131 = vmatprep.subr.mxu0 0.0
  %3132 = vmatpush1.msra.mxu0 0.0
  %3133 = vmatprep.subr.mxu0 0.0
  %3134 = vmatpush1.msra.mxu0 0.0
  %3135 = vmatprep.subr.mxu0 0.0
  %3136 = vmatpush1.msra.mxu0 0.0
  %3137 = vmatprep.subr.mxu0 0.0
  %3138 = vmatpush1.msra.mxu0 0.0
  %3139 = vmatprep.subr.mxu0 0.0
  %3140 = vmatpush1.msra.mxu0 0.0
  %3141 = vmatprep.mubr.f32.mxu0 0.0
  %3142 = vmatmul.mubr.f32.gmra.mrb[0].mxu0 %v2885
  %v3143 = vpop.f32.mrb[0].mxu0
  %v3144 = vadd.f32 0.0, %v3143
  %v3145 = vpop.f32.mrb[0].mxu0
  %v3146 = vadd.f32 0.0, %v3145
  %3147 = vdwg.mxu0
  %3148 = vmatprep.subr.mxu0 %v724
  %3149 = vmatpush1.msra.mxu0 %v723
  %3150 = vmatprep.subr.mxu0 %v728
  %3151 = vmatpush1.msra.mxu0 %v727
  %3152 = vmatprep.subr.mxu0 %v732
  %3153 = vmatpush1.msra.mxu0 %v731
  %3154 = vmatprep.subr.mxu0 %v736
  %3155 = vmatpush1.msra.mxu0 %v735
  %3156 = vmatprep.subr.mxu0 %v740
  %3157 = vmatpush1.msra.mxu0 %v739
  %3158 = vmatprep.subr.mxu0 %v744
  %3159 = vmatpush1.msra.mxu0 %v743
  %3160 = vmatprep.subr.mxu0 %v748
  %3161 = vmatpush1.msra.mxu0 %v747
  %3162 = vmatprep.subr.mxu0 %v752
  %3163 = vmatpush1.msra.mxu0 %v751
  %3164 = vmatprep.subr.mxu0 %v756
  %3165 = vmatpush1.msra.mxu0 %v755
  %3166 = vmatprep.subr.mxu0 %v760
  %3167 = vmatpush1.msra.mxu0 %v759
  %3168 = vmatprep.subr.mxu0 %v764
  %3169 = vmatpush1.msra.mxu0 %v763
  %3170 = vmatprep.subr.mxu0 %v768
  %3171 = vmatpush1.msra.mxu0 %v767
  %3172 = vmatprep.subr.mxu0 %v772
  %3173 = vmatpush1.msra.mxu0 %v771
  %3174 = vmatprep.subr.mxu0 %v776
  %3175 = vmatpush1.msra.mxu0 %v775
  %3176 = vmatprep.subr.mxu0 %v780
  %3177 = vmatpush1.msra.mxu0 %v779
  %3178 = vmatprep.subr.mxu0 %v784
  %3179 = vmatpush1.msra.mxu0 %v783
  %3180 = vmatprep.subr.mxu0 0.0
  %3181 = vmatpush1.msra.mxu0 0.0
  %3182 = vmatprep.subr.mxu0 0.0
  %3183 = vmatpush1.msra.mxu0 0.0
  %3184 = vmatprep.subr.mxu0 0.0
  %3185 = vmatpush1.msra.mxu0 0.0
  %3186 = vmatprep.subr.mxu0 0.0
  %3187 = vmatpush1.msra.mxu0 0.0
  %3188 = vmatprep.subr.mxu0 0.0
  %3189 = vmatpush1.msra.mxu0 0.0
  %3190 = vmatprep.subr.mxu0 0.0
  %3191 = vmatpush1.msra.mxu0 0.0
  %3192 = vmatprep.subr.mxu0 0.0
  %3193 = vmatpush1.msra.mxu0 0.0
  %3194 = vmatprep.subr.mxu0 0.0
  %3195 = vmatpush1.msra.mxu0 0.0
  %3196 = vmatprep.subr.mxu0 0.0
  %3197 = vmatpush1.msra.mxu0 0.0
  %3198 = vmatprep.subr.mxu0 0.0
  %3199 = vmatpush1.msra.mxu0 0.0
  %3200 = vmatprep.subr.mxu0 0.0
  %3201 = vmatpush1.msra.mxu0 0.0
  %3202 = vmatprep.subr.mxu0 0.0
  %3203 = vmatpush1.msra.mxu0 0.0
  %3204 = vmatprep.subr.mxu0 0.0
  %3205 = vmatpush1.msra.mxu0 0.0
  %3206 = vmatprep.subr.mxu0 0.0
  %3207 = vmatpush1.msra.mxu0 0.0
  %3208 = vmatprep.subr.mxu0 0.0
  %3209 = vmatpush1.msra.mxu0 0.0
  %3210 = vmatprep.subr.mxu0 0.0
  %3211 = vmatpush1.msra.mxu0 0.0
  %3212 = vmatprep.mubr.f32.mxu0 0.0
  %3213 = vmatmul.mubr.f32.gmra.mrb[0].mxu0 %v2885
  %v3214 = vpop.f32.mrb[0].mxu0
  %v3215 = vadd.f32 0.0, %v3214
  %v3216 = vpop.f32.mrb[0].mxu0
  %v3217 = vadd.f32 0.0, %v3216
  %3218 = vdwg.mxu0
  %v3219 = vadd.f32 %v3073, %v3144
  %v3220 = vadd.f32 %v3074, %v3146
  %v3221 = vadd.f32 %v3075, %v3215
  %v3222 = vadd.f32 %v3076, %v3217
  %v3223 = vxor.u32 %v3219, 2147483648
  %v3224 = vmul.f32 %v3223, 1.442695
  %v3225 = vpow.pop %v3224
  %v3226 = vadd.f32 %v3225, 1.0
  %v3227 = vrcp.pop %v3226
  %v3228 = vmul.f32 1.0, %v3227
  %v3229 = vxor.u32 %v3220, 2147483648
  %v3230 = vmul.f32 %v3229, 1.442695
  %v3231 = vpow.pop %v3230
  %v3232 = vadd.f32 %v3231, 1.0
  %v3233 = vrcp.pop %v3232
  %v3234 = vmul.f32 1.0, %v3233
  %v3235 = vtanh.pop %v3221
  %v3236 = vxor.u32 %v3222, 2147483648
  %v3237 = vmul.f32 %v3236, 1.442695
  %v3238 = vpow.pop %v3237
  %v3239 = vadd.f32 %v3238, 1.0
  %v3240 = vrcp.pop %v3239
  %v3241 = vmul.f32 1.0, %v3240
  %v3242 = vmul.f32 %v3234, %v2886
  %v3243 = vmul.f32 %v3228, %v3235
  %v3244 = vadd.f32 %v3242, %v3243
  %v3245 = vtanh.pop %v3244
  %v3246 = vmul.f32 %v3241, %v3245
  %s3247 = sadd.s32 %s850, 6
  %v3248 = vstv %s3247
  %vm3249 = vcmp.lt.s32.totalorder %v3248, %v849
  %v3250 = vsel %vm3249, %v3246, 0.0
  %s3251 = scalar_lea.vmem %s9, 48
  %3252 = vst [vmem:[%s3251] sm:$0xff] %v3250
  %v3253 = vsel %vm3249, %v3246, %v2885
  %v3254 = vsel %vm3249, %v3244, %v2886
  %s3255 = smul.addr %s1225, 8
  %s3256 = scalar_lea.vmem [#allocation3], %s3255
  %v3257 = vld [vmem:[%s3256] sm:$0xff]
  %v3258 = vld [vmem:[%s3256 + $0x8] sm:$0xff]
  %v3259 = vld [vmem:[%s3256 + $0x10] sm:$0xff]
  %v3260 = vld [vmem:[%s3256 + $0x18] sm:$0xff]
  %3261 = vmatprep.subr.mxu0 %v786
  %3262 = vmatpush1.msra.mxu0 %v785
  %3263 = vmatprep.subr.mxu0 %v790
  %3264 = vmatpush1.msra.mxu0 %v789
  %3265 = vmatprep.subr.mxu0 %v794
  %3266 = vmatpush1.msra.mxu0 %v793
  %3267 = vmatprep.subr.mxu0 %v798
  %3268 = vmatpush1.msra.mxu0 %v797
  %3269 = vmatprep.subr.mxu0 %v802
  %3270 = vmatpush1.msra.mxu0 %v801
  %3271 = vmatprep.subr.mxu0 %v806
  %3272 = vmatpush1.msra.mxu0 %v805
  %3273 = vmatprep.subr.mxu0 %v810
  %3274 = vmatpush1.msra.mxu0 %v809
  %3275 = vmatprep.subr.mxu0 %v814
  %3276 = vmatpush1.msra.mxu0 %v813
  %3277 = vmatprep.subr.mxu0 %v818
  %3278 = vmatpush1.msra.mxu0 %v817
  %3279 = vmatprep.subr.mxu0 %v822
  %3280 = vmatpush1.msra.mxu0 %v821
  %3281 = vmatprep.subr.mxu0 %v826
  %3282 = vmatpush1.msra.mxu0 %v825
  %3283 = vmatprep.subr.mxu0 %v830
  %3284 = vmatpush1.msra.mxu0 %v829
  %3285 = vmatprep.subr.mxu0 %v834
  %3286 = vmatpush1.msra.mxu0 %v833
  %3287 = vmatprep.subr.mxu0 %v838
  %3288 = vmatpush1.msra.mxu0 %v837
  %3289 = vmatprep.subr.mxu0 %v842
  %3290 = vmatpush1.msra.mxu0 %v841
  %3291 = vmatprep.subr.mxu0 %v846
  %3292 = vmatpush1.msra.mxu0 %v845
  %3293 = vmatprep.subr.mxu0 0.0
  %3294 = vmatpush1.msra.mxu0 0.0
  %3295 = vmatprep.subr.mxu0 0.0
  %3296 = vmatpush1.msra.mxu0 0.0
  %3297 = vmatprep.subr.mxu0 0.0
  %3298 = vmatpush1.msra.mxu0 0.0
  %3299 = vmatprep.subr.mxu0 0.0
  %3300 = vmatpush1.msra.mxu0 0.0
  %3301 = vmatprep.subr.mxu0 0.0
  %3302 = vmatpush1.msra.mxu0 0.0
  %3303 = vmatprep.subr.mxu0 0.0
  %3304 = vmatpush1.msra.mxu0 0.0
  %3305 = vmatprep.subr.mxu0 0.0
  %3306 = vmatpush1.msra.mxu0 0.0
  %3307 = vmatprep.subr.mxu0 0.0
  %3308 = vmatpush1.msra.mxu0 0.0
  %3309 = vmatprep.subr.mxu0 0.0
  %3310 = vmatpush1.msra.mxu0 0.0
  %3311 = vmatprep.subr.mxu0 0.0
  %3312 = vmatpush1.msra.mxu0 0.0
  %3313 = vmatprep.subr.mxu0 0.0
  %3314 = vmatpush1.msra.mxu0 0.0
  %3315 = vmatprep.subr.mxu0 0.0
  %3316 = vmatpush1.msra.mxu0 0.0
  %3317 = vmatprep.subr.mxu0 0.0
  %3318 = vmatpush1.msra.mxu0 0.0
  %3319 = vmatprep.subr.mxu0 0.0
  %3320 = vmatpush1.msra.mxu0 0.0
  %3321 = vmatprep.subr.mxu0 0.0
  %3322 = vmatpush1.msra.mxu0 0.0
  %3323 = vmatprep.subr.mxu0 0.0
  %3324 = vmatpush1.msra.mxu0 0.0
  %3325 = vmatprep.mubr.f32.mxu0 0.0
  %3326 = vmatmul.mubr.f32.gmra.mrb[0].mxu0 %v3069
  %v3327 = vpop.f32.mrb[0].mxu0
  %v3328 = vadd.f32 0.0, %v3327
  %v3329 = vpop.f32.mrb[0].mxu0
  %v3330 = vadd.f32 0.0, %v3329
  %3331 = vdwg.mxu0
  %3332 = vmatprep.subr.mxu0 %v788
  %3333 = vmatpush1.msra.mxu0 %v787
  %3334 = vmatprep.subr.mxu0 %v792
  %3335 = vmatpush1.msra.mxu0 %v791
  %3336 = vmatprep.subr.mxu0 %v796
  %3337 = vmatpush1.msra.mxu0 %v795
  %3338 = vmatprep.subr.mxu0 %v800
  %3339 = vmatpush1.msra.mxu0 %v799
  %3340 = vmatprep.subr.mxu0 %v804
  %3341 = vmatpush1.msra.mxu0 %v803
  %3342 = vmatprep.subr.mxu0 %v808
  %3343 = vmatpush1.msra.mxu0 %v807
  %3344 = vmatprep.subr.mxu0 %v812
  %3345 = vmatpush1.msra.mxu0 %v811
  %3346 = vmatprep.subr.mxu0 %v816
  %3347 = vmatpush1.msra.mxu0 %v815
  %3348 = vmatprep.subr.mxu0 %v820
  %3349 = vmatpush1.msra.mxu0 %v819
  %3350 = vmatprep.subr.mxu0 %v824
  %3351 = vmatpush1.msra.mxu0 %v823
  %3352 = vmatprep.subr.mxu0 %v828
  %3353 = vmatpush1.msra.mxu0 %v827
  %3354 = vmatprep.subr.mxu0 %v832
  %3355 = vmatpush1.msra.mxu0 %v831
  %3356 = vmatprep.subr.mxu0 %v836
  %3357 = vmatpush1.msra.mxu0 %v835
  %3358 = vmatprep.subr.mxu0 %v840
  %3359 = vmatpush1.msra.mxu0 %v839
  %3360 = vmatprep.subr.mxu0 %v844
  %3361 = vmatpush1.msra.mxu0 %v843
  %3362 = vmatprep.subr.mxu0 %v848
  %3363 = vmatpush1.msra.mxu0 %v847
  %3364 = vmatprep.subr.mxu0 0.0
  %3365 = vmatpush1.msra.mxu0 0.0
  %3366 = vmatprep.subr.mxu0 0.0
  %3367 = vmatpush1.msra.mxu0 0.0
  %3368 = vmatprep.subr.mxu0 0.0
  %3369 = vmatpush1.msra.mxu0 0.0
  %3370 = vmatprep.subr.mxu0 0.0
  %3371 = vmatpush1.msra.mxu0 0.0
  %3372 = vmatprep.subr.mxu0 0.0
  %3373 = vmatpush1.msra.mxu0 0.0
  %3374 = vmatprep.subr.mxu0 0.0
  %3375 = vmatpush1.msra.mxu0 0.0
  %3376 = vmatprep.subr.mxu0 0.0
  %3377 = vmatpush1.msra.mxu0 0.0
  %3378 = vmatprep.subr.mxu0 0.0
  %3379 = vmatpush1.msra.mxu0 0.0
  %3380 = vmatprep.subr.mxu0 0.0
  %3381 = vmatpush1.msra.mxu0 0.0
  %3382 = vmatprep.subr.mxu0 0.0
  %3383 = vmatpush1.msra.mxu0 0.0
  %3384 = vmatprep.subr.mxu0 0.0
  %3385 = vmatpush1.msra.mxu0 0.0
  %3386 = vmatprep.subr.mxu0 0.0
  %3387 = vmatpush1.msra.mxu0 0.0
  %3388 = vmatprep.subr.mxu0 0.0
  %3389 = vmatpush1.msra.mxu0 0.0
  %3390 = vmatprep.subr.mxu0 0.0
  %3391 = vmatpush1.msra.mxu0 0.0
  %3392 = vmatprep.subr.mxu0 0.0
  %3393 = vmatpush1.msra.mxu0 0.0
  %3394 = vmatprep.subr.mxu0 0.0
  %3395 = vmatpush1.msra.mxu0 0.0
  %3396 = vmatprep.mubr.f32.mxu0 0.0
  %3397 = vmatmul.mubr.f32.gmra.mrb[0].mxu0 %v3069
  %v3398 = vpop.f32.mrb[0].mxu0
  %v3399 = vadd.f32 0.0, %v3398
  %v3400 = vpop.f32.mrb[0].mxu0
  %v3401 = vadd.f32 0.0, %v3400
  %3402 = vdwg.mxu0
  %v3403 = vadd.f32 %v3257, %v3328
  %v3404 = vadd.f32 %v3258, %v3330
  %v3405 = vadd.f32 %v3259, %v3399
  %v3406 = vadd.f32 %v3260, %v3401
  %v3407 = vxor.u32 %v3403, 2147483648
  %v3408 = vmul.f32 %v3407, 1.442695
  %v3409 = vpow.pop %v3408
  %v3410 = vadd.f32 %v3409, 1.0
  %v3411 = vrcp.pop %v3410
  %v3412 = vmul.f32 1.0, %v3411
  %v3413 = vxor.u32 %v3404, 2147483648
  %v3414 = vmul.f32 %v3413, 1.442695
  %v3415 = vpow.pop %v3414
  %v3416 = vadd.f32 %v3415, 1.0
  %v3417 = vrcp.pop %v3416
  %v3418 = vmul.f32 1.0, %v3417
  %v3419 = vtanh.pop %v3405
  %v3420 = vxor.u32 %v3406, 2147483648
  %v3421 = vmul.f32 %v3420, 1.442695
  %v3422 = vpow.pop %v3421
  %v3423 = vadd.f32 %v3422, 1.0
  %v3424 = vrcp.pop %v3423
  %v3425 = vmul.f32 1.0, %v3424
  %v3426 = vmul.f32 %v3418, %v3070
  %v3427 = vmul.f32 %v3412, %v3419
  %v3428 = vadd.f32 %v3426, %v3427
  %v3429 = vtanh.pop %v3428
  %v3430 = vmul.f32 %v3425, %v3429
  %s3431 = sadd.s32 %s852, 1
  %v3432 = vstv %s3431
  %vm3433 = vcmp.lt.s32.totalorder %v3432, %v849
  %v3434 = vsel %vm3433, %v3430, 0.0
  %s3435 = scalar_lea.vmem %s69, 8
  %3436 = vst [vmem:[%s3435] sm:$0xff] %v3434
  %v3437 = vsel %vm3433, %v3430, %v3069
  %v3438 = vsel %vm3433, %v3428, %v3070
  %s3439 = smul.addr %s1040, 8
  %s3440 = scalar_lea.vmem [#allocation2], %s3439
  %v3441 = vld [vmem:[%s3440] sm:$0xff]
  %v3442 = vld [vmem:[%s3440 + $0x8] sm:$0xff]
  %v3443 = vld [vmem:[%s3440 + $0x10] sm:$0xff]
  %v3444 = vld [vmem:[%s3440 + $0x18] sm:$0xff]
  %3445 = vmatprep.subr.mxu0 %v722
  %3446 = vmatpush1.msra.mxu0 %v721
  %3447 = vmatprep.subr.mxu0 %v726
  %3448 = vmatpush1.msra.mxu0 %v725
  %3449 = vmatprep.subr.mxu0 %v730
  %3450 = vmatpush1.msra.mxu0 %v729
  %3451 = vmatprep.subr.mxu0 %v734
  %3452 = vmatpush1.msra.mxu0 %v733
  %3453 = vmatprep.subr.mxu0 %v738
  %3454 = vmatpush1.msra.mxu0 %v737
  %3455 = vmatprep.subr.mxu0 %v742
  %3456 = vmatpush1.msra.mxu0 %v741
  %3457 = vmatprep.subr.mxu0 %v746
  %3458 = vmatpush1.msra.mxu0 %v745
  %3459 = vmatprep.subr.mxu0 %v750
  %3460 = vmatpush1.msra.mxu0 %v749
  %3461 = vmatprep.subr.mxu0 %v754
  %3462 = vmatpush1.msra.mxu0 %v753
  %3463 = vmatprep.subr.mxu0 %v758
  %3464 = vmatpush1.msra.mxu0 %v757
  %3465 = vmatprep.subr.mxu0 %v762
  %3466 = vmatpush1.msra.mxu0 %v761
  %3467 = vmatprep.subr.mxu0 %v766
  %3468 = vmatpush1.msra.mxu0 %v765
  %3469 = vmatprep.subr.mxu0 %v770
  %3470 = vmatpush1.msra.mxu0 %v769
  %3471 = vmatprep.subr.mxu0 %v774
  %3472 = vmatpush1.msra.mxu0 %v773
  %3473 = vmatprep.subr.mxu0 %v778
  %3474 = vmatpush1.msra.mxu0 %v777
  %3475 = vmatprep.subr.mxu0 %v782
  %3476 = vmatpush1.msra.mxu0 %v781
  %3477 = vmatprep.subr.mxu0 0.0
  %3478 = vmatpush1.msra.mxu0 0.0
  %3479 = vmatprep.subr.mxu0 0.0
  %3480 = vmatpush1.msra.mxu0 0.0
  %3481 = vmatprep.subr.mxu0 0.0
  %3482 = vmatpush1.msra.mxu0 0.0
  %3483 = vmatprep.subr.mxu0 0.0
  %3484 = vmatpush1.msra.mxu0 0.0
  %3485 = vmatprep.subr.mxu0 0.0
  %3486 = vmatpush1.msra.mxu0 0.0
  %3487 = vmatprep.subr.mxu0 0.0
  %3488 = vmatpush1.msra.mxu0 0.0
  %3489 = vmatprep.subr.mxu0 0.0
  %3490 = vmatpush1.msra.mxu0 0.0
  %3491 = vmatprep.subr.mxu0 0.0
  %3492 = vmatpush1.msra.mxu0 0.0
  %3493 = vmatprep.subr.mxu0 0.0
  %3494 = vmatpush1.msra.mxu0 0.0
  %3495 = vmatprep.subr.mxu0 0.0
  %3496 = vmatpush1.msra.mxu0 0.0
  %3497 = vmatprep.subr.mxu0 0.0
  %3498 = vmatpush1.msra.mxu0 0.0
  %3499 = vmatprep.subr.mxu0 0.0
  %3500 = vmatpush1.msra.mxu0 0.0
  %3501 = vmatprep.subr.mxu0 0.0
  %3502 = vmatpush1.msra.mxu0 0.0
  %3503 = vmatprep.subr.mxu0 0.0
  %3504 = vmatpush1.msra.mxu0 0.0
  %3505 = vmatprep.subr.mxu0 0.0
  %3506 = vmatpush1.msra.mxu0 0.0
  %3507 = vmatprep.subr.mxu0 0.0
  %3508 = vmatpush1.msra.mxu0 0.0
  %3509 = vmatprep.mubr.f32.mxu0 0.0
  %3510 = vmatmul.mubr.f32.gmra.mrb[0].mxu0 %v3253
  %v3511 = vpop.f32.mrb[0].mxu0
  %v3512 = vadd.f32 0.0, %v3511
  %v3513 = vpop.f32.mrb[0].mxu0
  %v3514 = vadd.f32 0.0, %v3513
  %3515 = vdwg.mxu0
  %3516 = vmatprep.subr.mxu0 %v724
  %3517 = vmatpush1.msra.mxu0 %v723
  %3518 = vmatprep.subr.mxu0 %v728
  %3519 = vmatpush1.msra.mxu0 %v727
  %3520 = vmatprep.subr.mxu0 %v732
  %3521 = vmatpush1.msra.mxu0 %v731
  %3522 = vmatprep.subr.mxu0 %v736
  %3523 = vmatpush1.msra.mxu0 %v735
  %3524 = vmatprep.subr.mxu0 %v740
  %3525 = vmatpush1.msra.mxu0 %v739
  %3526 = vmatprep.subr.mxu0 %v744
  %3527 = vmatpush1.msra.mxu0 %v743
  %3528 = vmatprep.subr.mxu0 %v748
  %3529 = vmatpush1.msra.mxu0 %v747
  %3530 = vmatprep.subr.mxu0 %v752
  %3531 = vmatpush1.msra.mxu0 %v751
  %3532 = vmatprep.subr.mxu0 %v756
  %3533 = vmatpush1.msra.mxu0 %v755
  %3534 = vmatprep.subr.mxu0 %v760
  %3535 = vmatpush1.msra.mxu0 %v759
  %3536 = vmatprep.subr.mxu0 %v764
  %3537 = vmatpush1.msra.mxu0 %v763
  %3538 = vmatprep.subr.mxu0 %v768
  %3539 = vmatpush1.msra.mxu0 %v767
  %3540 = vmatprep.subr.mxu0 %v772
  %3541 = vmatpush1.msra.mxu0 %v771
  %3542 = vmatprep.subr.mxu0 %v776
  %3543 = vmatpush1.msra.mxu0 %v775
  %3544 = vmatprep.subr.mxu0 %v780
  %3545 = vmatpush1.msra.mxu0 %v779
  %3546 = vmatprep.subr.mxu0 %v784
  %3547 = vmatpush1.msra.mxu0 %v783
  %3548 = vmatprep.subr.mxu0 0.0
  %3549 = vmatpush1.msra.mxu0 0.0
  %3550 = vmatprep.subr.mxu0 0.0
  %3551 = vmatpush1.msra.mxu0 0.0
  %3552 = vmatprep.subr.mxu0 0.0
  %3553 = vmatpush1.msra.mxu0 0.0
  %3554 = vmatprep.subr.mxu0 0.0
  %3555 = vmatpush1.msra.mxu0 0.0
  %3556 = vmatprep.subr.mxu0 0.0
  %3557 = vmatpush1.msra.mxu0 0.0
  %3558 = vmatprep.subr.mxu0 0.0
  %3559 = vmatpush1.msra.mxu0 0.0
  %3560 = vmatprep.subr.mxu0 0.0
  %3561 = vmatpush1.msra.mxu0 0.0
  %3562 = vmatprep.subr.mxu0 0.0
  %3563 = vmatpush1.msra.mxu0 0.0
  %3564 = vmatprep.subr.mxu0 0.0
  %3565 = vmatpush1.msra.mxu0 0.0
  %3566 = vmatprep.subr.mxu0 0.0
  %3567 = vmatpush1.msra.mxu0 0.0
  %3568 = vmatprep.subr.mxu0 0.0
  %3569 = vmatpush1.msra.mxu0 0.0
  %3570 = vmatprep.subr.mxu0 0.0
  %3571 = vmatpush1.msra.mxu0 0.0
  %3572 = vmatprep.subr.mxu0 0.0
  %3573 = vmatpush1.msra.mxu0 0.0
  %3574 = vmatprep.subr.mxu0 0.0
  %3575 = vmatpush1.msra.mxu0 0.0
  %3576 = vmatprep.subr.mxu0 0.0
  %3577 = vmatpush1.msra.mxu0 0.0
  %3578 = vmatprep.subr.mxu0 0.0
  %3579 = vmatpush1.msra.mxu0 0.0
  %3580 = vmatprep.mubr.f32.mxu0 0.0
  %3581 = vmatmul.mubr.f32.gmra.mrb[0].mxu0 %v3253
  %v3582 = vpop.f32.mrb[0].mxu0
  %v3583 = vadd.f32 0.0, %v3582
  %v3584 = vpop.f32.mrb[0].mxu0
  %v3585 = vadd.f32 0.0, %v3584
  %3586 = vdwg.mxu0
  %v3587 = vadd.f32 %v3441, %v3512
  %v3588 = vadd.f32 %v3442, %v3514
  %v3589 = vadd.f32 %v3443, %v3583
  %v3590 = vadd.f32 %v3444, %v3585
  %v3591 = vxor.u32 %v3587, 2147483648
  %v3592 = vmul.f32 %v3591, 1.442695
  %v3593 = vpow.pop %v3592
  %v3594 = vadd.f32 %v3593, 1.0
  %v3595 = vrcp.pop %v3594
  %v3596 = vmul.f32 1.0, %v3595
  %v3597 = vxor.u32 %v3588, 2147483648
  %v3598 = vmul.f32 %v3597, 1.442695
  %v3599 = vpow.pop %v3598
  %v3600 = vadd.f32 %v3599, 1.0
  %v3601 = vrcp.pop %v3600
  %v3602 = vmul.f32 1.0, %v3601
  %v3603 = vtanh.pop %v3589
  %v3604 = vxor.u32 %v3590, 2147483648
  %v3605 = vmul.f32 %v3604, 1.442695
  %v3606 = vpow.pop %v3605
  %v3607 = vadd.f32 %v3606, 1.0
  %v3608 = vrcp.pop %v3607
  %v3609 = vmul.f32 1.0, %v3608
  %v3610 = vmul.f32 %v3602, %v3254
  %v3611 = vmul.f32 %v3596, %v3603
  %v3612 = vadd.f32 %v3610, %v3611
  %v3613 = vtanh.pop %v3612
  %v3614 = vmul.f32 %v3609, %v3613
  %s3615 = sadd.s32 %s850, 7
  %v3616 = vstv %s3615
  %vm3617 = vcmp.lt.s32.totalorder %v3616, %v849
  %v3618 = vsel %vm3617, %v3614, 0.0
  %s3619 = scalar_lea.vmem %s9, 56
  %3620 = vst [vmem:[%s3619] sm:$0xff] %v3618
  %v3621 = vsel %vm3617, %v3614, %v3253
  %v3622 = vsel %vm3617, %v3612, %v3254
  %s3623 = smul.addr %s857, 8
  %s3624 = scalar_lea.vmem [#allocation3], %s3623
  %v3625 = vld [vmem:[%s3624] sm:$0xff]
  %v3626 = vld [vmem:[%s3624 + $0x8] sm:$0xff]
  %v3627 = vld [vmem:[%s3624 + $0x10] sm:$0xff]
  %v3628 = vld [vmem:[%s3624 + $0x18] sm:$0xff]
  %3629 = vmatprep.subr.mxu0 %v786
  %3630 = vmatpush1.msra.mxu0 %v785
  %3631 = vmatprep.subr.mxu0 %v790
  %3632 = vmatpush1.msra.mxu0 %v789
  %3633 = vmatprep.subr.mxu0 %v794
  %3634 = vmatpush1.msra.mxu0 %v793
  %3635 = vmatprep.subr.mxu0 %v798
  %3636 = vmatpush1.msra.mxu0 %v797
  %3637 = vmatprep.subr.mxu0 %v802
  %3638 = vmatpush1.msra.mxu0 %v801
  %3639 = vmatprep.subr.mxu0 %v806
  %3640 = vmatpush1.msra.mxu0 %v805
  %3641 = vmatprep.subr.mxu0 %v810
  %3642 = vmatpush1.msra.mxu0 %v809
  %3643 = vmatprep.subr.mxu0 %v814
  %3644 = vmatpush1.msra.mxu0 %v813
  %3645 = vmatprep.subr.mxu0 %v818
  %3646 = vmatpush1.msra.mxu0 %v817
  %3647 = vmatprep.subr.mxu0 %v822
  %3648 = vmatpush1.msra.mxu0 %v821
  %3649 = vmatprep.subr.mxu0 %v826
  %3650 = vmatpush1.msra.mxu0 %v825
  %3651 = vmatprep.subr.mxu0 %v830
  %3652 = vmatpush1.msra.mxu0 %v829
  %3653 = vmatprep.subr.mxu0 %v834
  %3654 = vmatpush1.msra.mxu0 %v833
  %3655 = vmatprep.subr.mxu0 %v838
  %3656 = vmatpush1.msra.mxu0 %v837
  %3657 = vmatprep.subr.mxu0 %v842
  %3658 = vmatpush1.msra.mxu0 %v841
  %3659 = vmatprep.subr.mxu0 %v846
  %3660 = vmatpush1.msra.mxu0 %v845
  %3661 = vmatprep.subr.mxu0 0.0
  %3662 = vmatpush1.msra.mxu0 0.0
  %3663 = vmatprep.subr.mxu0 0.0
  %3664 = vmatpush1.msra.mxu0 0.0
  %3665 = vmatprep.subr.mxu0 0.0
  %3666 = vmatpush1.msra.mxu0 0.0
  %3667 = vmatprep.subr.mxu0 0.0
  %3668 = vmatpush1.msra.mxu0 0.0
  %3669 = vmatprep.subr.mxu0 0.0
  %3670 = vmatpush1.msra.mxu0 0.0
  %3671 = vmatprep.subr.mxu0 0.0
  %3672 = vmatpush1.msra.mxu0 0.0
  %3673 = vmatprep.subr.mxu0 0.0
  %3674 = vmatpush1.msra.mxu0 0.0
  %3675 = vmatprep.subr.mxu0 0.0
  %3676 = vmatpush1.msra.mxu0 0.0
  %3677 = vmatprep.subr.mxu0 0.0
  %3678 = vmatpush1.msra.mxu0 0.0
  %3679 = vmatprep.subr.mxu0 0.0
  %3680 = vmatpush1.msra.mxu0 0.0
  %3681 = vmatprep.subr.mxu0 0.0
  %3682 = vmatpush1.msra.mxu0 0.0
  %3683 = vmatprep.subr.mxu0 0.0
  %3684 = vmatpush1.msra.mxu0 0.0
  %3685 = vmatprep.subr.mxu0 0.0
  %3686 = vmatpush1.msra.mxu0 0.0
  %3687 = vmatprep.subr.mxu0 0.0
  %3688 = vmatpush1.msra.mxu0 0.0
  %3689 = vmatprep.subr.mxu0 0.0
  %3690 = vmatpush1.msra.mxu0 0.0
  %3691 = vmatprep.subr.mxu0 0.0
  %3692 = vmatpush1.msra.mxu0 0.0
  %3693 = vmatprep.mubr.f32.mxu0 0.0
  %3694 = vmatmul.mubr.f32.gmra.mrb[0].mxu0 %v3437
  %v3695 = vpop.f32.mrb[0].mxu0
  %v3696 = vadd.f32 0.0, %v3695
  %v3697 = vpop.f32.mrb[0].mxu0
  %v3698 = vadd.f32 0.0, %v3697
  %3699 = vdwg.mxu0
  %3700 = vmatprep.subr.mxu0 %v788
  %3701 = vmatpush1.msra.mxu0 %v787
  %3702 = vmatprep.subr.mxu0 %v792
  %3703 = vmatpush1.msra.mxu0 %v791
  %3704 = vmatprep.subr.mxu0 %v796
  %3705 = vmatpush1.msra.mxu0 %v795
  %3706 = vmatprep.subr.mxu0 %v800
  %3707 = vmatpush1.msra.mxu0 %v799
  %3708 = vmatprep.subr.mxu0 %v804
  %3709 = vmatpush1.msra.mxu0 %v803
  %3710 = vmatprep.subr.mxu0 %v808
  %3711 = vmatpush1.msra.mxu0 %v807
  %3712 = vmatprep.subr.mxu0 %v812
  %3713 = vmatpush1.msra.mxu0 %v811
  %3714 = vmatprep.subr.mxu0 %v816
  %3715 = vmatpush1.msra.mxu0 %v815
  %3716 = vmatprep.subr.mxu0 %v820
  %3717 = vmatpush1.msra.mxu0 %v819
  %3718 = vmatprep.subr.mxu0 %v824
  %3719 = vmatpush1.msra.mxu0 %v823
  %3720 = vmatprep.subr.mxu0 %v828
  %3721 = vmatpush1.msra.mxu0 %v827
  %3722 = vmatprep.subr.mxu0 %v832
  %3723 = vmatpush1.msra.mxu0 %v831
  %3724 = vmatprep.subr.mxu0 %v836
  %3725 = vmatpush1.msra.mxu0 %v835
  %3726 = vmatprep.subr.mxu0 %v840
  %3727 = vmatpush1.msra.mxu0 %v839
  %3728 = vmatprep.subr.mxu0 %v844
  %3729 = vmatpush1.msra.mxu0 %v843
  %3730 = vmatprep.subr.mxu0 %v848
  %3731 = vmatpush1.msra.mxu0 %v847
  %3732 = vmatprep.subr.mxu0 0.0
  %3733 = vmatpush1.msra.mxu0 0.0
  %3734 = vmatprep.subr.mxu0 0.0
  %3735 = vmatpush1.msra.mxu0 0.0
  %3736 = vmatprep.subr.mxu0 0.0
  %3737 = vmatpush1.msra.mxu0 0.0
  %3738 = vmatprep.subr.mxu0 0.0
  %3739 = vmatpush1.msra.mxu0 0.0
  %3740 = vmatprep.subr.mxu0 0.0
  %3741 = vmatpush1.msra.mxu0 0.0
  %3742 = vmatprep.subr.mxu0 0.0
  %3743 = vmatpush1.msra.mxu0 0.0
  %3744 = vmatprep.subr.mxu0 0.0
  %3745 = vmatpush1.msra.mxu0 0.0
  %3746 = vmatprep.subr.mxu0 0.0
  %3747 = vmatpush1.msra.mxu0 0.0
  %3748 = vmatprep.subr.mxu0 0.0
  %3749 = vmatpush1.msra.mxu0 0.0
  %3750 = vmatprep.subr.mxu0 0.0
  %3751 = vmatpush1.msra.mxu0 0.0
  %3752 = vmatprep.subr.mxu0 0.0
  %3753 = vmatpush1.msra.mxu0 0.0
  %3754 = vmatprep.subr.mxu0 0.0
  %3755 = vmatpush1.msra.mxu0 0.0
  %3756 = vmatprep.subr.mxu0 0.0
  %3757 = vmatpush1.msra.mxu0 0.0
  %3758 = vmatprep.subr.mxu0 0.0
  %3759 = vmatpush1.msra.mxu0 0.0
  %3760 = vmatprep.subr.mxu0 0.0
  %3761 = vmatpush1.msra.mxu0 0.0
  %3762 = vmatprep.subr.mxu0 0.0
  %3763 = vmatpush1.msra.mxu0 0.0
  %3764 = vmatprep.mubr.f32.mxu0 0.0
  %3765 = vmatmul.mubr.f32.gmra.mrb[0].mxu0 %v3437
  %v3766 = vpop.f32.mrb[0].mxu0
  %v3767 = vadd.f32 0.0, %v3766
  %v3768 = vpop.f32.mrb[0].mxu0
  %v3769 = vadd.f32 0.0, %v3768
  %3770 = vdwg.mxu0
  %v3771 = vadd.f32 %v3625, %v3696
  %v3772 = vadd.f32 %v3626, %v3698
  %v3773 = vadd.f32 %v3627, %v3767
  %v3774 = vadd.f32 %v3628, %v3769
  %v3775 = vxor.u32 %v3771, 2147483648
  %v3776 = vmul.f32 %v3775, 1.442695
  %v3777 = vpow.pop %v3776
  %v3778 = vadd.f32 %v3777, 1.0
  %v3779 = vrcp.pop %v3778
  %v3780 = vmul.f32 1.0, %v3779
  %v3781 = vxor.u32 %v3772, 2147483648
  %v3782 = vmul.f32 %v3781, 1.442695
  %v3783 = vpow.pop %v3782
  %v3784 = vadd.f32 %v3783, 1.0
  %v3785 = vrcp.pop %v3784
  %v3786 = vmul.f32 1.0, %v3785
  %v3787 = vtanh.pop %v3773
  %v3788 = vxor.u32 %v3774, 2147483648
  %v3789 = vmul.f32 %v3788, 1.442695
  %v3790 = vpow.pop %v3789
  %v3791 = vadd.f32 %v3790, 1.0
  %v3792 = vrcp.pop %v3791
  %v3793 = vmul.f32 1.0, %v3792
  %v3794 = vmul.f32 %v3786, %v3438
  %v3795 = vmul.f32 %v3780, %v3787
  %v3796 = vadd.f32 %v3794, %v3795
  %v3797 = vtanh.pop %v3796
  %v3798 = vmul.f32 %v3793, %v3797
  %v3799 = vstv %s852
  %vm3800 = vcmp.lt.s32.totalorder %v3799, %v849
  %v3801 = vsel %vm3800, %v3798, 0.0
  %3802 = vst [vmem:[%s69] sm:$0xff] %v3801
  %v3803 = vsel %vm3800, %v3798, %v3437
  %v3804 = vsel %vm3800, %v3796, %v3438
  %3805 = vst [vmem:[#allocation4] sm:$0xff] %v3621
  %3806 = vst [vmem:[#allocation5] sm:$0xff] %v3622
  %3807 = vst [vmem:[#allocation6] sm:$0xff] %v3803
  %3808 = vst [vmem:[#allocation7] sm:$0xff] %v3804
  %3809 = vst [vmem:[%s11] sm:$0xff] %v3621
  %3810 = vst [vmem:[%s12] sm:$0xff] %v3803
  %s3811 = ssub.s32 0, 0
  %s3812 = smul.u32 8, %s3811
  %p3813 = scmp.lt.s32.totalorder %s3812, 7
  %s3814 = scalar_select %p3813, %s3812, 7
  %s3815 = smul.addr %s3814, 8
  %s3816 = scalar_lea.vmem %s10, %s3815
  // Predicated region
  $region42: #{rnn_encoder_forward.1} parent=0 // pred_check
    _
  $region43: #{rnn_encoder_forward.1} parent=0 // pred_check_branch
    %3818 = sbr.rel (0) target = $region45
  $region44: #{rnn_encoder_forward.1} parent=0 // pred_region
    _
  $region45: #{rnn_encoder_forward.1} parent=0 // pred_fallthru
    _
  // Predicated region
  $region46: #{rnn_encoder_forward.1} parent=0 // pred_check
    _
  $region47: #{rnn_encoder_forward.1} parent=0 // pred_check_branch
    %3820 = sbr.rel (0) target = $region49
  $region48: #{rnn_encoder_forward.1} parent=0 // pred_region
    %s3821 = ssub.s32 0, 0
    %s3822 = smul.u32 8, %s3821
  $region49: #{rnn_encoder_forward.1} parent=0 // pred_fallthru
    _
  // Predicated region
  $region50: #{rnn_encoder_forward.1} parent=0 // pred_check
    _
  $region51: #{rnn_encoder_forward.1} parent=0 // pred_check_branch
    %3824 = sbr.rel (0) target = $region53
  $region52: #{rnn_encoder_forward.1} parent=0 // pred_region
    _
  $region53: #{rnn_encoder_forward.1} parent=0 // pred_fallthru
    _
  // Predicated region
  $region54: #{rnn_encoder_forward.1} parent=0 // pred_check
    _
  $region55: #{rnn_encoder_forward.1} parent=0 // pred_check_branch
    %3826 = sbr.rel (0) target = $region57
  $region56: #{rnn_encoder_forward.1} parent=0 // pred_region
    _
  $region57: #{rnn_encoder_forward.1} parent=0 // pred_fallthru
    _
  // Predicated region
  $region58: #{rnn_encoder_forward.1} parent=0 // pred_check
    _
  $region59: #{rnn_encoder_forward.1} parent=0 // pred_check_branch
    %3828 = sbr.rel (0) target = $region61
  $region60: #{rnn_encoder_forward.1} parent=0 // pred_region
    _
  $region61: #{rnn_encoder_forward.1} parent=0 // pred_fallthru
    _
  // Predicated region
  $region62: #{rnn_encoder_forward.1} parent=0 // pred_check
    _
  $region63: #{rnn_encoder_forward.1} parent=0 // pred_check_branch
    %3830 = sbr.rel (0) target = $region65
  $region64: #{rnn_encoder_forward.1} parent=0 // pred_region
    %s3831 = ssub.s32 0, 0
    %s3832 = smul.u32 8, %s3831
    %p3833 = scmp.lt.s32.totalorder %s3832, 7
    %s3834 = scalar_select %p3833, %s3832, 7
    %s3835 = smul.addr %s3834, 8
    %s3836 = scalar_lea.vmem %s10, %s3835
  $region65: #{rnn_encoder_forward.1} parent=0 // pred_fallthru
    _
  // Predicated region
  $region66: #{rnn_encoder_forward.1} parent=0 // pred_check
    _
  $region67: #{rnn_encoder_forward.1} parent=0 // pred_check_branch
    %3838 = sbr.rel (0) target = $region69
  $region68: #{rnn_encoder_forward.1} parent=0 // pred_region
    _
  $region69: #{rnn_encoder_forward.1} parent=0 // pred_fallthru
    _
  // Predicated region
  $region70: #{rnn_encoder_forward.1} parent=0 // pred_check
    _
  $region71: #{rnn_encoder_forward.1} parent=0 // pred_check_branch
    %3840 = sbr.rel (0) target = $region73
  $region72: #{rnn_encoder_forward.1} parent=0 // pred_region
    _
  $region73: #{rnn_encoder_forward.1} parent=0 // pred_fallthru
    _

</llo_original>
